<compile_context>
chip_gen: v5e
topology: v5e:2x2
jax: 0.10.0
libtpu: 0.0.40
codegen_flags: <defaults>
</compile_context>

<pallas_src>
import jax
import jax.numpy as jnp
from jax.experimental import pallas as pl
from jax.experimental.pallas import tpu as pltpu  # noqa: F401  (TPU backend)

# ----------------- mini-BERT config (synthetic, deterministic init) -----------------
B = 2            # batch
S = 10           # subword sequence length (incl. [CLS]/[SEP])
SW = S - 2       # word-level length after dropping CLS/SEP
V = 50           # vocab size
H = 32           # bert hidden size
NH = 4           # attention heads
DH = H // NH     # head dim
FF = 64          # ffn intermediate
NLAYERS = 2      # bert encoder layers
NUM_CLASS = 5    # CRF tags
HC = H // 2      # lstm hidden per direction
NLSTM = 2        # lstm layers

# ----- packed-parameter row indices -----
# misc pack: (16, 128)
_MISC_EMB_G = 0        # embedding LayerNorm gamma            (lanes 0:H)
_MISC_EMB_B = 1        # embedding LayerNorm beta             (lanes 0:H)
_MISC_CLS_B = 2        # classifier bias                      (lanes 0:NUM_CLASS)
_MISC_CRF_START = 3    # CRF start transitions                (lanes 0:NUM_CLASS)
_MISC_CRF_END = 4      # CRF end transitions                  (lanes 0:NUM_CLASS)
_MISC_CRF_TRT = 8      # rows 8:13 -> trans.T  (trT[cur, prev] = trans[prev, cur])
_MISC_LSTM_BIH = 13    # rows 13,14 -> per-layer fused LSTM input bias (128)
# bert_vec pack: (NLAYERS, 8, 128), one row per per-layer vector
_V_QKV_B, _V_AO_B, _V_LN1_G, _V_LN1_B, _V_FF1_B, _V_FF2_B, _V_LN2_G, _V_LN2_B = range(8)


# ============================================================================
# Single fused kernel: BERT encoder + first-BPE gather + BiLSTM + classifier
#                      + log_softmax + CRF Viterbi decode
# ============================================================================
def _fused_kernel(x_ref, bias_ref, g_ref, mask_ref,
                  qkvw_ref, aow_ref, ff1w_ref, ff2w_ref, vec_ref, misc_ref,
                  clsw_ref, wih_ref, whh_ref,
                  pred_ref):
    f32 = jnp.float32
    scale = 1.0 / (DH ** 0.5)
    misc = misc_ref[...]                               # (16, 128) packed small params

    def ln(v, gamma, beta):
        mu = jnp.mean(v, axis=-1, keepdims=True)
        var = jnp.mean((v - mu) ** 2, axis=-1, keepdims=True)
        return (v - mu) * jax.lax.rsqrt(var + 1e-12) * gamma + beta

    # ---------------- BERT encoder (embedding LN + NLAYERS post-LN layers) --------------
    x = ln(x_ref[...],
           misc[_MISC_EMB_G:_MISC_EMB_G + 1, 0:H],
           misc[_MISC_EMB_B:_MISC_EMB_B + 1, 0:H])     # (B*S, H)
    bias = bias_ref[...]                               # (B*S, B*S) block-diag + key-len mask

    for l in range(NLAYERS):                           # fully unrolled (NLAYERS=2)
        vec = vec_ref[l]                               # (8, 128) per-layer vectors

        # fused QKV projection: one (B*S, H) @ (H, 3H) matmul
        qkv = (jnp.dot(x, qkvw_ref[l], preferred_element_type=f32)
               + vec[_V_QKV_B:_V_QKV_B + 1, 0:3 * H])

        # per-head attention; the 4 ctx chunks are lane-concatenated so the output
        # projection is ONE (B*S,H)@(H,H) matmul instead of 4 accumulated ones
        ctx_parts = []
        for h in range(NH):
            qh = qkv[:, h * DH:(h + 1) * DH]
            kh = qkv[:, H + h * DH: H + (h + 1) * DH]
            vh = qkv[:, 2 * H + h * DH: 2 * H + (h + 1) * DH]
            s = jax.lax.dot_general(qh, kh, (((1,), (1,)), ((), ())),
                                    preferred_element_type=f32) * scale + bias
            m = jnp.max(s, axis=-1, keepdims=True)
            p = jnp.exp(s - m)
            p = p / jnp.sum(p, axis=-1, keepdims=True)              # exact softmax
            ctx_parts.append(jnp.dot(p, vh, preferred_element_type=f32))   # (B*S, DH)
        ctx = jnp.concatenate(ctx_parts, axis=1)                    # (B*S, H)
        attn = (jnp.dot(ctx, aow_ref[l], preferred_element_type=f32)
                + vec[_V_AO_B:_V_AO_B + 1, 0:H])

        # residual folded into LayerNorm
        x = ln(attn + x, vec[_V_LN1_G:_V_LN1_G + 1, 0:H], vec[_V_LN1_B:_V_LN1_B + 1, 0:H])

        # FFN with GELU epilogue fused onto the first matmul
        ff = (jnp.dot(x, ff1w_ref[l], preferred_element_type=f32)
              + vec[_V_FF1_B:_V_FF1_B + 1, 0:FF])
        # TODO(synk): HF BERT uses exact erf-GELU; tanh approximation used here (EUP-friendly).
        ff = 0.5 * ff * (1.0 + jnp.tanh(0.7978845608028654 * (ff + 0.044715 * ff * ff * ff)))
        ff = (jnp.dot(ff, ff2w_ref[l], preferred_element_type=f32)
              + vec[_V_FF2_B:_V_FF2_B + 1, 0:H])
        x = ln(ff + x, vec[_V_LN2_G:_V_LN2_G + 1, 0:H], vec[_V_LN2_B:_V_LN2_B + 1, 0:H])

    # ---- first-BPE gather (incl. [:, 1:-1]) as one-hot matmul, TIME-MAJOR (SW*B, H) ----
    xw = jnp.dot(g_ref[...], x, preferred_element_type=f32)
    # nn.Dropout(0.3) -> identity (eval)

    # ---------------- BiLSTM: both directions via ONE block-diagonal recurrent matmul ----
    for l in range(NLSTM):                             # unrolled lstm layers
        wih = wih_ref[l]                               # (H, 8*HC)  fwd|bwd input projections
        whh = whh_ref[l]                               # (2*HC, 8*HC) block-diag recurrent
        bih = misc[_MISC_LSTM_BIH + l:_MISC_LSTM_BIH + l + 1, :]     # (1, 128)
        xg = jnp.dot(xw, wih, preferred_element_type=f32) + bih      # (SW*B, 128) lane-dense

        out_f = [None] * SW
        out_b = [None] * SW
        h_cat = None                                   # (B, 2*HC) = [h_f | h_b]
        c_f = None
        c_b = None
        for t in range(SW):                            # unrolled recurrence (SW=8)
            rt = SW - 1 - t                            # backward direction reads reversed time
            xg_t = jnp.concatenate(
                [xg[t * B:(t + 1) * B, 0:4 * HC],      # fwd gates from time t
                 xg[rt * B:(rt + 1) * B, 4 * HC:8 * HC]],  # bwd gates from time rt
                axis=1)                                # (B, 128)
            if h_cat is None:                          # h0 = 0 -> skip recurrent matmul
                g = xg_t
            else:
                g = xg_t + jnp.dot(h_cat, whh, preferred_element_type=f32)

            sg = jax.nn.sigmoid(g)                     # one EUP push over the whole vreg
            tg = jnp.tanh(g)                           # one EUP push over the whole vreg
            # PyTorch gate order [i, f, g, o] per direction (fwd cols 0:64, bwd cols 64:128)
            if c_f is None:                            # c0 = 0
                c_f = sg[:, 0:HC] * tg[:, 2 * HC:3 * HC]
                c_b = sg[:, 4 * HC:5 * HC] * tg[:, 6 * HC:7 * HC]
            else:
                c_f = sg[:, HC:2 * HC] * c_f + sg[:, 0:HC] * tg[:, 2 * HC:3 * HC]
                c_b = sg[:, 5 * HC:6 * HC] * c_b + sg[:, 4 * HC:5 * HC] * tg[:, 6 * HC:7 * HC]
            o_cat = jnp.concatenate([sg[:, 3 * HC:4 * HC], sg[:, 7 * HC:8 * HC]], axis=1)
            h_cat = o_cat * jnp.tanh(jnp.concatenate([c_f, c_b], axis=1))   # (B, 2*HC)

            out_f[t] = h_cat[:, 0:HC]
            out_b[rt] = h_cat[:, HC:2 * HC]

        # register-resident layer output: (SW*B, HC)+(SW*B, HC) -> (SW*B, H); no scratch stores
        xw = jnp.concatenate([jnp.concatenate(out_f, axis=0),
                              jnp.concatenate(out_b, axis=0)], axis=1)
        # TODO(synk): inter-layer LSTM dropout(0.5) is an eval-mode identity.

    # ---------------- classifier + log_softmax (VMEM resident, C=5 never hits HBM) -------
    logits = (jnp.dot(xw, clsw_ref[...], preferred_element_type=f32)
              + misc[_MISC_CLS_B:_MISC_CLS_B + 1, 0:NUM_CLASS])      # (SW*B, C)
    mx = jnp.max(logits, axis=-1, keepdims=True)
    z = logits - mx
    logp = z - jnp.log(jnp.sum(jnp.exp(z), axis=-1, keepdims=True))

    # ---------------- CRF Viterbi (include_start_end_trans), unrolled DP + backtrace -----
    mask = mask_ref[...]                               # (B, SW) float word mask
    iota_c = jax.lax.broadcasted_iota(jnp.int32, (B, NUM_CLASS), 1)
    iota_p = jax.lax.broadcasted_iota(jnp.int32, (B, NUM_CLASS, NUM_CLASS), 2)   # hoisted
    trT = misc[_MISC_CRF_TRT:_MISC_CRF_TRT + NUM_CLASS, 0:NUM_CLASS]  # trT[cur, prev]
    start = misc[_MISC_CRF_START:_MISC_CRF_START + 1, 0:NUM_CLASS]
    end = misc[_MISC_CRF_END:_MISC_CRF_END + 1, 0:NUM_CLASS]

    vscore = logp[0:B, :] + start                      # (B, C)
    bps = []
    for t in range(1, SW):
        lp_t = logp[t * B:(t + 1) * B, :]              # (B, C)
        m_t = mask[:, t:t + 1]                         # (B, 1)
        # emission lp_t is constant over 'prev' -> add after the max (argmax unchanged)
        cand = vscore[:, None, :] + trT[None, :, :]    # (B, cur, prev)
        best = jnp.max(cand, axis=-1)                  # (B, C)
        bp = jnp.min(jnp.where(cand >= best[:, :, None], iota_p, NUM_CLASS), axis=-1)
        bps.append(jnp.where(m_t > 0.5, bp, iota_c))   # identity backpointer on padding
        vscore = jnp.where(m_t > 0.5, best + lp_t, vscore)
    vscore = vscore + end                              # end transition at last valid pos

    mbest = jnp.max(vscore, axis=-1, keepdims=True)
    tag = jnp.min(jnp.where(vscore >= mbest, iota_c, NUM_CLASS), axis=-1, keepdims=True)

    tags = [None] * SW                                 # register-resident backtrace
    tags[SW - 1] = tag
    for t in range(SW - 1, 0, -1):                     # exact integer backtrace
        bp = bps[t - 1]                                # (B, C) int32
        tag = jnp.sum(jnp.where(iota_c == tag, bp, 0), axis=-1, keepdims=True)
        tags[t - 1] = tag

    pred = jnp.concatenate(tags, axis=1)               # (B, SW) int32
    pred_ref[...] = jnp.where(mask > 0.5, pred, 0)     # single masked store


def bert_bilstm_crf(x_emb, bias2d, gmat, mask_bsw, p):
    return pl.pallas_call(
        _fused_kernel,
        out_shape=jax.ShapeDtypeStruct((B, SW), jnp.int32),
    )(x_emb, bias2d, gmat, mask_bsw,
      p["qkv_w"], p["ao_w"], p["ff1_w"], p["ff2_w"], p["bert_vec"], p["misc"],
      p["cls_w"], p["lstm_w_ih"], p["lstm_w_hh"])


# ----------------- model glue (tiny XLA prep + ONE pallas_call) -----------------
@jax.jit
def forward(params, input_ids, input_len, first):
    Bb, Ss = input_ids.shape
    BS = Bb * Ss

    # embeddings sum (LayerNorm fused into the kernel); embedding dropout -> identity (eval)
    x_emb = (jnp.take(params["word_emb"], input_ids, axis=0)
             + params["pos_emb"][None, :Ss, :]
             + params["type_emb"][0][None, None, :]).reshape(BS, H)

    # flattened additive attention bias: same-batch block-diagonal AND key within input_len
    tok_b = jnp.arange(BS, dtype=jnp.int32) // Ss
    tok_p = jnp.arange(BS, dtype=jnp.int32) % Ss
    key_valid = tok_p < input_len[tok_b]
    same_batch = tok_b[:, None] == tok_b[None, :]
    bias2d = jnp.where(same_batch & key_valid[None, :], 0.0, -1e9).astype(jnp.float32)

    # first-BPE gather (incl. the [:, 1:-1] slice) as a one-hot matrix producing
    # TIME-MAJOR rows: row t*B + b  <-  subword position first[b, t+1] of batch b
    first_w = first[:, 1:-1].astype(jnp.int32)                         # (B, SW)
    cols = jnp.arange(Bb, dtype=jnp.int32)[None, :] * Ss + first_w.T   # (SW, B)
    gmat = (cols.reshape(-1)[:, None]
            == jnp.arange(BS, dtype=jnp.int32)[None, :]).astype(jnp.float32)   # (SW*B, B*S)

    # word-level CRF mask, (B, SW)
    mask_bsw = (jnp.arange(SW, dtype=jnp.int32)[None, :]
                < (input_len - 2)[:, None]).astype(jnp.float32)

    pred = bert_bilstm_crf(x_emb, bias2d, gmat, mask_bsw, params)      # (B, SW) int32
    return {"pred": pred}


# ----------------- deterministic synthetic parameters (fused / packed layout) -----------------
def make_params(key):
    keys = iter(jax.random.split(key, 64))

    def nrm(shape, scale=0.02):
        return jax.random.normal(next(keys), shape, jnp.float32) * scale

    def row128(v):                                      # (NLAYERS, d) -> (NLAYERS, 1, 128)
        return jnp.pad(v, ((0, 0), (0, 128 - v.shape[-1])))[:, None, :]

    # --- BERT per-layer bias / LayerNorm vectors packed into (NLAYERS, 8, 128) ---
    qkv_b = nrm((NLAYERS, 3 * H))
    ao_b = nrm((NLAYERS, H))
    ln1_g = jnp.ones((NLAYERS, H), jnp.float32)
    ln1_b = jnp.zeros((NLAYERS, H), jnp.float32)
    ff1_b = nrm((NLAYERS, FF))
    ff2_b = nrm((NLAYERS, H))
    ln2_g = jnp.ones((NLAYERS, H), jnp.float32)
    ln2_b = jnp.zeros((NLAYERS, H), jnp.float32)
    bert_vec = jnp.concatenate(
        [row128(qkv_b), row128(ao_b), row128(ln1_g), row128(ln1_b),
         row128(ff1_b), row128(ff2_b), row128(ln2_g), row128(ln2_b)], axis=1)

    # --- BiLSTM: fused fwd+bwd input projection; block-diagonal recurrent weights ---
    lstm_w_ih = nrm((NLSTM, H, 8 * HC))                 # cols 0:64 fwd [i,f,g,o], 64:128 bwd
    lstm_b_ih = nrm((NLSTM, 8 * HC))
    whh_f = nrm((NLSTM, HC, 4 * HC))
    whh_b = nrm((NLSTM, HC, 4 * HC))
    zpad = jnp.zeros((NLSTM, HC, 4 * HC), jnp.float32)
    lstm_w_hh = jnp.concatenate(
        [jnp.concatenate([whh_f, zpad], axis=2),
         jnp.concatenate([zpad, whh_b], axis=2)], axis=1)               # (NLSTM, 2*HC, 8*HC)

    # --- misc pack (16, 128): emb LN, cls bias, CRF start/end/trans.T, LSTM input biases ---
    cls_b = nrm((NUM_CLASS,))
    crf_trans = nrm((NUM_CLASS, NUM_CLASS), 0.1)
    crf_start = nrm((NUM_CLASS,), 0.1)
    crf_end = nrm((NUM_CLASS,), 0.1)
    misc = jnp.zeros((16, 128), jnp.float32)
    misc = misc.at[_MISC_EMB_G, 0:H].set(jnp.ones((H,), jnp.float32))
    misc = misc.at[_MISC_EMB_B, 0:H].set(jnp.zeros((H,), jnp.float32))
    misc = misc.at[_MISC_CLS_B, 0:NUM_CLASS].set(cls_b)
    misc = misc.at[_MISC_CRF_START, 0:NUM_CLASS].set(crf_start)
    misc = misc.at[_MISC_CRF_END, 0:NUM_CLASS].set(crf_end)
    misc = misc.at[_MISC_CRF_TRT:_MISC_CRF_TRT + NUM_CLASS, 0:NUM_CLASS].set(crf_trans.T)
    misc = misc.at[_MISC_LSTM_BIH:_MISC_LSTM_BIH + NLSTM, :].set(lstm_b_ih)

    return dict(
        word_emb=nrm((V, H)),
        pos_emb=nrm((S, H)),
        type_emb=nrm((2, H)),
        qkv_w=nrm((NLAYERS, H, 3 * H)),
        ao_w=nrm((NLAYERS, H, H)),
        ff1_w=nrm((NLAYERS, H, FF)),
        ff2_w=nrm((NLAYERS, FF, H)),
        bert_vec=bert_vec,
        misc=misc,
        cls_w=nrm((H, NUM_CLASS)),
        lstm_w_ih=lstm_w_ih,
        lstm_w_hh=lstm_w_hh,
    )


if __name__ == "__main__":
    key = jax.random.PRNGKey(0)
    pkey, dkey = jax.random.split(key)
    params = make_params(pkey)

    input_ids = jax.random.randint(dkey, (B, S), 0, V, dtype=jnp.int32)
    input_len = jnp.array([S, S - 2], dtype=jnp.int32)
    # first-BPE indices (monotone, clamped to valid range); includes CLS/SEP slots as the module expects
    first = jnp.broadcast_to(jnp.arange(S, dtype=jnp.int32)[None, :], (B, S))
    first = jnp.minimum(first, input_len[:, None] - 1)

    out = forward(params, input_ids, input_len, first)
    pred = jax.block_until_ready(out["pred"])
    assert pred.shape == (B, SW) and pred.dtype == jnp.int32
    print("KERNEL_OK")
</pallas_src>

<mosaic_0001>
module attributes {stable_mosaic.version = 11 : i64} {
  func.func @_fused_kernel(%arg0: memref<20x32xf32, #tpu.memory_space<vmem>>, %arg1: memref<20x20xf32, #tpu.memory_space<vmem>>, %arg2: memref<16x20xf32, #tpu.memory_space<vmem>>, %arg3: memref<2x8xf32, #tpu.memory_space<vmem>>, %arg4: memref<2x32x96xf32, #tpu.memory_space<vmem>>, %arg5: memref<2x32x32xf32, #tpu.memory_space<vmem>>, %arg6: memref<2x32x64xf32, #tpu.memory_space<vmem>>, %arg7: memref<2x64x32xf32, #tpu.memory_space<vmem>>, %arg8: memref<2x8x128xf32, #tpu.memory_space<vmem>>, %arg9: memref<16x128xf32, #tpu.memory_space<vmem>>, %arg10: memref<32x5xf32, #tpu.memory_space<vmem>>, %arg11: memref<2x32x128xf32, #tpu.memory_space<vmem>>, %arg12: memref<2x32x128xf32, #tpu.memory_space<vmem>>, %arg13: memref<2x8xi32, #tpu.memory_space<vmem>>) attributes {dimension_semantics = [], scalar_prefetch = 0 : i64, scratch_operands = 0 : i64, tpu.core_type = #tpu.core_type<tc>} {
    %c0 = arith.constant 0 : index
    %c0_0 = arith.constant 0 : index
    %0 = vector.load %arg9[%c0, %c0_0] : memref<16x128xf32, #tpu.memory_space<vmem>>, vector<16x128xf32>
    %c0_1 = arith.constant 0 : index
    %c0_2 = arith.constant 0 : index
    %1 = vector.load %arg0[%c0_1, %c0_2] : memref<20x32xf32, #tpu.memory_space<vmem>>, vector<20x32xf32>
    %2 = vector.extract_strided_slice %0 {offsets = [0, 0], sizes = [1, 32], strides = [1, 1]} : vector<16x128xf32> to vector<1x32xf32>
    %3 = vector.extract_strided_slice %0 {offsets = [1, 0], sizes = [1, 32], strides = [1, 1]} : vector<16x128xf32> to vector<1x32xf32>
    %cst = arith.constant dense<0.000000e+00> : vector<20xf32>
    %4 = vector.multi_reduction <add>, %1, %cst [1] : vector<20x32xf32> to vector<20xf32>
    %5 = vector.shape_cast %4 : vector<20xf32> to vector<20x1xf32>
    %cst_3 = arith.constant 3.200000e+01 : f32
    %6 = vector.broadcast %cst_3 : f32 to vector<20x1xf32>
    %7 = arith.divf %5, %6 : vector<20x1xf32>
    %8 = vector.broadcast %7 : vector<20x1xf32> to vector<20x32xf32>
    %9 = arith.subf %1, %8 : vector<20x32xf32>
    %10 = arith.mulf %9, %9 : vector<20x32xf32>
    %cst_4 = arith.constant dense<0.000000e+00> : vector<20xf32>
    %11 = vector.multi_reduction <add>, %10, %cst_4 [1] : vector<20x32xf32> to vector<20xf32>
    %12 = vector.shape_cast %11 : vector<20xf32> to vector<20x1xf32>
    %cst_5 = arith.constant 3.200000e+01 : f32
    %13 = vector.broadcast %cst_5 : f32 to vector<20x1xf32>
    %14 = arith.divf %12, %13 : vector<20x1xf32>
    %15 = vector.broadcast %7 : vector<20x1xf32> to vector<20x32xf32>
    %16 = arith.subf %1, %15 : vector<20x32xf32>
    %cst_6 = arith.constant 9.99999996E-13 : f32
    %17 = vector.broadcast %cst_6 : f32 to vector<20x1xf32>
    %18 = arith.addf %14, %17 : vector<20x1xf32>
    %19 = math.rsqrt %18 : vector<20x1xf32>
    %20 = vector.broadcast %19 : vector<20x1xf32> to vector<20x32xf32>
    %21 = arith.mulf %16, %20 : vector<20x32xf32>
    %22 = vector.broadcast %2 : vector<1x32xf32> to vector<20x32xf32>
    %23 = arith.mulf %21, %22 : vector<20x32xf32>
    %24 = vector.broadcast %3 : vector<1x32xf32> to vector<20x32xf32>
    %25 = arith.addf %23, %24 : vector<20x32xf32>
    %c0_7 = arith.constant 0 : index
    %c0_8 = arith.constant 0 : index
    %26 = vector.load %arg1[%c0_7, %c0_8] : memref<20x20xf32, #tpu.memory_space<vmem>>, vector<20x20xf32>
    %c0_9 = arith.constant 0 : index
    %c0_10 = arith.constant 0 : index
    %c0_11 = arith.constant 0 : index
    %27 = vector.load %arg8[%c0_9, %c0_10, %c0_11] : memref<2x8x128xf32, #tpu.memory_space<vmem>>, vector<1x8x128xf32>
    %28 = vector.shape_cast %27 : vector<1x8x128xf32> to vector<8x128xf32>
    %c0_12 = arith.constant 0 : index
    %c0_13 = arith.constant 0 : index
    %c0_14 = arith.constant 0 : index
    %29 = vector.load %arg4[%c0_12, %c0_13, %c0_14] : memref<2x32x96xf32, #tpu.memory_space<vmem>>, vector<1x32x96xf32>
    %30 = vector.shape_cast %29 : vector<1x32x96xf32> to vector<32x96xf32>
    %cst_15 = arith.constant dense<0.000000e+00> : vector<20x96xf32>
    %31 = tpu.matmul %25, %30, %cst_15 {dimension_numbers = #tpu.dot_dimension_numbers<[1], [0], [0], [1], [0, 0, 1, 1], [], []>} : vector<20x32xf32>, vector<32x96xf32>, vector<20x96xf32> -> vector<20x96xf32>
    %32 = vector.extract_strided_slice %28 {offsets = [0, 0], sizes = [1, 96], strides = [1, 1]} : vector<8x128xf32> to vector<1x96xf32>
    %33 = vector.broadcast %32 : vector<1x96xf32> to vector<20x96xf32>
    %34 = arith.addf %31, %33 : vector<20x96xf32>
    %35 = vector.extract_strided_slice %34 {offsets = [0, 0], sizes = [20, 8], strides = [1, 1]} : vector<20x96xf32> to vector<20x8xf32>
    %36 = vector.extract_strided_slice %34 {offsets = [0, 32], sizes = [20, 8], strides = [1, 1]} : vector<20x96xf32> to vector<20x8xf32>
    %37 = vector.extract_strided_slice %34 {offsets = [0, 64], sizes = [20, 8], strides = [1, 1]} : vector<20x96xf32> to vector<20x8xf32>
    %cst_16 = arith.constant dense<0.000000e+00> : vector<20x20xf32>
    %38 = tpu.matmul %35, %36, %cst_16 {dimension_numbers = #tpu.dot_dimension_numbers<[1], [1], [0], [0], [0, 0, 1, 0], [], []>} : vector<20x8xf32>, vector<20x8xf32>, vector<20x20xf32> -> vector<20x20xf32>
    %cst_17 = arith.constant 0.353553385 : f32
    %39 = vector.broadcast %cst_17 : f32 to vector<20x20xf32>
    %40 = arith.mulf %38, %39 : vector<20x20xf32>
    %41 = arith.addf %40, %26 : vector<20x20xf32>
    %cst_18 = arith.constant dense<0xFF800000> : vector<20xf32>
    %42 = vector.multi_reduction <maximumf>, %41, %cst_18 [1] : vector<20x20xf32> to vector<20xf32>
    %43 = vector.shape_cast %42 : vector<20xf32> to vector<20x1xf32>
    %44 = vector.broadcast %43 : vector<20x1xf32> to vector<20x20xf32>
    %45 = arith.subf %41, %44 : vector<20x20xf32>
    %46 = math.exp %45 : vector<20x20xf32>
    %cst_19 = arith.constant dense<0.000000e+00> : vector<20xf32>
    %47 = vector.multi_reduction <add>, %46, %cst_19 [1] : vector<20x20xf32> to vector<20xf32>
    %48 = vector.shape_cast %47 : vector<20xf32> to vector<20x1xf32>
    %49 = vector.broadcast %48 : vector<20x1xf32> to vector<20x20xf32>
    %50 = arith.divf %46, %49 : vector<20x20xf32>
    %cst_20 = arith.constant dense<0.000000e+00> : vector<20x8xf32>
    %51 = tpu.matmul %50, %37, %cst_20 {dimension_numbers = #tpu.dot_dimension_numbers<[1], [0], [0], [1], [0, 0, 1, 1], [], []>} : vector<20x20xf32>, vector<20x8xf32>, vector<20x8xf32> -> vector<20x8xf32>
    %52 = vector.extract_strided_slice %34 {offsets = [0, 8], sizes = [20, 8], strides = [1, 1]} : vector<20x96xf32> to vector<20x8xf32>
    %53 = vector.extract_strided_slice %34 {offsets = [0, 40], sizes = [20, 8], strides = [1, 1]} : vector<20x96xf32> to vector<20x8xf32>
    %54 = vector.extract_strided_slice %34 {offsets = [0, 72], sizes = [20, 8], strides = [1, 1]} : vector<20x96xf32> to vector<20x8xf32>
    %cst_21 = arith.constant dense<0.000000e+00> : vector<20x20xf32>
    %55 = tpu.matmul %52, %53, %cst_21 {dimension_numbers = #tpu.dot_dimension_numbers<[1], [1], [0], [0], [0, 0, 1, 0], [], []>} : vector<20x8xf32>, vector<20x8xf32>, vector<20x20xf32> -> vector<20x20xf32>
    %cst_22 = arith.constant 0.353553385 : f32
    %56 = vector.broadcast %cst_22 : f32 to vector<20x20xf32>
    %57 = arith.mulf %55, %56 : vector<20x20xf32>
    %58 = arith.addf %57, %26 : vector<20x20xf32>
    %cst_23 = arith.constant dense<0xFF800000> : vector<20xf32>
    %59 = vector.multi_reduction <maximumf>, %58, %cst_23 [1] : vector<20x20xf32> to vector<20xf32>
    %60 = vector.shape_cast %59 : vector<20xf32> to vector<20x1xf32>
    %61 = vector.broadcast %60 : vector<20x1xf32> to vector<20x20xf32>
    %62 = arith.subf %58, %61 : vector<20x20xf32>
    %63 = math.exp %62 : vector<20x20xf32>
    %cst_24 = arith.constant dense<0.000000e+00> : vector<20xf32>
    %64 = vector.multi_reduction <add>, %63, %cst_24 [1] : vector<20x20xf32> to vector<20xf32>
    %65 = vector.shape_cast %64 : vector<20xf32> to vector<20x1xf32>
    %66 = vector.broadcast %65 : vector<20x1xf32> to vector<20x20xf32>
    %67 = arith.divf %63, %66 : vector<20x20xf32>
    %cst_25 = arith.constant dense<0.000000e+00> : vector<20x8xf32>
    %68 = tpu.matmul %67, %54, %cst_25 {dimension_numbers = #tpu.dot_dimension_numbers<[1], [0], [0], [1], [0, 0, 1, 1], [], []>} : vector<20x20xf32>, vector<20x8xf32>, vector<20x8xf32> -> vector<20x8xf32>
    %69 = vector.extract_strided_slice %34 {offsets = [0, 16], sizes = [20, 8], strides = [1, 1]} : vector<20x96xf32> to vector<20x8xf32>
    %70 = vector.extract_strided_slice %34 {offsets = [0, 48], sizes = [20, 8], strides = [1, 1]} : vector<20x96xf32> to vector<20x8xf32>
    %71 = vector.extract_strided_slice %34 {offsets = [0, 80], sizes = [20, 8], strides = [1, 1]} : vector<20x96xf32> to vector<20x8xf32>
    %cst_26 = arith.constant dense<0.000000e+00> : vector<20x20xf32>
    %72 = tpu.matmul %69, %70, %cst_26 {dimension_numbers = #tpu.dot_dimension_numbers<[1], [1], [0], [0], [0, 0, 1, 0], [], []>} : vector<20x8xf32>, vector<20x8xf32>, vector<20x20xf32> -> vector<20x20xf32>
    %cst_27 = arith.constant 0.353553385 : f32
    %73 = vector.broadcast %cst_27 : f32 to vector<20x20xf32>
    %74 = arith.mulf %72, %73 : vector<20x20xf32>
    %75 = arith.addf %74, %26 : vector<20x20xf32>
    %cst_28 = arith.constant dense<0xFF800000> : vector<20xf32>
    %76 = vector.multi_reduction <maximumf>, %75, %cst_28 [1] : vector<20x20xf32> to vector<20xf32>
    %77 = vector.shape_cast %76 : vector<20xf32> to vector<20x1xf32>
    %78 = vector.broadcast %77 : vector<20x1xf32> to vector<20x20xf32>
    %79 = arith.subf %75, %78 : vector<20x20xf32>
    %80 = math.exp %79 : vector<20x20xf32>
    %cst_29 = arith.constant dense<0.000000e+00> : vector<20xf32>
    %81 = vector.multi_reduction <add>, %80, %cst_29 [1] : vector<20x20xf32> to vector<20xf32>
    %82 = vector.shape_cast %81 : vector<20xf32> to vector<20x1xf32>
    %83 = vector.broadcast %82 : vector<20x1xf32> to vector<20x20xf32>
    %84 = arith.divf %80, %83 : vector<20x20xf32>
    %cst_30 = arith.constant dense<0.000000e+00> : vector<20x8xf32>
    %85 = tpu.matmul %84, %71, %cst_30 {dimension_numbers = #tpu.dot_dimension_numbers<[1], [0], [0], [1], [0, 0, 1, 1], [], []>} : vector<20x20xf32>, vector<20x8xf32>, vector<20x8xf32> -> vector<20x8xf32>
    %86 = vector.extract_strided_slice %34 {offsets = [0, 24], sizes = [20, 8], strides = [1, 1]} : vector<20x96xf32> to vector<20x8xf32>
    %87 = vector.extract_strided_slice %34 {offsets = [0, 56], sizes = [20, 8], strides = [1, 1]} : vector<20x96xf32> to vector<20x8xf32>
    %88 = vector.extract_strided_slice %34 {offsets = [0, 88], sizes = [20, 8], strides = [1, 1]} : vector<20x96xf32> to vector<20x8xf32>
    %cst_31 = arith.constant dense<0.000000e+00> : vector<20x20xf32>
    %89 = tpu.matmul %86, %87, %cst_31 {dimension_numbers = #tpu.dot_dimension_numbers<[1], [1], [0], [0], [0, 0, 1, 0], [], []>} : vector<20x8xf32>, vector<20x8xf32>, vector<20x20xf32> -> vector<20x20xf32>
    %cst_32 = arith.constant 0.353553385 : f32
    %90 = vector.broadcast %cst_32 : f32 to vector<20x20xf32>
    %91 = arith.mulf %89, %90 : vector<20x20xf32>
    %92 = arith.addf %91, %26 : vector<20x20xf32>
    %cst_33 = arith.constant dense<0xFF800000> : vector<20xf32>
    %93 = vector.multi_reduction <maximumf>, %92, %cst_33 [1] : vector<20x20xf32> to vector<20xf32>
    %94 = vector.shape_cast %93 : vector<20xf32> to vector<20x1xf32>
    %95 = vector.broadcast %94 : vector<20x1xf32> to vector<20x20xf32>
    %96 = arith.subf %92, %95 : vector<20x20xf32>
    %97 = math.exp %96 : vector<20x20xf32>
    %cst_34 = arith.constant dense<0.000000e+00> : vector<20xf32>
    %98 = vector.multi_reduction <add>, %97, %cst_34 [1] : vector<20x20xf32> to vector<20xf32>
    %99 = vector.shape_cast %98 : vector<20xf32> to vector<20x1xf32>
    %100 = vector.broadcast %99 : vector<20x1xf32> to vector<20x20xf32>
    %101 = arith.divf %97, %100 : vector<20x20xf32>
    %cst_35 = arith.constant dense<0.000000e+00> : vector<20x8xf32>
    %102 = tpu.matmul %101, %88, %cst_35 {dimension_numbers = #tpu.dot_dimension_numbers<[1], [0], [0], [1], [0, 0, 1, 1], [], []>} : vector<20x20xf32>, vector<20x8xf32>, vector<20x8xf32> -> vector<20x8xf32>
    %103 = tpu.concatenate %51, %68, %85, %102 in 1 : vector<20x8xf32>, vector<20x8xf32>, vector<20x8xf32>, vector<20x8xf32> -> vector<20x32xf32>
    %c0_36 = arith.constant 0 : index
    %c0_37 = arith.constant 0 : index
    %c0_38 = arith.constant 0 : index
    %104 = vector.load %arg5[%c0_36, %c0_37, %c0_38] : memref<2x32x32xf32, #tpu.memory_space<vmem>>, vector<1x32x32xf32>
    %105 = vector.shape_cast %104 : vector<1x32x32xf32> to vector<32x32xf32>
    %cst_39 = arith.constant dense<0.000000e+00> : vector<20x32xf32>
    %106 = tpu.matmul %103, %105, %cst_39 {dimension_numbers = #tpu.dot_dimension_numbers<[1], [0], [0], [1], [0, 0, 1, 1], [], []>} : vector<20x32xf32>, vector<32x32xf32>, vector<20x32xf32> -> vector<20x32xf32>
    %107 = vector.extract_strided_slice %28 {offsets = [1, 0], sizes = [1, 32], strides = [1, 1]} : vector<8x128xf32> to vector<1x32xf32>
    %108 = vector.broadcast %107 : vector<1x32xf32> to vector<20x32xf32>
    %109 = arith.addf %106, %108 : vector<20x32xf32>
    %110 = arith.addf %109, %25 : vector<20x32xf32>
    %111 = vector.extract_strided_slice %28 {offsets = [2, 0], sizes = [1, 32], strides = [1, 1]} : vector<8x128xf32> to vector<1x32xf32>
    %112 = vector.extract_strided_slice %28 {offsets = [3, 0], sizes = [1, 32], strides = [1, 1]} : vector<8x128xf32> to vector<1x32xf32>
    %cst_40 = arith.constant dense<0.000000e+00> : vector<20xf32>
    %113 = vector.multi_reduction <add>, %110, %cst_40 [1] : vector<20x32xf32> to vector<20xf32>
    %114 = vector.shape_cast %113 : vector<20xf32> to vector<20x1xf32>
    %cst_41 = arith.constant 3.200000e+01 : f32
    %115 = vector.broadcast %cst_41 : f32 to vector<20x1xf32>
    %116 = arith.divf %114, %115 : vector<20x1xf32>
    %117 = vector.broadcast %116 : vector<20x1xf32> to vector<20x32xf32>
    %118 = arith.subf %110, %117 : vector<20x32xf32>
    %119 = arith.mulf %118, %118 : vector<20x32xf32>
    %cst_42 = arith.constant dense<0.000000e+00> : vector<20xf32>
    %120 = vector.multi_reduction <add>, %119, %cst_42 [1] : vector<20x32xf32> to vector<20xf32>
    %121 = vector.shape_cast %120 : vector<20xf32> to vector<20x1xf32>
    %cst_43 = arith.constant 3.200000e+01 : f32
    %122 = vector.broadcast %cst_43 : f32 to vector<20x1xf32>
    %123 = arith.divf %121, %122 : vector<20x1xf32>
    %124 = vector.broadcast %116 : vector<20x1xf32> to vector<20x32xf32>
    %125 = arith.subf %110, %124 : vector<20x32xf32>
    %cst_44 = arith.constant 9.99999996E-13 : f32
    %126 = vector.broadcast %cst_44 : f32 to vector<20x1xf32>
    %127 = arith.addf %123, %126 : vector<20x1xf32>
    %128 = math.rsqrt %127 : vector<20x1xf32>
    %129 = vector.broadcast %128 : vector<20x1xf32> to vector<20x32xf32>
    %130 = arith.mulf %125, %129 : vector<20x32xf32>
    %131 = vector.broadcast %111 : vector<1x32xf32> to vector<20x32xf32>
    %132 = arith.mulf %130, %131 : vector<20x32xf32>
    %133 = vector.broadcast %112 : vector<1x32xf32> to vector<20x32xf32>
    %134 = arith.addf %132, %133 : vector<20x32xf32>
    %c0_45 = arith.constant 0 : index
    %c0_46 = arith.constant 0 : index
    %c0_47 = arith.constant 0 : index
    %135 = vector.load %arg6[%c0_45, %c0_46, %c0_47] : memref<2x32x64xf32, #tpu.memory_space<vmem>>, vector<1x32x64xf32>
    %136 = vector.shape_cast %135 : vector<1x32x64xf32> to vector<32x64xf32>
    %cst_48 = arith.constant dense<0.000000e+00> : vector<20x64xf32>
    %137 = tpu.matmul %134, %136, %cst_48 {dimension_numbers = #tpu.dot_dimension_numbers<[1], [0], [0], [1], [0, 0, 1, 1], [], []>} : vector<20x32xf32>, vector<32x64xf32>, vector<20x64xf32> -> vector<20x64xf32>
    %138 = vector.extract_strided_slice %28 {offsets = [4, 0], sizes = [1, 64], strides = [1, 1]} : vector<8x128xf32> to vector<1x64xf32>
    %139 = vector.broadcast %138 : vector<1x64xf32> to vector<20x64xf32>
    %140 = arith.addf %137, %139 : vector<20x64xf32>
    %cst_49 = arith.constant 5.000000e-01 : f32
    %141 = vector.broadcast %cst_49 : f32 to vector<20x64xf32>
    %142 = arith.mulf %141, %140 : vector<20x64xf32>
    %cst_50 = arith.constant 4.471500e-02 : f32
    %143 = vector.broadcast %cst_50 : f32 to vector<20x64xf32>
    %144 = arith.mulf %143, %140 : vector<20x64xf32>
    %145 = arith.mulf %144, %140 : vector<20x64xf32>
    %146 = arith.mulf %145, %140 : vector<20x64xf32>
    %147 = arith.addf %140, %146 : vector<20x64xf32>
    %cst_51 = arith.constant 0.797884583 : f32
    %148 = vector.broadcast %cst_51 : f32 to vector<20x64xf32>
    %149 = arith.mulf %148, %147 : vector<20x64xf32>
    %150 = math.tanh %149 : vector<20x64xf32>
    %cst_52 = arith.constant 1.000000e+00 : f32
    %151 = vector.broadcast %cst_52 : f32 to vector<20x64xf32>
    %152 = arith.addf %151, %150 : vector<20x64xf32>
    %153 = arith.mulf %142, %152 : vector<20x64xf32>
    %c0_53 = arith.constant 0 : index
    %c0_54 = arith.constant 0 : index
    %c0_55 = arith.constant 0 : index
    %154 = vector.load %arg7[%c0_53, %c0_54, %c0_55] : memref<2x64x32xf32, #tpu.memory_space<vmem>>, vector<1x64x32xf32>
    %155 = vector.shape_cast %154 : vector<1x64x32xf32> to vector<64x32xf32>
    %cst_56 = arith.constant dense<0.000000e+00> : vector<20x32xf32>
    %156 = tpu.matmul %153, %155, %cst_56 {dimension_numbers = #tpu.dot_dimension_numbers<[1], [0], [0], [1], [0, 0, 1, 1], [], []>} : vector<20x64xf32>, vector<64x32xf32>, vector<20x32xf32> -> vector<20x32xf32>
    %157 = vector.extract_strided_slice %28 {offsets = [5, 0], sizes = [1, 32], strides = [1, 1]} : vector<8x128xf32> to vector<1x32xf32>
    %158 = vector.broadcast %157 : vector<1x32xf32> to vector<20x32xf32>
    %159 = arith.addf %156, %158 : vector<20x32xf32>
    %160 = arith.addf %159, %134 : vector<20x32xf32>
    %161 = vector.extract_strided_slice %28 {offsets = [6, 0], sizes = [1, 32], strides = [1, 1]} : vector<8x128xf32> to vector<1x32xf32>
    %162 = vector.extract_strided_slice %28 {offsets = [7, 0], sizes = [1, 32], strides = [1, 1]} : vector<8x128xf32> to vector<1x32xf32>
    %cst_57 = arith.constant dense<0.000000e+00> : vector<20xf32>
    %163 = vector.multi_reduction <add>, %160, %cst_57 [1] : vector<20x32xf32> to vector<20xf32>
    %164 = vector.shape_cast %163 : vector<20xf32> to vector<20x1xf32>
    %cst_58 = arith.constant 3.200000e+01 : f32
    %165 = vector.broadcast %cst_58 : f32 to vector<20x1xf32>
    %166 = arith.divf %164, %165 : vector<20x1xf32>
    %167 = vector.broadcast %166 : vector<20x1xf32> to vector<20x32xf32>
    %168 = arith.subf %160, %167 : vector<20x32xf32>
    %169 = arith.mulf %168, %168 : vector<20x32xf32>
    %cst_59 = arith.constant dense<0.000000e+00> : vector<20xf32>
    %170 = vector.multi_reduction <add>, %169, %cst_59 [1] : vector<20x32xf32> to vector<20xf32>
    %171 = vector.shape_cast %170 : vector<20xf32> to vector<20x1xf32>
    %cst_60 = arith.constant 3.200000e+01 : f32
    %172 = vector.broadcast %cst_60 : f32 to vector<20x1xf32>
    %173 = arith.divf %171, %172 : vector<20x1xf32>
    %174 = vector.broadcast %166 : vector<20x1xf32> to vector<20x32xf32>
    %175 = arith.subf %160, %174 : vector<20x32xf32>
    %cst_61 = arith.constant 9.99999996E-13 : f32
    %176 = vector.broadcast %cst_61 : f32 to vector<20x1xf32>
    %177 = arith.addf %173, %176 : vector<20x1xf32>
    %178 = math.rsqrt %177 : vector<20x1xf32>
    %179 = vector.broadcast %178 : vector<20x1xf32> to vector<20x32xf32>
    %180 = arith.mulf %175, %179 : vector<20x32xf32>
    %181 = vector.broadcast %161 : vector<1x32xf32> to vector<20x32xf32>
    %182 = arith.mulf %180, %181 : vector<20x32xf32>
    %183 = vector.broadcast %162 : vector<1x32xf32> to vector<20x32xf32>
    %184 = arith.addf %182, %183 : vector<20x32xf32>
    %c1 = arith.constant 1 : index
    %c0_62 = arith.constant 0 : index
    %c0_63 = arith.constant 0 : index
    %185 = vector.load %arg8[%c1, %c0_62, %c0_63] : memref<2x8x128xf32, #tpu.memory_space<vmem>>, vector<1x8x128xf32>
    %186 = vector.shape_cast %185 : vector<1x8x128xf32> to vector<8x128xf32>
    %c1_64 = arith.constant 1 : index
    %c0_65 = arith.constant 0 : index
    %c0_66 = arith.constant 0 : index
    %187 = vector.load %arg4[%c1_64, %c0_65, %c0_66] : memref<2x32x96xf32, #tpu.memory_space<vmem>>, vector<1x32x96xf32>
    %188 = vector.shape_cast %187 : vector<1x32x96xf32> to vector<32x96xf32>
    %cst_67 = arith.constant dense<0.000000e+00> : vector<20x96xf32>
    %189 = tpu.matmul %184, %188, %cst_67 {dimension_numbers = #tpu.dot_dimension_numbers<[1], [0], [0], [1], [0, 0, 1, 1], [], []>} : vector<20x32xf32>, vector<32x96xf32>, vector<20x96xf32> -> vector<20x96xf32>
    %190 = vector.extract_strided_slice %186 {offsets = [0, 0], sizes = [1, 96], strides = [1, 1]} : vector<8x128xf32> to vector<1x96xf32>
    %191 = vector.broadcast %190 : vector<1x96xf32> to vector<20x96xf32>
    %192 = arith.addf %189, %191 : vector<20x96xf32>
    %193 = vector.extract_strided_slice %192 {offsets = [0, 0], sizes = [20, 8], strides = [1, 1]} : vector<20x96xf32> to vector<20x8xf32>
    %194 = vector.extract_strided_slice %192 {offsets = [0, 32], sizes = [20, 8], strides = [1, 1]} : vector<20x96xf32> to vector<20x8xf32>
    %195 = vector.extract_strided_slice %192 {offsets = [0, 64], sizes = [20, 8], strides = [1, 1]} : vector<20x96xf32> to vector<20x8xf32>
    %cst_68 = arith.constant dense<0.000000e+00> : vector<20x20xf32>
    %196 = tpu.matmul %193, %194, %cst_68 {dimension_numbers = #tpu.dot_dimension_numbers<[1], [1], [0], [0], [0, 0, 1, 0], [], []>} : vector<20x8xf32>, vector<20x8xf32>, vector<20x20xf32> -> vector<20x20xf32>
    %cst_69 = arith.constant 0.353553385 : f32
    %197 = vector.broadcast %cst_69 : f32 to vector<20x20xf32>
    %198 = arith.mulf %196, %197 : vector<20x20xf32>
    %199 = arith.addf %198, %26 : vector<20x20xf32>
    %cst_70 = arith.constant dense<0xFF800000> : vector<20xf32>
    %200 = vector.multi_reduction <maximumf>, %199, %cst_70 [1] : vector<20x20xf32> to vector<20xf32>
    %201 = vector.shape_cast %200 : vector<20xf32> to vector<20x1xf32>
    %202 = vector.broadcast %201 : vector<20x1xf32> to vector<20x20xf32>
    %203 = arith.subf %199, %202 : vector<20x20xf32>
    %204 = math.exp %203 : vector<20x20xf32>
    %cst_71 = arith.constant dense<0.000000e+00> : vector<20xf32>
    %205 = vector.multi_reduction <add>, %204, %cst_71 [1] : vector<20x20xf32> to vector<20xf32>
    %206 = vector.shape_cast %205 : vector<20xf32> to vector<20x1xf32>
    %207 = vector.broadcast %206 : vector<20x1xf32> to vector<20x20xf32>
    %208 = arith.divf %204, %207 : vector<20x20xf32>
    %cst_72 = arith.constant dense<0.000000e+00> : vector<20x8xf32>
    %209 = tpu.matmul %208, %195, %cst_72 {dimension_numbers = #tpu.dot_dimension_numbers<[1], [0], [0], [1], [0, 0, 1, 1], [], []>} : vector<20x20xf32>, vector<20x8xf32>, vector<20x8xf32> -> vector<20x8xf32>
    %210 = vector.extract_strided_slice %192 {offsets = [0, 8], sizes = [20, 8], strides = [1, 1]} : vector<20x96xf32> to vector<20x8xf32>
    %211 = vector.extract_strided_slice %192 {offsets = [0, 40], sizes = [20, 8], strides = [1, 1]} : vector<20x96xf32> to vector<20x8xf32>
    %212 = vector.extract_strided_slice %192 {offsets = [0, 72], sizes = [20, 8], strides = [1, 1]} : vector<20x96xf32> to vector<20x8xf32>
    %cst_73 = arith.constant dense<0.000000e+00> : vector<20x20xf32>
    %213 = tpu.matmul %210, %211, %cst_73 {dimension_numbers = #tpu.dot_dimension_numbers<[1], [1], [0], [0], [0, 0, 1, 0], [], []>} : vector<20x8xf32>, vector<20x8xf32>, vector<20x20xf32> -> vector<20x20xf32>
    %cst_74 = arith.constant 0.353553385 : f32
    %214 = vector.broadcast %cst_74 : f32 to vector<20x20xf32>
    %215 = arith.mulf %213, %214 : vector<20x20xf32>
    %216 = arith.addf %215, %26 : vector<20x20xf32>
    %cst_75 = arith.constant dense<0xFF800000> : vector<20xf32>
    %217 = vector.multi_reduction <maximumf>, %216, %cst_75 [1] : vector<20x20xf32> to vector<20xf32>
    %218 = vector.shape_cast %217 : vector<20xf32> to vector<20x1xf32>
    %219 = vector.broadcast %218 : vector<20x1xf32> to vector<20x20xf32>
    %220 = arith.subf %216, %219 : vector<20x20xf32>
    %221 = math.exp %220 : vector<20x20xf32>
    %cst_76 = arith.constant dense<0.000000e+00> : vector<20xf32>
    %222 = vector.multi_reduction <add>, %221, %cst_76 [1] : vector<20x20xf32> to vector<20xf32>
    %223 = vector.shape_cast %222 : vector<20xf32> to vector<20x1xf32>
    %224 = vector.broadcast %223 : vector<20x1xf32> to vector<20x20xf32>
    %225 = arith.divf %221, %224 : vector<20x20xf32>
    %cst_77 = arith.constant dense<0.000000e+00> : vector<20x8xf32>
    %226 = tpu.matmul %225, %212, %cst_77 {dimension_numbers = #tpu.dot_dimension_numbers<[1], [0], [0], [1], [0, 0, 1, 1], [], []>} : vector<20x20xf32>, vector<20x8xf32>, vector<20x8xf32> -> vector<20x8xf32>
    %227 = vector.extract_strided_slice %192 {offsets = [0, 16], sizes = [20, 8], strides = [1, 1]} : vector<20x96xf32> to vector<20x8xf32>
    %228 = vector.extract_strided_slice %192 {offsets = [0, 48], sizes = [20, 8], strides = [1, 1]} : vector<20x96xf32> to vector<20x8xf32>
    %229 = vector.extract_strided_slice %192 {offsets = [0, 80], sizes = [20, 8], strides = [1, 1]} : vector<20x96xf32> to vector<20x8xf32>
    %cst_78 = arith.constant dense<0.000000e+00> : vector<20x20xf32>
    %230 = tpu.matmul %227, %228, %cst_78 {dimension_numbers = #tpu.dot_dimension_numbers<[1], [1], [0], [0], [0, 0, 1, 0], [], []>} : vector<20x8xf32>, vector<20x8xf32>, vector<20x20xf32> -> vector<20x20xf32>
    %cst_79 = arith.constant 0.353553385 : f32
    %231 = vector.broadcast %cst_79 : f32 to vector<20x20xf32>
    %232 = arith.mulf %230, %231 : vector<20x20xf32>
    %233 = arith.addf %232, %26 : vector<20x20xf32>
    %cst_80 = arith.constant dense<0xFF800000> : vector<20xf32>
    %234 = vector.multi_reduction <maximumf>, %233, %cst_80 [1] : vector<20x20xf32> to vector<20xf32>
    %235 = vector.shape_cast %234 : vector<20xf32> to vector<20x1xf32>
    %236 = vector.broadcast %235 : vector<20x1xf32> to vector<20x20xf32>
    %237 = arith.subf %233, %236 : vector<20x20xf32>
    %238 = math.exp %237 : vector<20x20xf32>
    %cst_81 = arith.constant dense<0.000000e+00> : vector<20xf32>
    %239 = vector.multi_reduction <add>, %238, %cst_81 [1] : vector<20x20xf32> to vector<20xf32>
    %240 = vector.shape_cast %239 : vector<20xf32> to vector<20x1xf32>
    %241 = vector.broadcast %240 : vector<20x1xf32> to vector<20x20xf32>
    %242 = arith.divf %238, %241 : vector<20x20xf32>
    %cst_82 = arith.constant dense<0.000000e+00> : vector<20x8xf32>
    %243 = tpu.matmul %242, %229, %cst_82 {dimension_numbers = #tpu.dot_dimension_numbers<[1], [0], [0], [1], [0, 0, 1, 1], [], []>} : vector<20x20xf32>, vector<20x8xf32>, vector<20x8xf32> -> vector<20x8xf32>
    %244 = vector.extract_strided_slice %192 {offsets = [0, 24], sizes = [20, 8], strides = [1, 1]} : vector<20x96xf32> to vector<20x8xf32>
    %245 = vector.extract_strided_slice %192 {offsets = [0, 56], sizes = [20, 8], strides = [1, 1]} : vector<20x96xf32> to vector<20x8xf32>
    %246 = vector.extract_strided_slice %192 {offsets = [0, 88], sizes = [20, 8], strides = [1, 1]} : vector<20x96xf32> to vector<20x8xf32>
    %cst_83 = arith.constant dense<0.000000e+00> : vector<20x20xf32>
    %247 = tpu.matmul %244, %245, %cst_83 {dimension_numbers = #tpu.dot_dimension_numbers<[1], [1], [0], [0], [0, 0, 1, 0], [], []>} : vector<20x8xf32>, vector<20x8xf32>, vector<20x20xf32> -> vector<20x20xf32>
    %cst_84 = arith.constant 0.353553385 : f32
    %248 = vector.broadcast %cst_84 : f32 to vector<20x20xf32>
    %249 = arith.mulf %247, %248 : vector<20x20xf32>
    %250 = arith.addf %249, %26 : vector<20x20xf32>
    %cst_85 = arith.constant dense<0xFF800000> : vector<20xf32>
    %251 = vector.multi_reduction <maximumf>, %250, %cst_85 [1] : vector<20x20xf32> to vector<20xf32>
    %252 = vector.shape_cast %251 : vector<20xf32> to vector<20x1xf32>
    %253 = vector.broadcast %252 : vector<20x1xf32> to vector<20x20xf32>
    %254 = arith.subf %250, %253 : vector<20x20xf32>
    %255 = math.exp %254 : vector<20x20xf32>
    %cst_86 = arith.constant dense<0.000000e+00> : vector<20xf32>
    %256 = vector.multi_reduction <add>, %255, %cst_86 [1] : vector<20x20xf32> to vector<20xf32>
    %257 = vector.shape_cast %256 : vector<20xf32> to vector<20x1xf32>
    %258 = vector.broadcast %257 : vector<20x1xf32> to vector<20x20xf32>
    %259 = arith.divf %255, %258 : vector<20x20xf32>
    %cst_87 = arith.constant dense<0.000000e+00> : vector<20x8xf32>
    %260 = tpu.matmul %259, %246, %cst_87 {dimension_numbers = #tpu.dot_dimension_numbers<[1], [0], [0], [1], [0, 0, 1, 1], [], []>} : vector<20x20xf32>, vector<20x8xf32>, vector<20x8xf32> -> vector<20x8xf32>
    %261 = tpu.concatenate %209, %226, %243, %260 in 1 : vector<20x8xf32>, vector<20x8xf32>, vector<20x8xf32>, vector<20x8xf32> -> vector<20x32xf32>
    %c1_88 = arith.constant 1 : index
    %c0_89 = arith.constant 0 : index
    %c0_90 = arith.constant 0 : index
    %262 = vector.load %arg5[%c1_88, %c0_89, %c0_90] : memref<2x32x32xf32, #tpu.memory_space<vmem>>, vector<1x32x32xf32>
    %263 = vector.shape_cast %262 : vector<1x32x32xf32> to vector<32x32xf32>
    %cst_91 = arith.constant dense<0.000000e+00> : vector<20x32xf32>
    %264 = tpu.matmul %261, %263, %cst_91 {dimension_numbers = #tpu.dot_dimension_numbers<[1], [0], [0], [1], [0, 0, 1, 1], [], []>} : vector<20x32xf32>, vector<32x32xf32>, vector<20x32xf32> -> vector<20x32xf32>
    %265 = vector.extract_strided_slice %186 {offsets = [1, 0], sizes = [1, 32], strides = [1, 1]} : vector<8x128xf32> to vector<1x32xf32>
    %266 = vector.broadcast %265 : vector<1x32xf32> to vector<20x32xf32>
    %267 = arith.addf %264, %266 : vector<20x32xf32>
    %268 = arith.addf %267, %184 : vector<20x32xf32>
    %269 = vector.extract_strided_slice %186 {offsets = [2, 0], sizes = [1, 32], strides = [1, 1]} : vector<8x128xf32> to vector<1x32xf32>
    %270 = vector.extract_strided_slice %186 {offsets = [3, 0], sizes = [1, 32], strides = [1, 1]} : vector<8x128xf32> to vector<1x32xf32>
    %cst_92 = arith.constant dense<0.000000e+00> : vector<20xf32>
    %271 = vector.multi_reduction <add>, %268, %cst_92 [1] : vector<20x32xf32> to vector<20xf32>
    %272 = vector.shape_cast %271 : vector<20xf32> to vector<20x1xf32>
    %cst_93 = arith.constant 3.200000e+01 : f32
    %273 = vector.broadcast %cst_93 : f32 to vector<20x1xf32>
    %274 = arith.divf %272, %273 : vector<20x1xf32>
    %275 = vector.broadcast %274 : vector<20x1xf32> to vector<20x32xf32>
    %276 = arith.subf %268, %275 : vector<20x32xf32>
    %277 = arith.mulf %276, %276 : vector<20x32xf32>
    %cst_94 = arith.constant dense<0.000000e+00> : vector<20xf32>
    %278 = vector.multi_reduction <add>, %277, %cst_94 [1] : vector<20x32xf32> to vector<20xf32>
    %279 = vector.shape_cast %278 : vector<20xf32> to vector<20x1xf32>
    %cst_95 = arith.constant 3.200000e+01 : f32
    %280 = vector.broadcast %cst_95 : f32 to vector<20x1xf32>
    %281 = arith.divf %279, %280 : vector<20x1xf32>
    %282 = vector.broadcast %274 : vector<20x1xf32> to vector<20x32xf32>
    %283 = arith.subf %268, %282 : vector<20x32xf32>
    %cst_96 = arith.constant 9.99999996E-13 : f32
    %284 = vector.broadcast %cst_96 : f32 to vector<20x1xf32>
    %285 = arith.addf %281, %284 : vector<20x1xf32>
    %286 = math.rsqrt %285 : vector<20x1xf32>
    %287 = vector.broadcast %286 : vector<20x1xf32> to vector<20x32xf32>
    %288 = arith.mulf %283, %287 : vector<20x32xf32>
    %289 = vector.broadcast %269 : vector<1x32xf32> to vector<20x32xf32>
    %290 = arith.mulf %288, %289 : vector<20x32xf32>
    %291 = vector.broadcast %270 : vector<1x32xf32> to vector<20x32xf32>
    %292 = arith.addf %290, %291 : vector<20x32xf32>
    %c1_97 = arith.constant 1 : index
    %c0_98 = arith.constant 0 : index
    %c0_99 = arith.constant 0 : index
    %293 = vector.load %arg6[%c1_97, %c0_98, %c0_99] : memref<2x32x64xf32, #tpu.memory_space<vmem>>, vector<1x32x64xf32>
    %294 = vector.shape_cast %293 : vector<1x32x64xf32> to vector<32x64xf32>
    %cst_100 = arith.constant dense<0.000000e+00> : vector<20x64xf32>
    %295 = tpu.matmul %292, %294, %cst_100 {dimension_numbers = #tpu.dot_dimension_numbers<[1], [0], [0], [1], [0, 0, 1, 1], [], []>} : vector<20x32xf32>, vector<32x64xf32>, vector<20x64xf32> -> vector<20x64xf32>
    %296 = vector.extract_strided_slice %186 {offsets = [4, 0], sizes = [1, 64], strides = [1, 1]} : vector<8x128xf32> to vector<1x64xf32>
    %297 = vector.broadcast %296 : vector<1x64xf32> to vector<20x64xf32>
    %298 = arith.addf %295, %297 : vector<20x64xf32>
    %cst_101 = arith.constant 5.000000e-01 : f32
    %299 = vector.broadcast %cst_101 : f32 to vector<20x64xf32>
    %300 = arith.mulf %299, %298 : vector<20x64xf32>
    %cst_102 = arith.constant 4.471500e-02 : f32
    %301 = vector.broadcast %cst_102 : f32 to vector<20x64xf32>
    %302 = arith.mulf %301, %298 : vector<20x64xf32>
    %303 = arith.mulf %302, %298 : vector<20x64xf32>
    %304 = arith.mulf %303, %298 : vector<20x64xf32>
    %305 = arith.addf %298, %304 : vector<20x64xf32>
    %cst_103 = arith.constant 0.797884583 : f32
    %306 = vector.broadcast %cst_103 : f32 to vector<20x64xf32>
    %307 = arith.mulf %306, %305 : vector<20x64xf32>
    %308 = math.tanh %307 : vector<20x64xf32>
    %cst_104 = arith.constant 1.000000e+00 : f32
    %309 = vector.broadcast %cst_104 : f32 to vector<20x64xf32>
    %310 = arith.addf %309, %308 : vector<20x64xf32>
    %311 = arith.mulf %300, %310 : vector<20x64xf32>
    %c1_105 = arith.constant 1 : index
    %c0_106 = arith.constant 0 : index
    %c0_107 = arith.constant 0 : index
    %312 = vector.load %arg7[%c1_105, %c0_106, %c0_107] : memref<2x64x32xf32, #tpu.memory_space<vmem>>, vector<1x64x32xf32>
    %313 = vector.shape_cast %312 : vector<1x64x32xf32> to vector<64x32xf32>
    %cst_108 = arith.constant dense<0.000000e+00> : vector<20x32xf32>
    %314 = tpu.matmul %311, %313, %cst_108 {dimension_numbers = #tpu.dot_dimension_numbers<[1], [0], [0], [1], [0, 0, 1, 1], [], []>} : vector<20x64xf32>, vector<64x32xf32>, vector<20x32xf32> -> vector<20x32xf32>
    %315 = vector.extract_strided_slice %186 {offsets = [5, 0], sizes = [1, 32], strides = [1, 1]} : vector<8x128xf32> to vector<1x32xf32>
    %316 = vector.broadcast %315 : vector<1x32xf32> to vector<20x32xf32>
    %317 = arith.addf %314, %316 : vector<20x32xf32>
    %318 = arith.addf %317, %292 : vector<20x32xf32>
    %319 = vector.extract_strided_slice %186 {offsets = [6, 0], sizes = [1, 32], strides = [1, 1]} : vector<8x128xf32> to vector<1x32xf32>
    %320 = vector.extract_strided_slice %186 {offsets = [7, 0], sizes = [1, 32], strides = [1, 1]} : vector<8x128xf32> to vector<1x32xf32>
    %cst_109 = arith.constant dense<0.000000e+00> : vector<20xf32>
    %321 = vector.multi_reduction <add>, %318, %cst_109 [1] : vector<20x32xf32> to vector<20xf32>
    %322 = vector.shape_cast %321 : vector<20xf32> to vector<20x1xf32>
    %cst_110 = arith.constant 3.200000e+01 : f32
    %323 = vector.broadcast %cst_110 : f32 to vector<20x1xf32>
    %324 = arith.divf %322, %323 : vector<20x1xf32>
    %325 = vector.broadcast %324 : vector<20x1xf32> to vector<20x32xf32>
    %326 = arith.subf %318, %325 : vector<20x32xf32>
    %327 = arith.mulf %326, %326 : vector<20x32xf32>
    %cst_111 = arith.constant dense<0.000000e+00> : vector<20xf32>
    %328 = vector.multi_reduction <add>, %327, %cst_111 [1] : vector<20x32xf32> to vector<20xf32>
    %329 = vector.shape_cast %328 : vector<20xf32> to vector<20x1xf32>
    %cst_112 = arith.constant 3.200000e+01 : f32
    %330 = vector.broadcast %cst_112 : f32 to vector<20x1xf32>
    %331 = arith.divf %329, %330 : vector<20x1xf32>
    %332 = vector.broadcast %324 : vector<20x1xf32> to vector<20x32xf32>
    %333 = arith.subf %318, %332 : vector<20x32xf32>
    %cst_113 = arith.constant 9.99999996E-13 : f32
    %334 = vector.broadcast %cst_113 : f32 to vector<20x1xf32>
    %335 = arith.addf %331, %334 : vector<20x1xf32>
    %336 = math.rsqrt %335 : vector<20x1xf32>
    %337 = vector.broadcast %336 : vector<20x1xf32> to vector<20x32xf32>
    %338 = arith.mulf %333, %337 : vector<20x32xf32>
    %339 = vector.broadcast %319 : vector<1x32xf32> to vector<20x32xf32>
    %340 = arith.mulf %338, %339 : vector<20x32xf32>
    %341 = vector.broadcast %320 : vector<1x32xf32> to vector<20x32xf32>
    %342 = arith.addf %340, %341 : vector<20x32xf32>
    %c0_114 = arith.constant 0 : index
    %c0_115 = arith.constant 0 : index
    %343 = vector.load %arg2[%c0_114, %c0_115] : memref<16x20xf32, #tpu.memory_space<vmem>>, vector<16x20xf32>
    %cst_116 = arith.constant dense<0.000000e+00> : vector<16x32xf32>
    %344 = tpu.matmul %343, %342, %cst_116 {dimension_numbers = #tpu.dot_dimension_numbers<[1], [0], [0], [1], [0, 0, 1, 1], [], []>} : vector<16x20xf32>, vector<20x32xf32>, vector<16x32xf32> -> vector<16x32xf32>
    %c0_117 = arith.constant 0 : index
    %c0_118 = arith.constant 0 : index
    %c0_119 = arith.constant 0 : index
    %345 = vector.load %arg11[%c0_117, %c0_118, %c0_119] : memref<2x32x128xf32, #tpu.memory_space<vmem>>, vector<1x32x128xf32>
    %346 = vector.shape_cast %345 : vector<1x32x128xf32> to vector<32x128xf32>
    %c0_120 = arith.constant 0 : index
    %c0_121 = arith.constant 0 : index
    %c0_122 = arith.constant 0 : index
    %347 = vector.load %arg12[%c0_120, %c0_121, %c0_122] : memref<2x32x128xf32, #tpu.memory_space<vmem>>, vector<1x32x128xf32>
    %348 = vector.shape_cast %347 : vector<1x32x128xf32> to vector<32x128xf32>
    %349 = vector.extract_strided_slice %0 {offsets = [13, 0], sizes = [1, 128], strides = [1, 1]} : vector<16x128xf32> to vector<1x128xf32>
    %cst_123 = arith.constant dense<0.000000e+00> : vector<16x128xf32>
    %350 = tpu.matmul %344, %346, %cst_123 {dimension_numbers = #tpu.dot_dimension_numbers<[1], [0], [0], [1], [0, 0, 1, 1], [], []>} : vector<16x32xf32>, vector<32x128xf32>, vector<16x128xf32> -> vector<16x128xf32>
    %351 = vector.broadcast %349 : vector<1x128xf32> to vector<16x128xf32>
    %352 = arith.addf %350, %351 : vector<16x128xf32>
    %353 = vector.extract_strided_slice %352 {offsets = [0, 0], sizes = [2, 64], strides = [1, 1]} : vector<16x128xf32> to vector<2x64xf32>
    %354 = vector.extract_strided_slice %352 {offsets = [14, 64], sizes = [2, 64], strides = [1, 1]} : vector<16x128xf32> to vector<2x64xf32>
    %355 = tpu.concatenate %353, %354 in 1 : vector<2x64xf32>, vector<2x64xf32> -> vector<2x128xf32>
    %356 = arith.negf %355 : vector<2x128xf32>
    %357 = math.exp %356 : vector<2x128xf32>
    %cst_124 = arith.constant 1.000000e+00 : f32
    %358 = vector.broadcast %cst_124 : f32 to vector<2x128xf32>
    %359 = arith.addf %358, %357 : vector<2x128xf32>
    %360 = arith.divf %358, %359 : vector<2x128xf32>
    %361 = math.tanh %355 : vector<2x128xf32>
    %362 = vector.extract_strided_slice %360 {offsets = [0, 0], sizes = [2, 16], strides = [1, 1]} : vector<2x128xf32> to vector<2x16xf32>
    %363 = vector.extract_strided_slice %361 {offsets = [0, 32], sizes = [2, 16], strides = [1, 1]} : vector<2x128xf32> to vector<2x16xf32>
    %364 = arith.mulf %362, %363 : vector<2x16xf32>
    %365 = vector.extract_strided_slice %360 {offsets = [0, 64], sizes = [2, 16], strides = [1, 1]} : vector<2x128xf32> to vector<2x16xf32>
    %366 = vector.extract_strided_slice %361 {offsets = [0, 96], sizes = [2, 16], strides = [1, 1]} : vector<2x128xf32> to vector<2x16xf32>
    %367 = arith.mulf %365, %366 : vector<2x16xf32>
    %368 = vector.extract_strided_slice %360 {offsets = [0, 48], sizes = [2, 16], strides = [1, 1]} : vector<2x128xf32> to vector<2x16xf32>
    %369 = vector.extract_strided_slice %360 {offsets = [0, 112], sizes = [2, 16], strides = [1, 1]} : vector<2x128xf32> to vector<2x16xf32>
    %370 = tpu.concatenate %368, %369 in 1 : vector<2x16xf32>, vector<2x16xf32> -> vector<2x32xf32>
    %371 = tpu.concatenate %364, %367 in 1 : vector<2x16xf32>, vector<2x16xf32> -> vector<2x32xf32>
    %372 = math.tanh %371 : vector<2x32xf32>
    %373 = arith.mulf %370, %372 : vector<2x32xf32>
    %374 = vector.extract_strided_slice %373 {offsets = [0, 0], sizes = [2, 16], strides = [1, 1]} : vector<2x32xf32> to vector<2x16xf32>
    %375 = vector.extract_strided_slice %373 {offsets = [0, 16], sizes = [2, 16], strides = [1, 1]} : vector<2x32xf32> to vector<2x16xf32>
    %376 = vector.extract_strided_slice %352 {offsets = [2, 0], sizes = [2, 64], strides = [1, 1]} : vector<16x128xf32> to vector<2x64xf32>
    %377 = vector.extract_strided_slice %352 {offsets = [12, 64], sizes = [2, 64], strides = [1, 1]} : vector<16x128xf32> to vector<2x64xf32>
    %378 = tpu.concatenate %376, %377 in 1 : vector<2x64xf32>, vector<2x64xf32> -> vector<2x128xf32>
    %cst_125 = arith.constant dense<0.000000e+00> : vector<2x128xf32>
    %379 = tpu.matmul %373, %348, %cst_125 {dimension_numbers = #tpu.dot_dimension_numbers<[1], [0], [0], [1], [0, 0, 1, 1], [], []>} : vector<2x32xf32>, vector<32x128xf32>, vector<2x128xf32> -> vector<2x128xf32>
    %380 = arith.addf %378, %379 : vector<2x128xf32>
    %381 = arith.negf %380 : vector<2x128xf32>
    %382 = math.exp %381 : vector<2x128xf32>
    %cst_126 = arith.constant 1.000000e+00 : f32
    %383 = vector.broadcast %cst_126 : f32 to vector<2x128xf32>
    %384 = arith.addf %383, %382 : vector<2x128xf32>
    %385 = arith.divf %383, %384 : vector<2x128xf32>
    %386 = math.tanh %380 : vector<2x128xf32>
    %387 = vector.extract_strided_slice %385 {offsets = [0, 16], sizes = [2, 16], strides = [1, 1]} : vector<2x128xf32> to vector<2x16xf32>
    %388 = arith.mulf %387, %364 : vector<2x16xf32>
    %389 = vector.extract_strided_slice %385 {offsets = [0, 0], sizes = [2, 16], strides = [1, 1]} : vector<2x128xf32> to vector<2x16xf32>
    %390 = vector.extract_strided_slice %386 {offsets = [0, 32], sizes = [2, 16], strides = [1, 1]} : vector<2x128xf32> to vector<2x16xf32>
    %391 = arith.mulf %389, %390 : vector<2x16xf32>
    %392 = arith.addf %388, %391 : vector<2x16xf32>
    %393 = vector.extract_strided_slice %385 {offsets = [0, 80], sizes = [2, 16], strides = [1, 1]} : vector<2x128xf32> to vector<2x16xf32>
    %394 = arith.mulf %393, %367 : vector<2x16xf32>
    %395 = vector.extract_strided_slice %385 {offsets = [0, 64], sizes = [2, 16], strides = [1, 1]} : vector<2x128xf32> to vector<2x16xf32>
    %396 = vector.extract_strided_slice %386 {offsets = [0, 96], sizes = [2, 16], strides = [1, 1]} : vector<2x128xf32> to vector<2x16xf32>
    %397 = arith.mulf %395, %396 : vector<2x16xf32>
    %398 = arith.addf %394, %397 : vector<2x16xf32>
    %399 = vector.extract_strided_slice %385 {offsets = [0, 48], sizes = [2, 16], strides = [1, 1]} : vector<2x128xf32> to vector<2x16xf32>
    %400 = vector.extract_strided_slice %385 {offsets = [0, 112], sizes = [2, 16], strides = [1, 1]} : vector<2x128xf32> to vector<2x16xf32>
    %401 = tpu.concatenate %399, %400 in 1 : vector<2x16xf32>, vector<2x16xf32> -> vector<2x32xf32>
    %402 = tpu.concatenate %392, %398 in 1 : vector<2x16xf32>, vector<2x16xf32> -> vector<2x32xf32>
    %403 = math.tanh %402 : vector<2x32xf32>
    %404 = arith.mulf %401, %403 : vector<2x32xf32>
    %405 = vector.extract_strided_slice %404 {offsets = [0, 0], sizes = [2, 16], strides = [1, 1]} : vector<2x32xf32> to vector<2x16xf32>
    %406 = vector.extract_strided_slice %404 {offsets = [0, 16], sizes = [2, 16], strides = [1, 1]} : vector<2x32xf32> to vector<2x16xf32>
    %407 = vector.extract_strided_slice %352 {offsets = [4, 0], sizes = [2, 64], strides = [1, 1]} : vector<16x128xf32> to vector<2x64xf32>
    %408 = vector.extract_strided_slice %352 {offsets = [10, 64], sizes = [2, 64], strides = [1, 1]} : vector<16x128xf32> to vector<2x64xf32>
    %409 = tpu.concatenate %407, %408 in 1 : vector<2x64xf32>, vector<2x64xf32> -> vector<2x128xf32>
    %cst_127 = arith.constant dense<0.000000e+00> : vector<2x128xf32>
    %410 = tpu.matmul %404, %348, %cst_127 {dimension_numbers = #tpu.dot_dimension_numbers<[1], [0], [0], [1], [0, 0, 1, 1], [], []>} : vector<2x32xf32>, vector<32x128xf32>, vector<2x128xf32> -> vector<2x128xf32>
    %411 = arith.addf %409, %410 : vector<2x128xf32>
    %412 = arith.negf %411 : vector<2x128xf32>
    %413 = math.exp %412 : vector<2x128xf32>
    %cst_128 = arith.constant 1.000000e+00 : f32
    %414 = vector.broadcast %cst_128 : f32 to vector<2x128xf32>
    %415 = arith.addf %414, %413 : vector<2x128xf32>
    %416 = arith.divf %414, %415 : vector<2x128xf32>
    %417 = math.tanh %411 : vector<2x128xf32>
    %418 = vector.extract_strided_slice %416 {offsets = [0, 16], sizes = [2, 16], strides = [1, 1]} : vector<2x128xf32> to vector<2x16xf32>
    %419 = arith.mulf %418, %392 : vector<2x16xf32>
    %420 = vector.extract_strided_slice %416 {offsets = [0, 0], sizes = [2, 16], strides = [1, 1]} : vector<2x128xf32> to vector<2x16xf32>
    %421 = vector.extract_strided_slice %417 {offsets = [0, 32], sizes = [2, 16], strides = [1, 1]} : vector<2x128xf32> to vector<2x16xf32>
    %422 = arith.mulf %420, %421 : vector<2x16xf32>
    %423 = arith.addf %419, %422 : vector<2x16xf32>
    %424 = vector.extract_strided_slice %416 {offsets = [0, 80], sizes = [2, 16], strides = [1, 1]} : vector<2x128xf32> to vector<2x16xf32>
    %425 = arith.mulf %424, %398 : vector<2x16xf32>
    %426 = vector.extract_strided_slice %416 {offsets = [0, 64], sizes = [2, 16], strides = [1, 1]} : vector<2x128xf32> to vector<2x16xf32>
    %427 = vector.extract_strided_slice %417 {offsets = [0, 96], sizes = [2, 16], strides = [1, 1]} : vector<2x128xf32> to vector<2x16xf32>
    %428 = arith.mulf %426, %427 : vector<2x16xf32>
    %429 = arith.addf %425, %428 : vector<2x16xf32>
    %430 = vector.extract_strided_slice %416 {offsets = [0, 48], sizes = [2, 16], strides = [1, 1]} : vector<2x128xf32> to vector<2x16xf32>
    %431 = vector.extract_strided_slice %416 {offsets = [0, 112], sizes = [2, 16], strides = [1, 1]} : vector<2x128xf32> to vector<2x16xf32>
    %432 = tpu.concatenate %430, %431 in 1 : vector<2x16xf32>, vector<2x16xf32> -> vector<2x32xf32>
    %433 = tpu.concatenate %423, %429 in 1 : vector<2x16xf32>, vector<2x16xf32> -> vector<2x32xf32>
    %434 = math.tanh %433 : vector<2x32xf32>
    %435 = arith.mulf %432, %434 : vector<2x32xf32>
    %436 = vector.extract_strided_slice %435 {offsets = [0, 0], sizes = [2, 16], strides = [1, 1]} : vector<2x32xf32> to vector<2x16xf32>
    %437 = vector.extract_strided_slice %435 {offsets = [0, 16], sizes = [2, 16], strides = [1, 1]} : vector<2x32xf32> to vector<2x16xf32>
    %438 = vector.extract_strided_slice %352 {offsets = [6, 0], sizes = [2, 64], strides = [1, 1]} : vector<16x128xf32> to vector<2x64xf32>
    %439 = vector.extract_strided_slice %352 {offsets = [8, 64], sizes = [2, 64], strides = [1, 1]} : vector<16x128xf32> to vector<2x64xf32>
    %440 = tpu.concatenate %438, %439 in 1 : vector<2x64xf32>, vector<2x64xf32> -> vector<2x128xf32>
    %cst_129 = arith.constant dense<0.000000e+00> : vector<2x128xf32>
    %441 = tpu.matmul %435, %348, %cst_129 {dimension_numbers = #tpu.dot_dimension_numbers<[1], [0], [0], [1], [0, 0, 1, 1], [], []>} : vector<2x32xf32>, vector<32x128xf32>, vector<2x128xf32> -> vector<2x128xf32>
    %442 = arith.addf %440, %441 : vector<2x128xf32>
    %443 = arith.negf %442 : vector<2x128xf32>
    %444 = math.exp %443 : vector<2x128xf32>
    %cst_130 = arith.constant 1.000000e+00 : f32
    %445 = vector.broadcast %cst_130 : f32 to vector<2x128xf32>
    %446 = arith.addf %445, %444 : vector<2x128xf32>
    %447 = arith.divf %445, %446 : vector<2x128xf32>
    %448 = math.tanh %442 : vector<2x128xf32>
    %449 = vector.extract_strided_slice %447 {offsets = [0, 16], sizes = [2, 16], strides = [1, 1]} : vector<2x128xf32> to vector<2x16xf32>
    %450 = arith.mulf %449, %423 : vector<2x16xf32>
    %451 = vector.extract_strided_slice %447 {offsets = [0, 0], sizes = [2, 16], strides = [1, 1]} : vector<2x128xf32> to vector<2x16xf32>
    %452 = vector.extract_strided_slice %448 {offsets = [0, 32], sizes = [2, 16], strides = [1, 1]} : vector<2x128xf32> to vector<2x16xf32>
    %453 = arith.mulf %451, %452 : vector<2x16xf32>
    %454 = arith.addf %450, %453 : vector<2x16xf32>
    %455 = vector.extract_strided_slice %447 {offsets = [0, 80], sizes = [2, 16], strides = [1, 1]} : vector<2x128xf32> to vector<2x16xf32>
    %456 = arith.mulf %455, %429 : vector<2x16xf32>
    %457 = vector.extract_strided_slice %447 {offsets = [0, 64], sizes = [2, 16], strides = [1, 1]} : vector<2x128xf32> to vector<2x16xf32>
    %458 = vector.extract_strided_slice %448 {offsets = [0, 96], sizes = [2, 16], strides = [1, 1]} : vector<2x128xf32> to vector<2x16xf32>
    %459 = arith.mulf %457, %458 : vector<2x16xf32>
    %460 = arith.addf %456, %459 : vector<2x16xf32>
    %461 = vector.extract_strided_slice %447 {offsets = [0, 48], sizes = [2, 16], strides = [1, 1]} : vector<2x128xf32> to vector<2x16xf32>
    %462 = vector.extract_strided_slice %447 {offsets = [0, 112], sizes = [2, 16], strides = [1, 1]} : vector<2x128xf32> to vector<2x16xf32>
    %463 = tpu.concatenate %461, %462 in 1 : vector<2x16xf32>, vector<2x16xf32> -> vector<2x32xf32>
    %464 = tpu.concatenate %454, %460 in 1 : vector<2x16xf32>, vector<2x16xf32> -> vector<2x32xf32>
    %465 = math.tanh %464 : vector<2x32xf32>
    %466 = arith.mulf %463, %465 : vector<2x32xf32>
    %467 = vector.extract_strided_slice %466 {offsets = [0, 0], sizes = [2, 16], strides = [1, 1]} : vector<2x32xf32> to vector<2x16xf32>
    %468 = vector.extract_strided_slice %466 {offsets = [0, 16], sizes = [2, 16], strides = [1, 1]} : vector<2x32xf32> to vector<2x16xf32>
    %469 = vector.extract_strided_slice %352 {offsets = [8, 0], sizes = [2, 64], strides = [1, 1]} : vector<16x128xf32> to vector<2x64xf32>
    %470 = vector.extract_strided_slice %352 {offsets = [6, 64], sizes = [2, 64], strides = [1, 1]} : vector<16x128xf32> to vector<2x64xf32>
    %471 = tpu.concatenate %469, %470 in 1 : vector<2x64xf32>, vector<2x64xf32> -> vector<2x128xf32>
    %cst_131 = arith.constant dense<0.000000e+00> : vector<2x128xf32>
    %472 = tpu.matmul %466, %348, %cst_131 {dimension_numbers = #tpu.dot_dimension_numbers<[1], [0], [0], [1], [0, 0, 1, 1], [], []>} : vector<2x32xf32>, vector<32x128xf32>, vector<2x128xf32> -> vector<2x128xf32>
    %473 = arith.addf %471, %472 : vector<2x128xf32>
    %474 = arith.negf %473 : vector<2x128xf32>
    %475 = math.exp %474 : vector<2x128xf32>
    %cst_132 = arith.constant 1.000000e+00 : f32
    %476 = vector.broadcast %cst_132 : f32 to vector<2x128xf32>
    %477 = arith.addf %476, %475 : vector<2x128xf32>
    %478 = arith.divf %476, %477 : vector<2x128xf32>
    %479 = math.tanh %473 : vector<2x128xf32>
    %480 = vector.extract_strided_slice %478 {offsets = [0, 16], sizes = [2, 16], strides = [1, 1]} : vector<2x128xf32> to vector<2x16xf32>
    %481 = arith.mulf %480, %454 : vector<2x16xf32>
    %482 = vector.extract_strided_slice %478 {offsets = [0, 0], sizes = [2, 16], strides = [1, 1]} : vector<2x128xf32> to vector<2x16xf32>
    %483 = vector.extract_strided_slice %479 {offsets = [0, 32], sizes = [2, 16], strides = [1, 1]} : vector<2x128xf32> to vector<2x16xf32>
    %484 = arith.mulf %482, %483 : vector<2x16xf32>
    %485 = arith.addf %481, %484 : vector<2x16xf32>
    %486 = vector.extract_strided_slice %478 {offsets = [0, 80], sizes = [2, 16], strides = [1, 1]} : vector<2x128xf32> to vector<2x16xf32>
    %487 = arith.mulf %486, %460 : vector<2x16xf32>
    %488 = vector.extract_strided_slice %478 {offsets = [0, 64], sizes = [2, 16], strides = [1, 1]} : vector<2x128xf32> to vector<2x16xf32>
    %489 = vector.extract_strided_slice %479 {offsets = [0, 96], sizes = [2, 16], strides = [1, 1]} : vector<2x128xf32> to vector<2x16xf32>
    %490 = arith.mulf %488, %489 : vector<2x16xf32>
    %491 = arith.addf %487, %490 : vector<2x16xf32>
    %492 = vector.extract_strided_slice %478 {offsets = [0, 48], sizes = [2, 16], strides = [1, 1]} : vector<2x128xf32> to vector<2x16xf32>
    %493 = vector.extract_strided_slice %478 {offsets = [0, 112], sizes = [2, 16], strides = [1, 1]} : vector<2x128xf32> to vector<2x16xf32>
    %494 = tpu.concatenate %492, %493 in 1 : vector<2x16xf32>, vector<2x16xf32> -> vector<2x32xf32>
    %495 = tpu.concatenate %485, %491 in 1 : vector<2x16xf32>, vector<2x16xf32> -> vector<2x32xf32>
    %496 = math.tanh %495 : vector<2x32xf32>
    %497 = arith.mulf %494, %496 : vector<2x32xf32>
    %498 = vector.extract_strided_slice %497 {offsets = [0, 0], sizes = [2, 16], strides = [1, 1]} : vector<2x32xf32> to vector<2x16xf32>
    %499 = vector.extract_strided_slice %497 {offsets = [0, 16], sizes = [2, 16], strides = [1, 1]} : vector<2x32xf32> to vector<2x16xf32>
    %500 = vector.extract_strided_slice %352 {offsets = [10, 0], sizes = [2, 64], strides = [1, 1]} : vector<16x128xf32> to vector<2x64xf32>
    %501 = vector.extract_strided_slice %352 {offsets = [4, 64], sizes = [2, 64], strides = [1, 1]} : vector<16x128xf32> to vector<2x64xf32>
    %502 = tpu.concatenate %500, %501 in 1 : vector<2x64xf32>, vector<2x64xf32> -> vector<2x128xf32>
    %cst_133 = arith.constant dense<0.000000e+00> : vector<2x128xf32>
    %503 = tpu.matmul %497, %348, %cst_133 {dimension_numbers = #tpu.dot_dimension_numbers<[1], [0], [0], [1], [0, 0, 1, 1], [], []>} : vector<2x32xf32>, vector<32x128xf32>, vector<2x128xf32> -> vector<2x128xf32>
    %504 = arith.addf %502, %503 : vector<2x128xf32>
    %505 = arith.negf %504 : vector<2x128xf32>
    %506 = math.exp %505 : vector<2x128xf32>
    %cst_134 = arith.constant 1.000000e+00 : f32
    %507 = vector.broadcast %cst_134 : f32 to vector<2x128xf32>
    %508 = arith.addf %507, %506 : vector<2x128xf32>
    %509 = arith.divf %507, %508 : vector<2x128xf32>
    %510 = math.tanh %504 : vector<2x128xf32>
    %511 = vector.extract_strided_slice %509 {offsets = [0, 16], sizes = [2, 16], strides = [1, 1]} : vector<2x128xf32> to vector<2x16xf32>
    %512 = arith.mulf %511, %485 : vector<2x16xf32>
    %513 = vector.extract_strided_slice %509 {offsets = [0, 0], sizes = [2, 16], strides = [1, 1]} : vector<2x128xf32> to vector<2x16xf32>
    %514 = vector.extract_strided_slice %510 {offsets = [0, 32], sizes = [2, 16], strides = [1, 1]} : vector<2x128xf32> to vector<2x16xf32>
    %515 = arith.mulf %513, %514 : vector<2x16xf32>
    %516 = arith.addf %512, %515 : vector<2x16xf32>
    %517 = vector.extract_strided_slice %509 {offsets = [0, 80], sizes = [2, 16], strides = [1, 1]} : vector<2x128xf32> to vector<2x16xf32>
    %518 = arith.mulf %517, %491 : vector<2x16xf32>
    %519 = vector.extract_strided_slice %509 {offsets = [0, 64], sizes = [2, 16], strides = [1, 1]} : vector<2x128xf32> to vector<2x16xf32>
    %520 = vector.extract_strided_slice %510 {offsets = [0, 96], sizes = [2, 16], strides = [1, 1]} : vector<2x128xf32> to vector<2x16xf32>
    %521 = arith.mulf %519, %520 : vector<2x16xf32>
    %522 = arith.addf %518, %521 : vector<2x16xf32>
    %523 = vector.extract_strided_slice %509 {offsets = [0, 48], sizes = [2, 16], strides = [1, 1]} : vector<2x128xf32> to vector<2x16xf32>
    %524 = vector.extract_strided_slice %509 {offsets = [0, 112], sizes = [2, 16], strides = [1, 1]} : vector<2x128xf32> to vector<2x16xf32>
    %525 = tpu.concatenate %523, %524 in 1 : vector<2x16xf32>, vector<2x16xf32> -> vector<2x32xf32>
    %526 = tpu.concatenate %516, %522 in 1 : vector<2x16xf32>, vector<2x16xf32> -> vector<2x32xf32>
    %527 = math.tanh %526 : vector<2x32xf32>
    %528 = arith.mulf %525, %527 : vector<2x32xf32>
    %529 = vector.extract_strided_slice %528 {offsets = [0, 0], sizes = [2, 16], strides = [1, 1]} : vector<2x32xf32> to vector<2x16xf32>
    %530 = vector.extract_strided_slice %528 {offsets = [0, 16], sizes = [2, 16], strides = [1, 1]} : vector<2x32xf32> to vector<2x16xf32>
    %531 = vector.extract_strided_slice %352 {offsets = [12, 0], sizes = [2, 64], strides = [1, 1]} : vector<16x128xf32> to vector<2x64xf32>
    %532 = vector.extract_strided_slice %352 {offsets = [2, 64], sizes = [2, 64], strides = [1, 1]} : vector<16x128xf32> to vector<2x64xf32>
    %533 = tpu.concatenate %531, %532 in 1 : vector<2x64xf32>, vector<2x64xf32> -> vector<2x128xf32>
    %cst_135 = arith.constant dense<0.000000e+00> : vector<2x128xf32>
    %534 = tpu.matmul %528, %348, %cst_135 {dimension_numbers = #tpu.dot_dimension_numbers<[1], [0], [0], [1], [0, 0, 1, 1], [], []>} : vector<2x32xf32>, vector<32x128xf32>, vector<2x128xf32> -> vector<2x128xf32>
    %535 = arith.addf %533, %534 : vector<2x128xf32>
    %536 = arith.negf %535 : vector<2x128xf32>
    %537 = math.exp %536 : vector<2x128xf32>
    %cst_136 = arith.constant 1.000000e+00 : f32
    %538 = vector.broadcast %cst_136 : f32 to vector<2x128xf32>
    %539 = arith.addf %538, %537 : vector<2x128xf32>
    %540 = arith.divf %538, %539 : vector<2x128xf32>
    %541 = math.tanh %535 : vector<2x128xf32>
    %542 = vector.extract_strided_slice %540 {offsets = [0, 16], sizes = [2, 16], strides = [1, 1]} : vector<2x128xf32> to vector<2x16xf32>
    %543 = arith.mulf %542, %516 : vector<2x16xf32>
    %544 = vector.extract_strided_slice %540 {offsets = [0, 0], sizes = [2, 16], strides = [1, 1]} : vector<2x128xf32> to vector<2x16xf32>
    %545 = vector.extract_strided_slice %541 {offsets = [0, 32], sizes = [2, 16], strides = [1, 1]} : vector<2x128xf32> to vector<2x16xf32>
    %546 = arith.mulf %544, %545 : vector<2x16xf32>
    %547 = arith.addf %543, %546 : vector<2x16xf32>
    %548 = vector.extract_strided_slice %540 {offsets = [0, 80], sizes = [2, 16], strides = [1, 1]} : vector<2x128xf32> to vector<2x16xf32>
    %549 = arith.mulf %548, %522 : vector<2x16xf32>
    %550 = vector.extract_strided_slice %540 {offsets = [0, 64], sizes = [2, 16], strides = [1, 1]} : vector<2x128xf32> to vector<2x16xf32>
    %551 = vector.extract_strided_slice %541 {offsets = [0, 96], sizes = [2, 16], strides = [1, 1]} : vector<2x128xf32> to vector<2x16xf32>
    %552 = arith.mulf %550, %551 : vector<2x16xf32>
    %553 = arith.addf %549, %552 : vector<2x16xf32>
    %554 = vector.extract_strided_slice %540 {offsets = [0, 48], sizes = [2, 16], strides = [1, 1]} : vector<2x128xf32> to vector<2x16xf32>
    %555 = vector.extract_strided_slice %540 {offsets = [0, 112], sizes = [2, 16], strides = [1, 1]} : vector<2x128xf32> to vector<2x16xf32>
    %556 = tpu.concatenate %554, %555 in 1 : vector<2x16xf32>, vector<2x16xf32> -> vector<2x32xf32>
    %557 = tpu.concatenate %547, %553 in 1 : vector<2x16xf32>, vector<2x16xf32> -> vector<2x32xf32>
    %558 = math.tanh %557 : vector<2x32xf32>
    %559 = arith.mulf %556, %558 : vector<2x32xf32>
    %560 = vector.extract_strided_slice %559 {offsets = [0, 0], sizes = [2, 16], strides = [1, 1]} : vector<2x32xf32> to vector<2x16xf32>
    %561 = vector.extract_strided_slice %559 {offsets = [0, 16], sizes = [2, 16], strides = [1, 1]} : vector<2x32xf32> to vector<2x16xf32>
    %562 = vector.extract_strided_slice %352 {offsets = [14, 0], sizes = [2, 64], strides = [1, 1]} : vector<16x128xf32> to vector<2x64xf32>
    %563 = vector.extract_strided_slice %352 {offsets = [0, 64], sizes = [2, 64], strides = [1, 1]} : vector<16x128xf32> to vector<2x64xf32>
    %564 = tpu.concatenate %562, %563 in 1 : vector<2x64xf32>, vector<2x64xf32> -> vector<2x128xf32>
    %cst_137 = arith.constant dense<0.000000e+00> : vector<2x128xf32>
    %565 = tpu.matmul %559, %348, %cst_137 {dimension_numbers = #tpu.dot_dimension_numbers<[1], [0], [0], [1], [0, 0, 1, 1], [], []>} : vector<2x32xf32>, vector<32x128xf32>, vector<2x128xf32> -> vector<2x128xf32>
    %566 = arith.addf %564, %565 : vector<2x128xf32>
    %567 = arith.negf %566 : vector<2x128xf32>
    %568 = math.exp %567 : vector<2x128xf32>
    %cst_138 = arith.constant 1.000000e+00 : f32
    %569 = vector.broadcast %cst_138 : f32 to vector<2x128xf32>
    %570 = arith.addf %569, %568 : vector<2x128xf32>
    %571 = arith.divf %569, %570 : vector<2x128xf32>
    %572 = math.tanh %566 : vector<2x128xf32>
    %573 = vector.extract_strided_slice %571 {offsets = [0, 16], sizes = [2, 16], strides = [1, 1]} : vector<2x128xf32> to vector<2x16xf32>
    %574 = arith.mulf %573, %547 : vector<2x16xf32>
    %575 = vector.extract_strided_slice %571 {offsets = [0, 0], sizes = [2, 16], strides = [1, 1]} : vector<2x128xf32> to vector<2x16xf32>
    %576 = vector.extract_strided_slice %572 {offsets = [0, 32], sizes = [2, 16], strides = [1, 1]} : vector<2x128xf32> to vector<2x16xf32>
    %577 = arith.mulf %575, %576 : vector<2x16xf32>
    %578 = arith.addf %574, %577 : vector<2x16xf32>
    %579 = vector.extract_strided_slice %571 {offsets = [0, 80], sizes = [2, 16], strides = [1, 1]} : vector<2x128xf32> to vector<2x16xf32>
    %580 = arith.mulf %579, %553 : vector<2x16xf32>
    %581 = vector.extract_strided_slice %571 {offsets = [0, 64], sizes = [2, 16], strides = [1, 1]} : vector<2x128xf32> to vector<2x16xf32>
    %582 = vector.extract_strided_slice %572 {offsets = [0, 96], sizes = [2, 16], strides = [1, 1]} : vector<2x128xf32> to vector<2x16xf32>
    %583 = arith.mulf %581, %582 : vector<2x16xf32>
    %584 = arith.addf %580, %583 : vector<2x16xf32>
    %585 = vector.extract_strided_slice %571 {offsets = [0, 48], sizes = [2, 16], strides = [1, 1]} : vector<2x128xf32> to vector<2x16xf32>
    %586 = vector.extract_strided_slice %571 {offsets = [0, 112], sizes = [2, 16], strides = [1, 1]} : vector<2x128xf32> to vector<2x16xf32>
    %587 = tpu.concatenate %585, %586 in 1 : vector<2x16xf32>, vector<2x16xf32> -> vector<2x32xf32>
    %588 = tpu.concatenate %578, %584 in 1 : vector<2x16xf32>, vector<2x16xf32> -> vector<2x32xf32>
    %589 = math.tanh %588 : vector<2x32xf32>
    %590 = arith.mulf %587, %589 : vector<2x32xf32>
    %591 = vector.extract_strided_slice %590 {offsets = [0, 0], sizes = [2, 16], strides = [1, 1]} : vector<2x32xf32> to vector<2x16xf32>
    %592 = vector.extract_strided_slice %590 {offsets = [0, 16], sizes = [2, 16], strides = [1, 1]} : vector<2x32xf32> to vector<2x16xf32>
    %593 = tpu.concatenate %374, %405, %436, %467, %498, %529, %560, %591 in 0 : vector<2x16xf32>, vector<2x16xf32>, vector<2x16xf32>, vector<2x16xf32>, vector<2x16xf32>, vector<2x16xf32>, vector<2x16xf32>, vector<2x16xf32> -> vector<16x16xf32>
    %594 = tpu.concatenate %592, %561, %530, %499, %468, %437, %406, %375 in 0 : vector<2x16xf32>, vector<2x16xf32>, vector<2x16xf32>, vector<2x16xf32>, vector<2x16xf32>, vector<2x16xf32>, vector<2x16xf32>, vector<2x16xf32> -> vector<16x16xf32>
    %595 = tpu.concatenate %593, %594 in 1 : vector<16x16xf32>, vector<16x16xf32> -> vector<16x32xf32>
    %c1_139 = arith.constant 1 : index
    %c0_140 = arith.constant 0 : index
    %c0_141 = arith.constant 0 : index
    %596 = vector.load %arg11[%c1_139, %c0_140, %c0_141] : memref<2x32x128xf32, #tpu.memory_space<vmem>>, vector<1x32x128xf32>
    %597 = vector.shape_cast %596 : vector<1x32x128xf32> to vector<32x128xf32>
    %c1_142 = arith.constant 1 : index
    %c0_143 = arith.constant 0 : index
    %c0_144 = arith.constant 0 : index
    %598 = vector.load %arg12[%c1_142, %c0_143, %c0_144] : memref<2x32x128xf32, #tpu.memory_space<vmem>>, vector<1x32x128xf32>
    %599 = vector.shape_cast %598 : vector<1x32x128xf32> to vector<32x128xf32>
    %600 = vector.extract_strided_slice %0 {offsets = [14, 0], sizes = [1, 128], strides = [1, 1]} : vector<16x128xf32> to vector<1x128xf32>
    %cst_145 = arith.constant dense<0.000000e+00> : vector<16x128xf32>
    %601 = tpu.matmul %595, %597, %cst_145 {dimension_numbers = #tpu.dot_dimension_numbers<[1], [0], [0], [1], [0, 0, 1, 1], [], []>} : vector<16x32xf32>, vector<32x128xf32>, vector<16x128xf32> -> vector<16x128xf32>
    %602 = vector.broadcast %600 : vector<1x128xf32> to vector<16x128xf32>
    %603 = arith.addf %601, %602 : vector<16x128xf32>
    %604 = vector.extract_strided_slice %603 {offsets = [0, 0], sizes = [2, 64], strides = [1, 1]} : vector<16x128xf32> to vector<2x64xf32>
    %605 = vector.extract_strided_slice %603 {offsets = [14, 64], sizes = [2, 64], strides = [1, 1]} : vector<16x128xf32> to vector<2x64xf32>
    %606 = tpu.concatenate %604, %605 in 1 : vector<2x64xf32>, vector<2x64xf32> -> vector<2x128xf32>
    %607 = arith.negf %606 : vector<2x128xf32>
    %608 = math.exp %607 : vector<2x128xf32>
    %cst_146 = arith.constant 1.000000e+00 : f32
    %609 = vector.broadcast %cst_146 : f32 to vector<2x128xf32>
    %610 = arith.addf %609, %608 : vector<2x128xf32>
    %611 = arith.divf %609, %610 : vector<2x128xf32>
    %612 = math.tanh %606 : vector<2x128xf32>
    %613 = vector.extract_strided_slice %611 {offsets = [0, 0], sizes = [2, 16], strides = [1, 1]} : vector<2x128xf32> to vector<2x16xf32>
    %614 = vector.extract_strided_slice %612 {offsets = [0, 32], sizes = [2, 16], strides = [1, 1]} : vector<2x128xf32> to vector<2x16xf32>
    %615 = arith.mulf %613, %614 : vector<2x16xf32>
    %616 = vector.extract_strided_slice %611 {offsets = [0, 64], sizes = [2, 16], strides = [1, 1]} : vector<2x128xf32> to vector<2x16xf32>
    %617 = vector.extract_strided_slice %612 {offsets = [0, 96], sizes = [2, 16], strides = [1, 1]} : vector<2x128xf32> to vector<2x16xf32>
    %618 = arith.mulf %616, %617 : vector<2x16xf32>
    %619 = vector.extract_strided_slice %611 {offsets = [0, 48], sizes = [2, 16], strides = [1, 1]} : vector<2x128xf32> to vector<2x16xf32>
    %620 = vector.extract_strided_slice %611 {offsets = [0, 112], sizes = [2, 16], strides = [1, 1]} : vector<2x128xf32> to vector<2x16xf32>
    %621 = tpu.concatenate %619, %620 in 1 : vector<2x16xf32>, vector<2x16xf32> -> vector<2x32xf32>
    %622 = tpu.concatenate %615, %618 in 1 : vector<2x16xf32>, vector<2x16xf32> -> vector<2x32xf32>
    %623 = math.tanh %622 : vector<2x32xf32>
    %624 = arith.mulf %621, %623 : vector<2x32xf32>
    %625 = vector.extract_strided_slice %624 {offsets = [0, 0], sizes = [2, 16], strides = [1, 1]} : vector<2x32xf32> to vector<2x16xf32>
    %626 = vector.extract_strided_slice %624 {offsets = [0, 16], sizes = [2, 16], strides = [1, 1]} : vector<2x32xf32> to vector<2x16xf32>
    %627 = vector.extract_strided_slice %603 {offsets = [2, 0], sizes = [2, 64], strides = [1, 1]} : vector<16x128xf32> to vector<2x64xf32>
    %628 = vector.extract_strided_slice %603 {offsets = [12, 64], sizes = [2, 64], strides = [1, 1]} : vector<16x128xf32> to vector<2x64xf32>
    %629 = tpu.concatenate %627, %628 in 1 : vector<2x64xf32>, vector<2x64xf32> -> vector<2x128xf32>
    %cst_147 = arith.constant dense<0.000000e+00> : vector<2x128xf32>
    %630 = tpu.matmul %624, %599, %cst_147 {dimension_numbers = #tpu.dot_dimension_numbers<[1], [0], [0], [1], [0, 0, 1, 1], [], []>} : vector<2x32xf32>, vector<32x128xf32>, vector<2x128xf32> -> vector<2x128xf32>
    %631 = arith.addf %629, %630 : vector<2x128xf32>
    %632 = arith.negf %631 : vector<2x128xf32>
    %633 = math.exp %632 : vector<2x128xf32>
    %cst_148 = arith.constant 1.000000e+00 : f32
    %634 = vector.broadcast %cst_148 : f32 to vector<2x128xf32>
    %635 = arith.addf %634, %633 : vector<2x128xf32>
    %636 = arith.divf %634, %635 : vector<2x128xf32>
    %637 = math.tanh %631 : vector<2x128xf32>
    %638 = vector.extract_strided_slice %636 {offsets = [0, 16], sizes = [2, 16], strides = [1, 1]} : vector<2x128xf32> to vector<2x16xf32>
    %639 = arith.mulf %638, %615 : vector<2x16xf32>
    %640 = vector.extract_strided_slice %636 {offsets = [0, 0], sizes = [2, 16], strides = [1, 1]} : vector<2x128xf32> to vector<2x16xf32>
    %641 = vector.extract_strided_slice %637 {offsets = [0, 32], sizes = [2, 16], strides = [1, 1]} : vector<2x128xf32> to vector<2x16xf32>
    %642 = arith.mulf %640, %641 : vector<2x16xf32>
    %643 = arith.addf %639, %642 : vector<2x16xf32>
    %644 = vector.extract_strided_slice %636 {offsets = [0, 80], sizes = [2, 16], strides = [1, 1]} : vector<2x128xf32> to vector<2x16xf32>
    %645 = arith.mulf %644, %618 : vector<2x16xf32>
    %646 = vector.extract_strided_slice %636 {offsets = [0, 64], sizes = [2, 16], strides = [1, 1]} : vector<2x128xf32> to vector<2x16xf32>
    %647 = vector.extract_strided_slice %637 {offsets = [0, 96], sizes = [2, 16], strides = [1, 1]} : vector<2x128xf32> to vector<2x16xf32>
    %648 = arith.mulf %646, %647 : vector<2x16xf32>
    %649 = arith.addf %645, %648 : vector<2x16xf32>
    %650 = vector.extract_strided_slice %636 {offsets = [0, 48], sizes = [2, 16], strides = [1, 1]} : vector<2x128xf32> to vector<2x16xf32>
    %651 = vector.extract_strided_slice %636 {offsets = [0, 112], sizes = [2, 16], strides = [1, 1]} : vector<2x128xf32> to vector<2x16xf32>
    %652 = tpu.concatenate %650, %651 in 1 : vector<2x16xf32>, vector<2x16xf32> -> vector<2x32xf32>
    %653 = tpu.concatenate %643, %649 in 1 : vector<2x16xf32>, vector<2x16xf32> -> vector<2x32xf32>
    %654 = math.tanh %653 : vector<2x32xf32>
    %655 = arith.mulf %652, %654 : vector<2x32xf32>
    %656 = vector.extract_strided_slice %655 {offsets = [0, 0], sizes = [2, 16], strides = [1, 1]} : vector<2x32xf32> to vector<2x16xf32>
    %657 = vector.extract_strided_slice %655 {offsets = [0, 16], sizes = [2, 16], strides = [1, 1]} : vector<2x32xf32> to vector<2x16xf32>
    %658 = vector.extract_strided_slice %603 {offsets = [4, 0], sizes = [2, 64], strides = [1, 1]} : vector<16x128xf32> to vector<2x64xf32>
    %659 = vector.extract_strided_slice %603 {offsets = [10, 64], sizes = [2, 64], strides = [1, 1]} : vector<16x128xf32> to vector<2x64xf32>
    %660 = tpu.concatenate %658, %659 in 1 : vector<2x64xf32>, vector<2x64xf32> -> vector<2x128xf32>
    %cst_149 = arith.constant dense<0.000000e+00> : vector<2x128xf32>
    %661 = tpu.matmul %655, %599, %cst_149 {dimension_numbers = #tpu.dot_dimension_numbers<[1], [0], [0], [1], [0, 0, 1, 1], [], []>} : vector<2x32xf32>, vector<32x128xf32>, vector<2x128xf32> -> vector<2x128xf32>
    %662 = arith.addf %660, %661 : vector<2x128xf32>
    %663 = arith.negf %662 : vector<2x128xf32>
    %664 = math.exp %663 : vector<2x128xf32>
    %cst_150 = arith.constant 1.000000e+00 : f32
    %665 = vector.broadcast %cst_150 : f32 to vector<2x128xf32>
    %666 = arith.addf %665, %664 : vector<2x128xf32>
    %667 = arith.divf %665, %666 : vector<2x128xf32>
    %668 = math.tanh %662 : vector<2x128xf32>
    %669 = vector.extract_strided_slice %667 {offsets = [0, 16], sizes = [2, 16], strides = [1, 1]} : vector<2x128xf32> to vector<2x16xf32>
    %670 = arith.mulf %669, %643 : vector<2x16xf32>
    %671 = vector.extract_strided_slice %667 {offsets = [0, 0], sizes = [2, 16], strides = [1, 1]} : vector<2x128xf32> to vector<2x16xf32>
    %672 = vector.extract_strided_slice %668 {offsets = [0, 32], sizes = [2, 16], strides = [1, 1]} : vector<2x128xf32> to vector<2x16xf32>
    %673 = arith.mulf %671, %672 : vector<2x16xf32>
    %674 = arith.addf %670, %673 : vector<2x16xf32>
    %675 = vector.extract_strided_slice %667 {offsets = [0, 80], sizes = [2, 16], strides = [1, 1]} : vector<2x128xf32> to vector<2x16xf32>
    %676 = arith.mulf %675, %649 : vector<2x16xf32>
    %677 = vector.extract_strided_slice %667 {offsets = [0, 64], sizes = [2, 16], strides = [1, 1]} : vector<2x128xf32> to vector<2x16xf32>
    %678 = vector.extract_strided_slice %668 {offsets = [0, 96], sizes = [2, 16], strides = [1, 1]} : vector<2x128xf32> to vector<2x16xf32>
    %679 = arith.mulf %677, %678 : vector<2x16xf32>
    %680 = arith.addf %676, %679 : vector<2x16xf32>
    %681 = vector.extract_strided_slice %667 {offsets = [0, 48], sizes = [2, 16], strides = [1, 1]} : vector<2x128xf32> to vector<2x16xf32>
    %682 = vector.extract_strided_slice %667 {offsets = [0, 112], sizes = [2, 16], strides = [1, 1]} : vector<2x128xf32> to vector<2x16xf32>
    %683 = tpu.concatenate %681, %682 in 1 : vector<2x16xf32>, vector<2x16xf32> -> vector<2x32xf32>
    %684 = tpu.concatenate %674, %680 in 1 : vector<2x16xf32>, vector<2x16xf32> -> vector<2x32xf32>
    %685 = math.tanh %684 : vector<2x32xf32>
    %686 = arith.mulf %683, %685 : vector<2x32xf32>
    %687 = vector.extract_strided_slice %686 {offsets = [0, 0], sizes = [2, 16], strides = [1, 1]} : vector<2x32xf32> to vector<2x16xf32>
    %688 = vector.extract_strided_slice %686 {offsets = [0, 16], sizes = [2, 16], strides = [1, 1]} : vector<2x32xf32> to vector<2x16xf32>
    %689 = vector.extract_strided_slice %603 {offsets = [6, 0], sizes = [2, 64], strides = [1, 1]} : vector<16x128xf32> to vector<2x64xf32>
    %690 = vector.extract_strided_slice %603 {offsets = [8, 64], sizes = [2, 64], strides = [1, 1]} : vector<16x128xf32> to vector<2x64xf32>
    %691 = tpu.concatenate %689, %690 in 1 : vector<2x64xf32>, vector<2x64xf32> -> vector<2x128xf32>
    %cst_151 = arith.constant dense<0.000000e+00> : vector<2x128xf32>
    %692 = tpu.matmul %686, %599, %cst_151 {dimension_numbers = #tpu.dot_dimension_numbers<[1], [0], [0], [1], [0, 0, 1, 1], [], []>} : vector<2x32xf32>, vector<32x128xf32>, vector<2x128xf32> -> vector<2x128xf32>
    %693 = arith.addf %691, %692 : vector<2x128xf32>
    %694 = arith.negf %693 : vector<2x128xf32>
    %695 = math.exp %694 : vector<2x128xf32>
    %cst_152 = arith.constant 1.000000e+00 : f32
    %696 = vector.broadcast %cst_152 : f32 to vector<2x128xf32>
    %697 = arith.addf %696, %695 : vector<2x128xf32>
    %698 = arith.divf %696, %697 : vector<2x128xf32>
    %699 = math.tanh %693 : vector<2x128xf32>
    %700 = vector.extract_strided_slice %698 {offsets = [0, 16], sizes = [2, 16], strides = [1, 1]} : vector<2x128xf32> to vector<2x16xf32>
    %701 = arith.mulf %700, %674 : vector<2x16xf32>
    %702 = vector.extract_strided_slice %698 {offsets = [0, 0], sizes = [2, 16], strides = [1, 1]} : vector<2x128xf32> to vector<2x16xf32>
    %703 = vector.extract_strided_slice %699 {offsets = [0, 32], sizes = [2, 16], strides = [1, 1]} : vector<2x128xf32> to vector<2x16xf32>
    %704 = arith.mulf %702, %703 : vector<2x16xf32>
    %705 = arith.addf %701, %704 : vector<2x16xf32>
    %706 = vector.extract_strided_slice %698 {offsets = [0, 80], sizes = [2, 16], strides = [1, 1]} : vector<2x128xf32> to vector<2x16xf32>
    %707 = arith.mulf %706, %680 : vector<2x16xf32>
    %708 = vector.extract_strided_slice %698 {offsets = [0, 64], sizes = [2, 16], strides = [1, 1]} : vector<2x128xf32> to vector<2x16xf32>
    %709 = vector.extract_strided_slice %699 {offsets = [0, 96], sizes = [2, 16], strides = [1, 1]} : vector<2x128xf32> to vector<2x16xf32>
    %710 = arith.mulf %708, %709 : vector<2x16xf32>
    %711 = arith.addf %707, %710 : vector<2x16xf32>
    %712 = vector.extract_strided_slice %698 {offsets = [0, 48], sizes = [2, 16], strides = [1, 1]} : vector<2x128xf32> to vector<2x16xf32>
    %713 = vector.extract_strided_slice %698 {offsets = [0, 112], sizes = [2, 16], strides = [1, 1]} : vector<2x128xf32> to vector<2x16xf32>
    %714 = tpu.concatenate %712, %713 in 1 : vector<2x16xf32>, vector<2x16xf32> -> vector<2x32xf32>
    %715 = tpu.concatenate %705, %711 in 1 : vector<2x16xf32>, vector<2x16xf32> -> vector<2x32xf32>
    %716 = math.tanh %715 : vector<2x32xf32>
    %717 = arith.mulf %714, %716 : vector<2x32xf32>
    %718 = vector.extract_strided_slice %717 {offsets = [0, 0], sizes = [2, 16], strides = [1, 1]} : vector<2x32xf32> to vector<2x16xf32>
    %719 = vector.extract_strided_slice %717 {offsets = [0, 16], sizes = [2, 16], strides = [1, 1]} : vector<2x32xf32> to vector<2x16xf32>
    %720 = vector.extract_strided_slice %603 {offsets = [8, 0], sizes = [2, 64], strides = [1, 1]} : vector<16x128xf32> to vector<2x64xf32>
    %721 = vector.extract_strided_slice %603 {offsets = [6, 64], sizes = [2, 64], strides = [1, 1]} : vector<16x128xf32> to vector<2x64xf32>
    %722 = tpu.concatenate %720, %721 in 1 : vector<2x64xf32>, vector<2x64xf32> -> vector<2x128xf32>
    %cst_153 = arith.constant dense<0.000000e+00> : vector<2x128xf32>
    %723 = tpu.matmul %717, %599, %cst_153 {dimension_numbers = #tpu.dot_dimension_numbers<[1], [0], [0], [1], [0, 0, 1, 1], [], []>} : vector<2x32xf32>, vector<32x128xf32>, vector<2x128xf32> -> vector<2x128xf32>
    %724 = arith.addf %722, %723 : vector<2x128xf32>
    %725 = arith.negf %724 : vector<2x128xf32>
    %726 = math.exp %725 : vector<2x128xf32>
    %cst_154 = arith.constant 1.000000e+00 : f32
    %727 = vector.broadcast %cst_154 : f32 to vector<2x128xf32>
    %728 = arith.addf %727, %726 : vector<2x128xf32>
    %729 = arith.divf %727, %728 : vector<2x128xf32>
    %730 = math.tanh %724 : vector<2x128xf32>
    %731 = vector.extract_strided_slice %729 {offsets = [0, 16], sizes = [2, 16], strides = [1, 1]} : vector<2x128xf32> to vector<2x16xf32>
    %732 = arith.mulf %731, %705 : vector<2x16xf32>
    %733 = vector.extract_strided_slice %729 {offsets = [0, 0], sizes = [2, 16], strides = [1, 1]} : vector<2x128xf32> to vector<2x16xf32>
    %734 = vector.extract_strided_slice %730 {offsets = [0, 32], sizes = [2, 16], strides = [1, 1]} : vector<2x128xf32> to vector<2x16xf32>
    %735 = arith.mulf %733, %734 : vector<2x16xf32>
    %736 = arith.addf %732, %735 : vector<2x16xf32>
    %737 = vector.extract_strided_slice %729 {offsets = [0, 80], sizes = [2, 16], strides = [1, 1]} : vector<2x128xf32> to vector<2x16xf32>
    %738 = arith.mulf %737, %711 : vector<2x16xf32>
    %739 = vector.extract_strided_slice %729 {offsets = [0, 64], sizes = [2, 16], strides = [1, 1]} : vector<2x128xf32> to vector<2x16xf32>
    %740 = vector.extract_strided_slice %730 {offsets = [0, 96], sizes = [2, 16], strides = [1, 1]} : vector<2x128xf32> to vector<2x16xf32>
    %741 = arith.mulf %739, %740 : vector<2x16xf32>
    %742 = arith.addf %738, %741 : vector<2x16xf32>
    %743 = vector.extract_strided_slice %729 {offsets = [0, 48], sizes = [2, 16], strides = [1, 1]} : vector<2x128xf32> to vector<2x16xf32>
    %744 = vector.extract_strided_slice %729 {offsets = [0, 112], sizes = [2, 16], strides = [1, 1]} : vector<2x128xf32> to vector<2x16xf32>
    %745 = tpu.concatenate %743, %744 in 1 : vector<2x16xf32>, vector<2x16xf32> -> vector<2x32xf32>
    %746 = tpu.concatenate %736, %742 in 1 : vector<2x16xf32>, vector<2x16xf32> -> vector<2x32xf32>
    %747 = math.tanh %746 : vector<2x32xf32>
    %748 = arith.mulf %745, %747 : vector<2x32xf32>
    %749 = vector.extract_strided_slice %748 {offsets = [0, 0], sizes = [2, 16], strides = [1, 1]} : vector<2x32xf32> to vector<2x16xf32>
    %750 = vector.extract_strided_slice %748 {offsets = [0, 16], sizes = [2, 16], strides = [1, 1]} : vector<2x32xf32> to vector<2x16xf32>
    %751 = vector.extract_strided_slice %603 {offsets = [10, 0], sizes = [2, 64], strides = [1, 1]} : vector<16x128xf32> to vector<2x64xf32>
    %752 = vector.extract_strided_slice %603 {offsets = [4, 64], sizes = [2, 64], strides = [1, 1]} : vector<16x128xf32> to vector<2x64xf32>
    %753 = tpu.concatenate %751, %752 in 1 : vector<2x64xf32>, vector<2x64xf32> -> vector<2x128xf32>
    %cst_155 = arith.constant dense<0.000000e+00> : vector<2x128xf32>
    %754 = tpu.matmul %748, %599, %cst_155 {dimension_numbers = #tpu.dot_dimension_numbers<[1], [0], [0], [1], [0, 0, 1, 1], [], []>} : vector<2x32xf32>, vector<32x128xf32>, vector<2x128xf32> -> vector<2x128xf32>
    %755 = arith.addf %753, %754 : vector<2x128xf32>
    %756 = arith.negf %755 : vector<2x128xf32>
    %757 = math.exp %756 : vector<2x128xf32>
    %cst_156 = arith.constant 1.000000e+00 : f32
    %758 = vector.broadcast %cst_156 : f32 to vector<2x128xf32>
    %759 = arith.addf %758, %757 : vector<2x128xf32>
    %760 = arith.divf %758, %759 : vector<2x128xf32>
    %761 = math.tanh %755 : vector<2x128xf32>
    %762 = vector.extract_strided_slice %760 {offsets = [0, 16], sizes = [2, 16], strides = [1, 1]} : vector<2x128xf32> to vector<2x16xf32>
    %763 = arith.mulf %762, %736 : vector<2x16xf32>
    %764 = vector.extract_strided_slice %760 {offsets = [0, 0], sizes = [2, 16], strides = [1, 1]} : vector<2x128xf32> to vector<2x16xf32>
    %765 = vector.extract_strided_slice %761 {offsets = [0, 32], sizes = [2, 16], strides = [1, 1]} : vector<2x128xf32> to vector<2x16xf32>
    %766 = arith.mulf %764, %765 : vector<2x16xf32>
    %767 = arith.addf %763, %766 : vector<2x16xf32>
    %768 = vector.extract_strided_slice %760 {offsets = [0, 80], sizes = [2, 16], strides = [1, 1]} : vector<2x128xf32> to vector<2x16xf32>
    %769 = arith.mulf %768, %742 : vector<2x16xf32>
    %770 = vector.extract_strided_slice %760 {offsets = [0, 64], sizes = [2, 16], strides = [1, 1]} : vector<2x128xf32> to vector<2x16xf32>
    %771 = vector.extract_strided_slice %761 {offsets = [0, 96], sizes = [2, 16], strides = [1, 1]} : vector<2x128xf32> to vector<2x16xf32>
    %772 = arith.mulf %770, %771 : vector<2x16xf32>
    %773 = arith.addf %769, %772 : vector<2x16xf32>
    %774 = vector.extract_strided_slice %760 {offsets = [0, 48], sizes = [2, 16], strides = [1, 1]} : vector<2x128xf32> to vector<2x16xf32>
    %775 = vector.extract_strided_slice %760 {offsets = [0, 112], sizes = [2, 16], strides = [1, 1]} : vector<2x128xf32> to vector<2x16xf32>
    %776 = tpu.concatenate %774, %775 in 1 : vector<2x16xf32>, vector<2x16xf32> -> vector<2x32xf32>
    %777 = tpu.concatenate %767, %773 in 1 : vector<2x16xf32>, vector<2x16xf32> -> vector<2x32xf32>
    %778 = math.tanh %777 : vector<2x32xf32>
    %779 = arith.mulf %776, %778 : vector<2x32xf32>
    %780 = vector.extract_strided_slice %779 {offsets = [0, 0], sizes = [2, 16], strides = [1, 1]} : vector<2x32xf32> to vector<2x16xf32>
    %781 = vector.extract_strided_slice %779 {offsets = [0, 16], sizes = [2, 16], strides = [1, 1]} : vector<2x32xf32> to vector<2x16xf32>
    %782 = vector.extract_strided_slice %603 {offsets = [12, 0], sizes = [2, 64], strides = [1, 1]} : vector<16x128xf32> to vector<2x64xf32>
    %783 = vector.extract_strided_slice %603 {offsets = [2, 64], sizes = [2, 64], strides = [1, 1]} : vector<16x128xf32> to vector<2x64xf32>
    %784 = tpu.concatenate %782, %783 in 1 : vector<2x64xf32>, vector<2x64xf32> -> vector<2x128xf32>
    %cst_157 = arith.constant dense<0.000000e+00> : vector<2x128xf32>
    %785 = tpu.matmul %779, %599, %cst_157 {dimension_numbers = #tpu.dot_dimension_numbers<[1], [0], [0], [1], [0, 0, 1, 1], [], []>} : vector<2x32xf32>, vector<32x128xf32>, vector<2x128xf32> -> vector<2x128xf32>
    %786 = arith.addf %784, %785 : vector<2x128xf32>
    %787 = arith.negf %786 : vector<2x128xf32>
    %788 = math.exp %787 : vector<2x128xf32>
    %cst_158 = arith.constant 1.000000e+00 : f32
    %789 = vector.broadcast %cst_158 : f32 to vector<2x128xf32>
    %790 = arith.addf %789, %788 : vector<2x128xf32>
    %791 = arith.divf %789, %790 : vector<2x128xf32>
    %792 = math.tanh %786 : vector<2x128xf32>
    %793 = vector.extract_strided_slice %791 {offsets = [0, 16], sizes = [2, 16], strides = [1, 1]} : vector<2x128xf32> to vector<2x16xf32>
    %794 = arith.mulf %793, %767 : vector<2x16xf32>
    %795 = vector.extract_strided_slice %791 {offsets = [0, 0], sizes = [2, 16], strides = [1, 1]} : vector<2x128xf32> to vector<2x16xf32>
    %796 = vector.extract_strided_slice %792 {offsets = [0, 32], sizes = [2, 16], strides = [1, 1]} : vector<2x128xf32> to vector<2x16xf32>
    %797 = arith.mulf %795, %796 : vector<2x16xf32>
    %798 = arith.addf %794, %797 : vector<2x16xf32>
    %799 = vector.extract_strided_slice %791 {offsets = [0, 80], sizes = [2, 16], strides = [1, 1]} : vector<2x128xf32> to vector<2x16xf32>
    %800 = arith.mulf %799, %773 : vector<2x16xf32>
    %801 = vector.extract_strided_slice %791 {offsets = [0, 64], sizes = [2, 16], strides = [1, 1]} : vector<2x128xf32> to vector<2x16xf32>
    %802 = vector.extract_strided_slice %792 {offsets = [0, 96], sizes = [2, 16], strides = [1, 1]} : vector<2x128xf32> to vector<2x16xf32>
    %803 = arith.mulf %801, %802 : vector<2x16xf32>
    %804 = arith.addf %800, %803 : vector<2x16xf32>
    %805 = vector.extract_strided_slice %791 {offsets = [0, 48], sizes = [2, 16], strides = [1, 1]} : vector<2x128xf32> to vector<2x16xf32>
    %806 = vector.extract_strided_slice %791 {offsets = [0, 112], sizes = [2, 16], strides = [1, 1]} : vector<2x128xf32> to vector<2x16xf32>
    %807 = tpu.concatenate %805, %806 in 1 : vector<2x16xf32>, vector<2x16xf32> -> vector<2x32xf32>
    %808 = tpu.concatenate %798, %804 in 1 : vector<2x16xf32>, vector<2x16xf32> -> vector<2x32xf32>
    %809 = math.tanh %808 : vector<2x32xf32>
    %810 = arith.mulf %807, %809 : vector<2x32xf32>
    %811 = vector.extract_strided_slice %810 {offsets = [0, 0], sizes = [2, 16], strides = [1, 1]} : vector<2x32xf32> to vector<2x16xf32>
    %812 = vector.extract_strided_slice %810 {offsets = [0, 16], sizes = [2, 16], strides = [1, 1]} : vector<2x32xf32> to vector<2x16xf32>
    %813 = vector.extract_strided_slice %603 {offsets = [14, 0], sizes = [2, 64], strides = [1, 1]} : vector<16x128xf32> to vector<2x64xf32>
    %814 = vector.extract_strided_slice %603 {offsets = [0, 64], sizes = [2, 64], strides = [1, 1]} : vector<16x128xf32> to vector<2x64xf32>
    %815 = tpu.concatenate %813, %814 in 1 : vector<2x64xf32>, vector<2x64xf32> -> vector<2x128xf32>
    %cst_159 = arith.constant dense<0.000000e+00> : vector<2x128xf32>
    %816 = tpu.matmul %810, %599, %cst_159 {dimension_numbers = #tpu.dot_dimension_numbers<[1], [0], [0], [1], [0, 0, 1, 1], [], []>} : vector<2x32xf32>, vector<32x128xf32>, vector<2x128xf32> -> vector<2x128xf32>
    %817 = arith.addf %815, %816 : vector<2x128xf32>
    %818 = arith.negf %817 : vector<2x128xf32>
    %819 = math.exp %818 : vector<2x128xf32>
    %cst_160 = arith.constant 1.000000e+00 : f32
    %820 = vector.broadcast %cst_160 : f32 to vector<2x128xf32>
    %821 = arith.addf %820, %819 : vector<2x128xf32>
    %822 = arith.divf %820, %821 : vector<2x128xf32>
    %823 = math.tanh %817 : vector<2x128xf32>
    %824 = vector.extract_strided_slice %822 {offsets = [0, 16], sizes = [2, 16], strides = [1, 1]} : vector<2x128xf32> to vector<2x16xf32>
    %825 = arith.mulf %824, %798 : vector<2x16xf32>
    %826 = vector.extract_strided_slice %822 {offsets = [0, 0], sizes = [2, 16], strides = [1, 1]} : vector<2x128xf32> to vector<2x16xf32>
    %827 = vector.extract_strided_slice %823 {offsets = [0, 32], sizes = [2, 16], strides = [1, 1]} : vector<2x128xf32> to vector<2x16xf32>
    %828 = arith.mulf %826, %827 : vector<2x16xf32>
    %829 = arith.addf %825, %828 : vector<2x16xf32>
    %830 = vector.extract_strided_slice %822 {offsets = [0, 80], sizes = [2, 16], strides = [1, 1]} : vector<2x128xf32> to vector<2x16xf32>
    %831 = arith.mulf %830, %804 : vector<2x16xf32>
    %832 = vector.extract_strided_slice %822 {offsets = [0, 64], sizes = [2, 16], strides = [1, 1]} : vector<2x128xf32> to vector<2x16xf32>
    %833 = vector.extract_strided_slice %823 {offsets = [0, 96], sizes = [2, 16], strides = [1, 1]} : vector<2x128xf32> to vector<2x16xf32>
    %834 = arith.mulf %832, %833 : vector<2x16xf32>
    %835 = arith.addf %831, %834 : vector<2x16xf32>
    %836 = vector.extract_strided_slice %822 {offsets = [0, 48], sizes = [2, 16], strides = [1, 1]} : vector<2x128xf32> to vector<2x16xf32>
    %837 = vector.extract_strided_slice %822 {offsets = [0, 112], sizes = [2, 16], strides = [1, 1]} : vector<2x128xf32> to vector<2x16xf32>
    %838 = tpu.concatenate %836, %837 in 1 : vector<2x16xf32>, vector<2x16xf32> -> vector<2x32xf32>
    %839 = tpu.concatenate %829, %835 in 1 : vector<2x16xf32>, vector<2x16xf32> -> vector<2x32xf32>
    %840 = math.tanh %839 : vector<2x32xf32>
    %841 = arith.mulf %838, %840 : vector<2x32xf32>
    %842 = vector.extract_strided_slice %841 {offsets = [0, 0], sizes = [2, 16], strides = [1, 1]} : vector<2x32xf32> to vector<2x16xf32>
    %843 = vector.extract_strided_slice %841 {offsets = [0, 16], sizes = [2, 16], strides = [1, 1]} : vector<2x32xf32> to vector<2x16xf32>
    %844 = tpu.concatenate %625, %656, %687, %718, %749, %780, %811, %842 in 0 : vector<2x16xf32>, vector<2x16xf32>, vector<2x16xf32>, vector<2x16xf32>, vector<2x16xf32>, vector<2x16xf32>, vector<2x16xf32>, vector<2x16xf32> -> vector<16x16xf32>
    %845 = tpu.concatenate %843, %812, %781, %750, %719, %688, %657, %626 in 0 : vector<2x16xf32>, vector<2x16xf32>, vector<2x16xf32>, vector<2x16xf32>, vector<2x16xf32>, vector<2x16xf32>, vector<2x16xf32>, vector<2x16xf32> -> vector<16x16xf32>
    %846 = tpu.concatenate %844, %845 in 1 : vector<16x16xf32>, vector<16x16xf32> -> vector<16x32xf32>
    %c0_161 = arith.constant 0 : index
    %c0_162 = arith.constant 0 : index
    %847 = vector.load %arg10[%c0_161, %c0_162] : memref<32x5xf32, #tpu.memory_space<vmem>>, vector<32x5xf32>
    %cst_163 = arith.constant dense<0.000000e+00> : vector<16x5xf32>
    %848 = tpu.matmul %846, %847, %cst_163 {dimension_numbers = #tpu.dot_dimension_numbers<[1], [0], [0], [1], [0, 0, 1, 1], [], []>} : vector<16x32xf32>, vector<32x5xf32>, vector<16x5xf32> -> vector<16x5xf32>
    %849 = vector.extract_strided_slice %0 {offsets = [2, 0], sizes = [1, 5], strides = [1, 1]} : vector<16x128xf32> to vector<1x5xf32>
    %850 = vector.broadcast %849 : vector<1x5xf32> to vector<16x5xf32>
    %851 = arith.addf %848, %850 : vector<16x5xf32>
    %cst_164 = arith.constant dense<0xFF800000> : vector<16xf32>
    %852 = vector.multi_reduction <maximumf>, %851, %cst_164 [1] : vector<16x5xf32> to vector<16xf32>
    %853 = vector.shape_cast %852 : vector<16xf32> to vector<16x1xf32>
    %854 = vector.broadcast %853 : vector<16x1xf32> to vector<16x5xf32>
    %855 = arith.subf %851, %854 : vector<16x5xf32>
    %856 = math.exp %855 : vector<16x5xf32>
    %cst_165 = arith.constant dense<0.000000e+00> : vector<16xf32>
    %857 = vector.multi_reduction <add>, %856, %cst_165 [1] : vector<16x5xf32> to vector<16xf32>
    %858 = vector.shape_cast %857 : vector<16xf32> to vector<16x1xf32>
    %859 = math.log %858 : vector<16x1xf32>
    %860 = vector.broadcast %859 : vector<16x1xf32> to vector<16x5xf32>
    %861 = arith.subf %855, %860 : vector<16x5xf32>
    %c0_166 = arith.constant 0 : index
    %c0_167 = arith.constant 0 : index
    %862 = vector.load %arg3[%c0_166, %c0_167] : memref<2x8xf32, #tpu.memory_space<vmem>>, vector<2x8xf32>
    %863 = tpu.iota {dimensions = array<i32: 1>} : vector<2x5xi32>
    %864 = tpu.iota {dimensions = array<i32: 2>} : vector<2x5x5xi32>
    %865 = vector.extract_strided_slice %0 {offsets = [8, 0], sizes = [5, 5], strides = [1, 1]} : vector<16x128xf32> to vector<5x5xf32>
    %866 = vector.extract_strided_slice %0 {offsets = [3, 0], sizes = [1, 5], strides = [1, 1]} : vector<16x128xf32> to vector<1x5xf32>
    %867 = vector.extract_strided_slice %0 {offsets = [4, 0], sizes = [1, 5], strides = [1, 1]} : vector<16x128xf32> to vector<1x5xf32>
    %868 = vector.extract_strided_slice %861 {offsets = [0, 0], sizes = [2, 5], strides = [1, 1]} : vector<16x5xf32> to vector<2x5xf32>
    %869 = vector.broadcast %866 : vector<1x5xf32> to vector<2x5xf32>
    %870 = arith.addf %868, %869 : vector<2x5xf32>
    %871 = vector.extract_strided_slice %861 {offsets = [2, 0], sizes = [2, 5], strides = [1, 1]} : vector<16x5xf32> to vector<2x5xf32>
    %872 = vector.extract_strided_slice %862 {offsets = [0, 1], sizes = [2, 1], strides = [1, 1]} : vector<2x8xf32> to vector<2x1xf32>
    %873 = vector.shape_cast %870 : vector<2x5xf32> to vector<2x1x5xf32>
    %874 = vector.shape_cast %865 : vector<5x5xf32> to vector<1x5x5xf32>
    %875 = vector.broadcast %873 : vector<2x1x5xf32> to vector<2x5x5xf32>
    %876 = vector.broadcast %874 : vector<1x5x5xf32> to vector<2x5x5xf32>
    %877 = arith.addf %875, %876 : vector<2x5x5xf32>
    %cst_168 = arith.constant dense<0xFF800000> : vector<2x5xf32>
    %878 = vector.multi_reduction <maximumf>, %877, %cst_168 [2] : vector<2x5x5xf32> to vector<2x5xf32>
    %879 = vector.shape_cast %878 : vector<2x5xf32> to vector<2x5x1xf32>
    %880 = vector.broadcast %879 : vector<2x5x1xf32> to vector<2x5x5xf32>
    %881 = arith.cmpf oge, %877, %880 : vector<2x5x5xf32>
    %c5_i32 = arith.constant 5 : i32
    %882 = vector.broadcast %c5_i32 : i32 to vector<2x5x5xi32>
    %883 = arith.select %881, %864, %882 : vector<2x5x5xi1>, vector<2x5x5xi32>
    %cst_169 = arith.constant dense<2147483647> : vector<2x5xi32>
    %884 = vector.multi_reduction <minsi>, %883, %cst_169 [2] : vector<2x5x5xi32> to vector<2x5xi32>
    %cst_170 = arith.constant 5.000000e-01 : f32
    %885 = vector.broadcast %cst_170 : f32 to vector<2x1xf32>
    %886 = arith.cmpf ogt, %872, %885 : vector<2x1xf32>
    %887 = vector.shape_cast %886 : vector<2x1xi1> to vector<2x1xi1>
    %888 = vector.broadcast %887 : vector<2x1xi1> to vector<2x5xi1>
    %889 = arith.select %888, %884, %863 : vector<2x5xi1>, vector<2x5xi32>
    %cst_171 = arith.constant 5.000000e-01 : f32
    %890 = vector.broadcast %cst_171 : f32 to vector<2x1xf32>
    %891 = arith.cmpf ogt, %872, %890 : vector<2x1xf32>
    %892 = arith.addf %878, %871 : vector<2x5xf32>
    %893 = vector.shape_cast %891 : vector<2x1xi1> to vector<2x1xi1>
    %894 = vector.broadcast %893 : vector<2x1xi1> to vector<2x5xi1>
    %895 = arith.select %894, %892, %870 : vector<2x5xi1>, vector<2x5xf32>
    %896 = vector.extract_strided_slice %861 {offsets = [4, 0], sizes = [2, 5], strides = [1, 1]} : vector<16x5xf32> to vector<2x5xf32>
    %897 = vector.extract_strided_slice %862 {offsets = [0, 2], sizes = [2, 1], strides = [1, 1]} : vector<2x8xf32> to vector<2x1xf32>
    %898 = vector.shape_cast %895 : vector<2x5xf32> to vector<2x1x5xf32>
    %899 = vector.shape_cast %865 : vector<5x5xf32> to vector<1x5x5xf32>
    %900 = vector.broadcast %898 : vector<2x1x5xf32> to vector<2x5x5xf32>
    %901 = vector.broadcast %899 : vector<1x5x5xf32> to vector<2x5x5xf32>
    %902 = arith.addf %900, %901 : vector<2x5x5xf32>
    %cst_172 = arith.constant dense<0xFF800000> : vector<2x5xf32>
    %903 = vector.multi_reduction <maximumf>, %902, %cst_172 [2] : vector<2x5x5xf32> to vector<2x5xf32>
    %904 = vector.shape_cast %903 : vector<2x5xf32> to vector<2x5x1xf32>
    %905 = vector.broadcast %904 : vector<2x5x1xf32> to vector<2x5x5xf32>
    %906 = arith.cmpf oge, %902, %905 : vector<2x5x5xf32>
    %c5_i32_173 = arith.constant 5 : i32
    %907 = vector.broadcast %c5_i32_173 : i32 to vector<2x5x5xi32>
    %908 = arith.select %906, %864, %907 : vector<2x5x5xi1>, vector<2x5x5xi32>
    %cst_174 = arith.constant dense<2147483647> : vector<2x5xi32>
    %909 = vector.multi_reduction <minsi>, %908, %cst_174 [2] : vector<2x5x5xi32> to vector<2x5xi32>
    %cst_175 = arith.constant 5.000000e-01 : f32
    %910 = vector.broadcast %cst_175 : f32 to vector<2x1xf32>
    %911 = arith.cmpf ogt, %897, %910 : vector<2x1xf32>
    %912 = vector.shape_cast %911 : vector<2x1xi1> to vector<2x1xi1>
    %913 = vector.broadcast %912 : vector<2x1xi1> to vector<2x5xi1>
    %914 = arith.select %913, %909, %863 : vector<2x5xi1>, vector<2x5xi32>
    %cst_176 = arith.constant 5.000000e-01 : f32
    %915 = vector.broadcast %cst_176 : f32 to vector<2x1xf32>
    %916 = arith.cmpf ogt, %897, %915 : vector<2x1xf32>
    %917 = arith.addf %903, %896 : vector<2x5xf32>
    %918 = vector.shape_cast %916 : vector<2x1xi1> to vector<2x1xi1>
    %919 = vector.broadcast %918 : vector<2x1xi1> to vector<2x5xi1>
    %920 = arith.select %919, %917, %895 : vector<2x5xi1>, vector<2x5xf32>
    %921 = vector.extract_strided_slice %861 {offsets = [6, 0], sizes = [2, 5], strides = [1, 1]} : vector<16x5xf32> to vector<2x5xf32>
    %922 = vector.extract_strided_slice %862 {offsets = [0, 3], sizes = [2, 1], strides = [1, 1]} : vector<2x8xf32> to vector<2x1xf32>
    %923 = vector.shape_cast %920 : vector<2x5xf32> to vector<2x1x5xf32>
    %924 = vector.shape_cast %865 : vector<5x5xf32> to vector<1x5x5xf32>
    %925 = vector.broadcast %923 : vector<2x1x5xf32> to vector<2x5x5xf32>
    %926 = vector.broadcast %924 : vector<1x5x5xf32> to vector<2x5x5xf32>
    %927 = arith.addf %925, %926 : vector<2x5x5xf32>
    %cst_177 = arith.constant dense<0xFF800000> : vector<2x5xf32>
    %928 = vector.multi_reduction <maximumf>, %927, %cst_177 [2] : vector<2x5x5xf32> to vector<2x5xf32>
    %929 = vector.shape_cast %928 : vector<2x5xf32> to vector<2x5x1xf32>
    %930 = vector.broadcast %929 : vector<2x5x1xf32> to vector<2x5x5xf32>
    %931 = arith.cmpf oge, %927, %930 : vector<2x5x5xf32>
    %c5_i32_178 = arith.constant 5 : i32
    %932 = vector.broadcast %c5_i32_178 : i32 to vector<2x5x5xi32>
    %933 = arith.select %931, %864, %932 : vector<2x5x5xi1>, vector<2x5x5xi32>
    %cst_179 = arith.constant dense<2147483647> : vector<2x5xi32>
    %934 = vector.multi_reduction <minsi>, %933, %cst_179 [2] : vector<2x5x5xi32> to vector<2x5xi32>
    %cst_180 = arith.constant 5.000000e-01 : f32
    %935 = vector.broadcast %cst_180 : f32 to vector<2x1xf32>
    %936 = arith.cmpf ogt, %922, %935 : vector<2x1xf32>
    %937 = vector.shape_cast %936 : vector<2x1xi1> to vector<2x1xi1>
    %938 = vector.broadcast %937 : vector<2x1xi1> to vector<2x5xi1>
    %939 = arith.select %938, %934, %863 : vector<2x5xi1>, vector<2x5xi32>
    %cst_181 = arith.constant 5.000000e-01 : f32
    %940 = vector.broadcast %cst_181 : f32 to vector<2x1xf32>
    %941 = arith.cmpf ogt, %922, %940 : vector<2x1xf32>
    %942 = arith.addf %928, %921 : vector<2x5xf32>
    %943 = vector.shape_cast %941 : vector<2x1xi1> to vector<2x1xi1>
    %944 = vector.broadcast %943 : vector<2x1xi1> to vector<2x5xi1>
    %945 = arith.select %944, %942, %920 : vector<2x5xi1>, vector<2x5xf32>
    %946 = vector.extract_strided_slice %861 {offsets = [8, 0], sizes = [2, 5], strides = [1, 1]} : vector<16x5xf32> to vector<2x5xf32>
    %947 = vector.extract_strided_slice %862 {offsets = [0, 4], sizes = [2, 1], strides = [1, 1]} : vector<2x8xf32> to vector<2x1xf32>
    %948 = vector.shape_cast %945 : vector<2x5xf32> to vector<2x1x5xf32>
    %949 = vector.shape_cast %865 : vector<5x5xf32> to vector<1x5x5xf32>
    %950 = vector.broadcast %948 : vector<2x1x5xf32> to vector<2x5x5xf32>
    %951 = vector.broadcast %949 : vector<1x5x5xf32> to vector<2x5x5xf32>
    %952 = arith.addf %950, %951 : vector<2x5x5xf32>
    %cst_182 = arith.constant dense<0xFF800000> : vector<2x5xf32>
    %953 = vector.multi_reduction <maximumf>, %952, %cst_182 [2] : vector<2x5x5xf32> to vector<2x5xf32>
    %954 = vector.shape_cast %953 : vector<2x5xf32> to vector<2x5x1xf32>
    %955 = vector.broadcast %954 : vector<2x5x1xf32> to vector<2x5x5xf32>
    %956 = arith.cmpf oge, %952, %955 : vector<2x5x5xf32>
    %c5_i32_183 = arith.constant 5 : i32
    %957 = vector.broadcast %c5_i32_183 : i32 to vector<2x5x5xi32>
    %958 = arith.select %956, %864, %957 : vector<2x5x5xi1>, vector<2x5x5xi32>
    %cst_184 = arith.constant dense<2147483647> : vector<2x5xi32>
    %959 = vector.multi_reduction <minsi>, %958, %cst_184 [2] : vector<2x5x5xi32> to vector<2x5xi32>
    %cst_185 = arith.constant 5.000000e-01 : f32
    %960 = vector.broadcast %cst_185 : f32 to vector<2x1xf32>
    %961 = arith.cmpf ogt, %947, %960 : vector<2x1xf32>
    %962 = vector.shape_cast %961 : vector<2x1xi1> to vector<2x1xi1>
    %963 = vector.broadcast %962 : vector<2x1xi1> to vector<2x5xi1>
    %964 = arith.select %963, %959, %863 : vector<2x5xi1>, vector<2x5xi32>
    %cst_186 = arith.constant 5.000000e-01 : f32
    %965 = vector.broadcast %cst_186 : f32 to vector<2x1xf32>
    %966 = arith.cmpf ogt, %947, %965 : vector<2x1xf32>
    %967 = arith.addf %953, %946 : vector<2x5xf32>
    %968 = vector.shape_cast %966 : vector<2x1xi1> to vector<2x1xi1>
    %969 = vector.broadcast %968 : vector<2x1xi1> to vector<2x5xi1>
    %970 = arith.select %969, %967, %945 : vector<2x5xi1>, vector<2x5xf32>
    %971 = vector.extract_strided_slice %861 {offsets = [10, 0], sizes = [2, 5], strides = [1, 1]} : vector<16x5xf32> to vector<2x5xf32>
    %972 = vector.extract_strided_slice %862 {offsets = [0, 5], sizes = [2, 1], strides = [1, 1]} : vector<2x8xf32> to vector<2x1xf32>
    %973 = vector.shape_cast %970 : vector<2x5xf32> to vector<2x1x5xf32>
    %974 = vector.shape_cast %865 : vector<5x5xf32> to vector<1x5x5xf32>
    %975 = vector.broadcast %973 : vector<2x1x5xf32> to vector<2x5x5xf32>
    %976 = vector.broadcast %974 : vector<1x5x5xf32> to vector<2x5x5xf32>
    %977 = arith.addf %975, %976 : vector<2x5x5xf32>
    %cst_187 = arith.constant dense<0xFF800000> : vector<2x5xf32>
    %978 = vector.multi_reduction <maximumf>, %977, %cst_187 [2] : vector<2x5x5xf32> to vector<2x5xf32>
    %979 = vector.shape_cast %978 : vector<2x5xf32> to vector<2x5x1xf32>
    %980 = vector.broadcast %979 : vector<2x5x1xf32> to vector<2x5x5xf32>
    %981 = arith.cmpf oge, %977, %980 : vector<2x5x5xf32>
    %c5_i32_188 = arith.constant 5 : i32
    %982 = vector.broadcast %c5_i32_188 : i32 to vector<2x5x5xi32>
    %983 = arith.select %981, %864, %982 : vector<2x5x5xi1>, vector<2x5x5xi32>
    %cst_189 = arith.constant dense<2147483647> : vector<2x5xi32>
    %984 = vector.multi_reduction <minsi>, %983, %cst_189 [2] : vector<2x5x5xi32> to vector<2x5xi32>
    %cst_190 = arith.constant 5.000000e-01 : f32
    %985 = vector.broadcast %cst_190 : f32 to vector<2x1xf32>
    %986 = arith.cmpf ogt, %972, %985 : vector<2x1xf32>
    %987 = vector.shape_cast %986 : vector<2x1xi1> to vector<2x1xi1>
    %988 = vector.broadcast %987 : vector<2x1xi1> to vector<2x5xi1>
    %989 = arith.select %988, %984, %863 : vector<2x5xi1>, vector<2x5xi32>
    %cst_191 = arith.constant 5.000000e-01 : f32
    %990 = vector.broadcast %cst_191 : f32 to vector<2x1xf32>
    %991 = arith.cmpf ogt, %972, %990 : vector<2x1xf32>
    %992 = arith.addf %978, %971 : vector<2x5xf32>
    %993 = vector.shape_cast %991 : vector<2x1xi1> to vector<2x1xi1>
    %994 = vector.broadcast %993 : vector<2x1xi1> to vector<2x5xi1>
    %995 = arith.select %994, %992, %970 : vector<2x5xi1>, vector<2x5xf32>
    %996 = vector.extract_strided_slice %861 {offsets = [12, 0], sizes = [2, 5], strides = [1, 1]} : vector<16x5xf32> to vector<2x5xf32>
    %997 = vector.extract_strided_slice %862 {offsets = [0, 6], sizes = [2, 1], strides = [1, 1]} : vector<2x8xf32> to vector<2x1xf32>
    %998 = vector.shape_cast %995 : vector<2x5xf32> to vector<2x1x5xf32>
    %999 = vector.shape_cast %865 : vector<5x5xf32> to vector<1x5x5xf32>
    %1000 = vector.broadcast %998 : vector<2x1x5xf32> to vector<2x5x5xf32>
    %1001 = vector.broadcast %999 : vector<1x5x5xf32> to vector<2x5x5xf32>
    %1002 = arith.addf %1000, %1001 : vector<2x5x5xf32>
    %cst_192 = arith.constant dense<0xFF800000> : vector<2x5xf32>
    %1003 = vector.multi_reduction <maximumf>, %1002, %cst_192 [2] : vector<2x5x5xf32> to vector<2x5xf32>
    %1004 = vector.shape_cast %1003 : vector<2x5xf32> to vector<2x5x1xf32>
    %1005 = vector.broadcast %1004 : vector<2x5x1xf32> to vector<2x5x5xf32>
    %1006 = arith.cmpf oge, %1002, %1005 : vector<2x5x5xf32>
    %c5_i32_193 = arith.constant 5 : i32
    %1007 = vector.broadcast %c5_i32_193 : i32 to vector<2x5x5xi32>
    %1008 = arith.select %1006, %864, %1007 : vector<2x5x5xi1>, vector<2x5x5xi32>
    %cst_194 = arith.constant dense<2147483647> : vector<2x5xi32>
    %1009 = vector.multi_reduction <minsi>, %1008, %cst_194 [2] : vector<2x5x5xi32> to vector<2x5xi32>
    %cst_195 = arith.constant 5.000000e-01 : f32
    %1010 = vector.broadcast %cst_195 : f32 to vector<2x1xf32>
    %1011 = arith.cmpf ogt, %997, %1010 : vector<2x1xf32>
    %1012 = vector.shape_cast %1011 : vector<2x1xi1> to vector<2x1xi1>
    %1013 = vector.broadcast %1012 : vector<2x1xi1> to vector<2x5xi1>
    %1014 = arith.select %1013, %1009, %863 : vector<2x5xi1>, vector<2x5xi32>
    %cst_196 = arith.constant 5.000000e-01 : f32
    %1015 = vector.broadcast %cst_196 : f32 to vector<2x1xf32>
    %1016 = arith.cmpf ogt, %997, %1015 : vector<2x1xf32>
    %1017 = arith.addf %1003, %996 : vector<2x5xf32>
    %1018 = vector.shape_cast %1016 : vector<2x1xi1> to vector<2x1xi1>
    %1019 = vector.broadcast %1018 : vector<2x1xi1> to vector<2x5xi1>
    %1020 = arith.select %1019, %1017, %995 : vector<2x5xi1>, vector<2x5xf32>
    %1021 = vector.extract_strided_slice %861 {offsets = [14, 0], sizes = [2, 5], strides = [1, 1]} : vector<16x5xf32> to vector<2x5xf32>
    %1022 = vector.extract_strided_slice %862 {offsets = [0, 7], sizes = [2, 1], strides = [1, 1]} : vector<2x8xf32> to vector<2x1xf32>
    %1023 = vector.shape_cast %1020 : vector<2x5xf32> to vector<2x1x5xf32>
    %1024 = vector.shape_cast %865 : vector<5x5xf32> to vector<1x5x5xf32>
    %1025 = vector.broadcast %1023 : vector<2x1x5xf32> to vector<2x5x5xf32>
    %1026 = vector.broadcast %1024 : vector<1x5x5xf32> to vector<2x5x5xf32>
    %1027 = arith.addf %1025, %1026 : vector<2x5x5xf32>
    %cst_197 = arith.constant dense<0xFF800000> : vector<2x5xf32>
    %1028 = vector.multi_reduction <maximumf>, %1027, %cst_197 [2] : vector<2x5x5xf32> to vector<2x5xf32>
    %1029 = vector.shape_cast %1028 : vector<2x5xf32> to vector<2x5x1xf32>
    %1030 = vector.broadcast %1029 : vector<2x5x1xf32> to vector<2x5x5xf32>
    %1031 = arith.cmpf oge, %1027, %1030 : vector<2x5x5xf32>
    %c5_i32_198 = arith.constant 5 : i32
    %1032 = vector.broadcast %c5_i32_198 : i32 to vector<2x5x5xi32>
    %1033 = arith.select %1031, %864, %1032 : vector<2x5x5xi1>, vector<2x5x5xi32>
    %cst_199 = arith.constant dense<2147483647> : vector<2x5xi32>
    %1034 = vector.multi_reduction <minsi>, %1033, %cst_199 [2] : vector<2x5x5xi32> to vector<2x5xi32>
    %cst_200 = arith.constant 5.000000e-01 : f32
    %1035 = vector.broadcast %cst_200 : f32 to vector<2x1xf32>
    %1036 = arith.cmpf ogt, %1022, %1035 : vector<2x1xf32>
    %1037 = vector.shape_cast %1036 : vector<2x1xi1> to vector<2x1xi1>
    %1038 = vector.broadcast %1037 : vector<2x1xi1> to vector<2x5xi1>
    %1039 = arith.select %1038, %1034, %863 : vector<2x5xi1>, vector<2x5xi32>
    %cst_201 = arith.constant 5.000000e-01 : f32
    %1040 = vector.broadcast %cst_201 : f32 to vector<2x1xf32>
    %1041 = arith.cmpf ogt, %1022, %1040 : vector<2x1xf32>
    %1042 = arith.addf %1028, %1021 : vector<2x5xf32>
    %1043 = vector.shape_cast %1041 : vector<2x1xi1> to vector<2x1xi1>
    %1044 = vector.broadcast %1043 : vector<2x1xi1> to vector<2x5xi1>
    %1045 = arith.select %1044, %1042, %1020 : vector<2x5xi1>, vector<2x5xf32>
    %1046 = vector.broadcast %867 : vector<1x5xf32> to vector<2x5xf32>
    %1047 = arith.addf %1045, %1046 : vector<2x5xf32>
    %cst_202 = arith.constant dense<0xFF800000> : vector<2xf32>
    %1048 = vector.multi_reduction <maximumf>, %1047, %cst_202 [1] : vector<2x5xf32> to vector<2xf32>
    %1049 = vector.shape_cast %1048 : vector<2xf32> to vector<2x1xf32>
    %1050 = vector.broadcast %1049 : vector<2x1xf32> to vector<2x5xf32>
    %1051 = arith.cmpf oge, %1047, %1050 : vector<2x5xf32>
    %c5_i32_203 = arith.constant 5 : i32
    %1052 = vector.broadcast %c5_i32_203 : i32 to vector<2x5xi32>
    %1053 = arith.select %1051, %863, %1052 : vector<2x5xi1>, vector<2x5xi32>
    %cst_204 = arith.constant dense<2147483647> : vector<2xi32>
    %1054 = vector.multi_reduction <minsi>, %1053, %cst_204 [1] : vector<2x5xi32> to vector<2xi32>
    %1055 = vector.shape_cast %1054 : vector<2xi32> to vector<2x1xi32>
    %1056 = vector.broadcast %1055 : vector<2x1xi32> to vector<2x5xi32>
    %1057 = arith.cmpi eq, %863, %1056 : vector<2x5xi32>
    %c0_i32 = arith.constant 0 : i32
    %1058 = vector.broadcast %c0_i32 : i32 to vector<2x5xi32>
    %1059 = arith.select %1057, %1039, %1058 : vector<2x5xi1>, vector<2x5xi32>
    %cst_205 = arith.constant dense<0> : vector<2xi32>
    %1060 = vector.multi_reduction <add>, %1059, %cst_205 [1] : vector<2x5xi32> to vector<2xi32>
    %1061 = vector.shape_cast %1060 : vector<2xi32> to vector<2x1xi32>
    %1062 = vector.broadcast %1061 : vector<2x1xi32> to vector<2x5xi32>
    %1063 = arith.cmpi eq, %863, %1062 : vector<2x5xi32>
    %c0_i32_206 = arith.constant 0 : i32
    %1064 = vector.broadcast %c0_i32_206 : i32 to vector<2x5xi32>
    %1065 = arith.select %1063, %1014, %1064 : vector<2x5xi1>, vector<2x5xi32>
    %cst_207 = arith.constant dense<0> : vector<2xi32>
    %1066 = vector.multi_reduction <add>, %1065, %cst_207 [1] : vector<2x5xi32> to vector<2xi32>
    %1067 = vector.shape_cast %1066 : vector<2xi32> to vector<2x1xi32>
    %1068 = vector.broadcast %1067 : vector<2x1xi32> to vector<2x5xi32>
    %1069 = arith.cmpi eq, %863, %1068 : vector<2x5xi32>
    %c0_i32_208 = arith.constant 0 : i32
    %1070 = vector.broadcast %c0_i32_208 : i32 to vector<2x5xi32>
    %1071 = arith.select %1069, %989, %1070 : vector<2x5xi1>, vector<2x5xi32>
    %cst_209 = arith.constant dense<0> : vector<2xi32>
    %1072 = vector.multi_reduction <add>, %1071, %cst_209 [1] : vector<2x5xi32> to vector<2xi32>
    %1073 = vector.shape_cast %1072 : vector<2xi32> to vector<2x1xi32>
    %1074 = vector.broadcast %1073 : vector<2x1xi32> to vector<2x5xi32>
    %1075 = arith.cmpi eq, %863, %1074 : vector<2x5xi32>
    %c0_i32_210 = arith.constant 0 : i32
    %1076 = vector.broadcast %c0_i32_210 : i32 to vector<2x5xi32>
    %1077 = arith.select %1075, %964, %1076 : vector<2x5xi1>, vector<2x5xi32>
    %cst_211 = arith.constant dense<0> : vector<2xi32>
    %1078 = vector.multi_reduction <add>, %1077, %cst_211 [1] : vector<2x5xi32> to vector<2xi32>
    %1079 = vector.shape_cast %1078 : vector<2xi32> to vector<2x1xi32>
    %1080 = vector.broadcast %1079 : vector<2x1xi32> to vector<2x5xi32>
    %1081 = arith.cmpi eq, %863, %1080 : vector<2x5xi32>
    %c0_i32_212 = arith.constant 0 : i32
    %1082 = vector.broadcast %c0_i32_212 : i32 to vector<2x5xi32>
    %1083 = arith.select %1081, %939, %1082 : vector<2x5xi1>, vector<2x5xi32>
    %cst_213 = arith.constant dense<0> : vector<2xi32>
    %1084 = vector.multi_reduction <add>, %1083, %cst_213 [1] : vector<2x5xi32> to vector<2xi32>
    %1085 = vector.shape_cast %1084 : vector<2xi32> to vector<2x1xi32>
    %1086 = vector.broadcast %1085 : vector<2x1xi32> to vector<2x5xi32>
    %1087 = arith.cmpi eq, %863, %1086 : vector<2x5xi32>
    %c0_i32_214 = arith.constant 0 : i32
    %1088 = vector.broadcast %c0_i32_214 : i32 to vector<2x5xi32>
    %1089 = arith.select %1087, %914, %1088 : vector<2x5xi1>, vector<2x5xi32>
    %cst_215 = arith.constant dense<0> : vector<2xi32>
    %1090 = vector.multi_reduction <add>, %1089, %cst_215 [1] : vector<2x5xi32> to vector<2xi32>
    %1091 = vector.shape_cast %1090 : vector<2xi32> to vector<2x1xi32>
    %1092 = vector.broadcast %1091 : vector<2x1xi32> to vector<2x5xi32>
    %1093 = arith.cmpi eq, %863, %1092 : vector<2x5xi32>
    %c0_i32_216 = arith.constant 0 : i32
    %1094 = vector.broadcast %c0_i32_216 : i32 to vector<2x5xi32>
    %1095 = arith.select %1093, %889, %1094 : vector<2x5xi1>, vector<2x5xi32>
    %cst_217 = arith.constant dense<0> : vector<2xi32>
    %1096 = vector.multi_reduction <add>, %1095, %cst_217 [1] : vector<2x5xi32> to vector<2xi32>
    %1097 = vector.shape_cast %1096 : vector<2xi32> to vector<2x1xi32>
    %1098 = tpu.concatenate %1097, %1091, %1085, %1079, %1073, %1067, %1061, %1055 in 1 : vector<2x1xi32>, vector<2x1xi32>, vector<2x1xi32>, vector<2x1xi32>, vector<2x1xi32>, vector<2x1xi32>, vector<2x1xi32>, vector<2x1xi32> -> vector<2x8xi32>
    %cst_218 = arith.constant 5.000000e-01 : f32
    %1099 = vector.broadcast %cst_218 : f32 to vector<2x8xf32>
    %1100 = arith.cmpf ogt, %862, %1099 : vector<2x8xf32>
    %c0_i32_219 = arith.constant 0 : i32
    %1101 = vector.broadcast %c0_i32_219 : i32 to vector<2x8xi32>
    %1102 = arith.select %1100, %1098, %1101 : vector<2x8xi1>, vector<2x8xi32>
    %c0_220 = arith.constant 0 : index
    %c0_221 = arith.constant 0 : index
    %1103 = vector.load %arg13[%c0_220, %c0_221] : memref<2x8xi32, #tpu.memory_space<vmem>>, vector<2x8xi32>
    tpu.vector_store %arg13[%c0_220, %c0_221], %1102 {strides = array<i32>} : memref<2x8xi32, #tpu.memory_space<vmem>>, vector<2x8xi32>,
    return
  }
}

</mosaic_0001>

<llo_original>
// kernel: eq.24
$region0: #{eq.24}
  %s0 = inlined_call_operand.vmem [shape: s32[8,2], index: 0, kind: input, shape index: {}]
  %s1 = inlined_call_operand.vmem [shape: s32[16], index: 1, kind: output, shape index: {}]
  $region1: #{eq.24} parent=0
    #allocation0 [shape = 'u8[4096]{0}', space=vmem, size = 0x1000, scoped, tag = 'scoped mem for output reshape']
    %v2 = vld [vmem:[%s0] sm:$0x1]
    %vm3 = vcmask 15360
    %4 = vst.msk [vmem:[#allocation0] sm:$0x1] %vm3, %v2
    %s5 = scalar_lea.vmem %s0, 7
    %v6 = vld [vmem:[%s5] sm:$0x1]
    %7 = vrot.lane.b32.xlu0 %v6, 14
    %v8 = vpop.permute.xlu0 %7
    %vm9 = vcmask 130160
    %10 = vst.msk [vmem:[#allocation0] sm:$0x1] %vm9, %v8
    %s11 = scalar_lea.vmem %s0, 6
    %v12 = vld [vmem:[%s11] sm:$0x1]
    %13 = vrot.lane.b32.xlu0 %v12, 12
    %v14 = vpop.permute.xlu0 %13
    %vm15 = vcmask 113760
    %16 = vst.msk [vmem:[#allocation0] sm:$0x1] %vm15, %v14
    %s17 = scalar_lea.vmem %s0, 5
    %v18 = vld [vmem:[%s17] sm:$0x1]
    %19 = vrot.lane.b32.xlu0 %v18, 10
    %v20 = vpop.permute.xlu0 %19
    %vm21 = vcmask 97360
    %22 = vst.msk [vmem:[#allocation0] sm:$0x1] %vm21, %v20
    %s23 = scalar_lea.vmem %s0, 4
    %v24 = vld [vmem:[%s23] sm:$0x1]
    %25 = vrot.lane.b32.xlu0 %v24, 8
    %v26 = vpop.permute.xlu0 %25
    %vm27 = vcmask 80960
    %28 = vst.msk [vmem:[#allocation0] sm:$0x1] %vm27, %v26
    %s29 = scalar_lea.vmem %s0, 3
    %v30 = vld [vmem:[%s29] sm:$0x1]
    %31 = vrot.lane.b32.xlu0 %v30, 6
    %v32 = vpop.permute.xlu0 %31
    %vm33 = vcmask 64560
    %34 = vst.msk [vmem:[#allocation0] sm:$0x1] %vm33, %v32
    %s35 = scalar_lea.vmem %s0, 2
    %v36 = vld [vmem:[%s35] sm:$0x1]
    %37 = vrot.lane.b32.xlu0 %v36, 4
    %v38 = vpop.permute.xlu0 %37
    %vm39 = vcmask 48160
    %40 = vst.msk [vmem:[#allocation0] sm:$0x1] %vm39, %v38
    %s41 = scalar_lea.vmem %s0, 1
    %v42 = vld [vmem:[%s41] sm:$0x1]
    %43 = vrot.lane.b32.xlu0 %v42, 2
    %v44 = vpop.permute.xlu0 %43
    %vm45 = vcmask 31760
    %46 = vst.msk [vmem:[#allocation0] sm:$0x1] %vm45, %v44
    %s48 = ssub.s32 2, 1
    %v49 = vld [vmem:[#allocation0] sm:%s48]
    %s51 = ssub.s32 2, 1
    %52 = vst [vmem:[%s1] sm:%s51] %v49

// kernel: forward.1
$region0: #{forward.1}
  #allocation0 [shape = 'u32[]', space=smem, size = 0x4, offset = 0x4, fixed_abs, tag = 'smem constant byte address 0x4 - core index']
  #allocation1 [shape = 'u32[72,128]{1,0:T(1,128)}', space=vmem, size = 0x9000, scoped, tag = 'internal scratch']
  %s0 = inlined_call_operand.vmem [shape: f32[20,32], index: 0, kind: input, shape index: {}]
  %s1 = inlined_call_operand.vmem [shape: f32[20,20], index: 1, kind: input, shape index: {}]
  %s2 = inlined_call_operand.vmem [shape: f32[16,20], index: 2, kind: input, shape index: {}]
  %s3 = inlined_call_operand.vmem [shape: f32[2,8], index: 3, kind: input, shape index: {}]
  %s4 = inlined_call_operand.vmem [shape: f32[2,32,96], index: 4, kind: input, shape index: {}]
  %s5 = inlined_call_operand.vmem [shape: f32[2,32,32], index: 5, kind: input, shape index: {}]
  %s6 = inlined_call_operand.vmem [shape: f32[2,32,64], index: 6, kind: input, shape index: {}]
  %s7 = inlined_call_operand.vmem [shape: f32[2,64,32], index: 7, kind: input, shape index: {}]
  %s8 = inlined_call_operand.vmem [shape: f32[2,8,128], index: 8, kind: input, shape index: {}]
  %s9 = inlined_call_operand.vmem [shape: f32[16,128], index: 9, kind: input, shape index: {}]
  %s10 = inlined_call_operand.vmem [shape: f32[32,5], index: 10, kind: input, shape index: {}]
  %s11 = inlined_call_operand.vmem [shape: f32[2,32,128], index: 11, kind: input, shape index: {}]
  %s12 = inlined_call_operand.vmem [shape: f32[2,32,128], index: 12, kind: input, shape index: {}]
  %s13 = inlined_call_operand.hbm [shape: s32[2,8], index: 13, kind: output, shape index: {}]
  %s14 = sld [smem:[#allocation0]]
  $region62: #{forward.1} parent=0
    _
  %s16 = ssub.s32 1, %s14
  %s17 = scalar_select 0, %s16, %s14
  $region1: #{forward.1} parent=0
    #allocation2 [shape = 'u8[1024]{0}', space=vmem, size = 0x400, scoped, tag = 'output window, operand 0, single buffered']
    #allocation3 [shape = 's32[1]{0}', space=sflag, size = 0x4, scoped, tag = 'scoped memory for forward.1']
    %18 = vsyncpa [#allocation3], 0
    // Predicated region
    $region2: #{forward.1} parent=1 // pred_check
      _
    $region3: #{forward.1} parent=1 // pred_check_branch
      %20 = sbr.rel (0) target = $region5
    $region4: #{forward.1} parent=1 // pred_region
      _
    $region5: #{forward.1} parent=1 // pred_fallthru
      _
    // Predicated region
    $region6: #{forward.1} parent=1 // pred_check
      _
    $region7: #{forward.1} parent=1 // pred_check_branch
      %22 = sbr.rel (0) target = $region9
    $region8: #{forward.1} parent=1 // pred_region
      _
    $region9: #{forward.1} parent=1 // pred_fallthru
      _
    // Predicated region
    $region10: #{forward.1} parent=1 // pred_check
      _
    $region11: #{forward.1} parent=1 // pred_check_branch
      %24 = sbr.rel (0) target = $region13
    $region12: #{forward.1} parent=1 // pred_region
      _
    $region13: #{forward.1} parent=1 // pred_fallthru
      _
    // Predicated region
    $region14: #{forward.1} parent=1 // pred_check
      _
    $region15: #{forward.1} parent=1 // pred_check_branch
      %26 = sbr.rel (0) target = $region17
    $region16: #{forward.1} parent=1 // pred_region
      _
    $region17: #{forward.1} parent=1 // pred_fallthru
      _
    // Predicated region
    $region18: #{forward.1} parent=1 // pred_check
      _
    $region19: #{forward.1} parent=1 // pred_check_branch
      %28 = sbr.rel (0) target = $region21
    $region20: #{forward.1} parent=1 // pred_region
      _
    $region21: #{forward.1} parent=1 // pred_fallthru
      _
    // Predicated region
    $region22: #{forward.1} parent=1 // pred_check
      _
    $region23: #{forward.1} parent=1 // pred_check_branch
      %30 = sbr.rel (0) target = $region25
    $region24: #{forward.1} parent=1 // pred_region
      _
    $region25: #{forward.1} parent=1 // pred_fallthru
      _
    // Predicated region
    $region26: #{forward.1} parent=1 // pred_check
      _
    $region27: #{forward.1} parent=1 // pred_check_branch
      %32 = sbr.rel (0) target = $region29
    $region28: #{forward.1} parent=1 // pred_region
      _
    $region29: #{forward.1} parent=1 // pred_fallthru
      _
    // Predicated region
    $region30: #{forward.1} parent=1 // pred_check
      _
    $region31: #{forward.1} parent=1 // pred_check_branch
      %34 = sbr.rel (0) target = $region33
    $region32: #{forward.1} parent=1 // pred_region
      _
    $region33: #{forward.1} parent=1 // pred_fallthru
      _
    // Predicated region
    $region34: #{forward.1} parent=1 // pred_check
      _
    $region35: #{forward.1} parent=1 // pred_check_branch
      %36 = sbr.rel (0) target = $region37
    $region36: #{forward.1} parent=1 // pred_region
      _
    $region37: #{forward.1} parent=1 // pred_fallthru
      _
    // Predicated region
    $region38: #{forward.1} parent=1 // pred_check
      _
    $region39: #{forward.1} parent=1 // pred_check_branch
      %38 = sbr.rel (0) target = $region41
    $region40: #{forward.1} parent=1 // pred_region
      _
    $region41: #{forward.1} parent=1 // pred_fallthru
      _
    // Predicated region
    $region42: #{forward.1} parent=1 // pred_check
      _
    $region43: #{forward.1} parent=1 // pred_check_branch
      %40 = sbr.rel (0) target = $region45
    $region44: #{forward.1} parent=1 // pred_region
      _
    $region45: #{forward.1} parent=1 // pred_fallthru
      _
    // Predicated region
    $region46: #{forward.1} parent=1 // pred_check
      _
    $region47: #{forward.1} parent=1 // pred_check_branch
      %42 = sbr.rel (0) target = $region49
    $region48: #{forward.1} parent=1 // pred_region
      _
    $region49: #{forward.1} parent=1 // pred_fallthru
      _
    // Predicated region
    $region50: #{forward.1} parent=1 // pred_check
      _
    $region51: #{forward.1} parent=1 // pred_check_branch
      %44 = sbr.rel (0) target = $region53
    $region52: #{forward.1} parent=1 // pred_region
      _
    $region53: #{forward.1} parent=1 // pred_fallthru
      _
    %v45 = vld [vmem:[%s9] sm:$0xff]
    %v46 = vld [vmem:[%s9 + $0x8] sm:$0xff]
    %v47 = vld [vmem:[%s0] sm:$0xff]
    %v48 = vld [vmem:[%s0 + $0x8] sm:$0xff]
    %v49 = vld [vmem:[%s0 + $0x10] sm:$0xf]
    %vm50 = vcmask 261120
    %v51 = vsel %vm50, %v47, 0.0
    %52 = vadd.xlane.f32.xlu0 %v51
    %v53 = vpop.xlane.xlu0 %52
    %v54 = vsel %vm50, %v48, 0.0
    %55 = vadd.xlane.f32.xlu0 %v54
    %v56 = vpop.xlane.xlu0 %55
    %vm57 = vcmask 257024
    %v58 = vsel %vm57, %v49, 0.0
    %59 = vadd.xlane.f32.xlu0 %v58
    %v60 = vpop.xlane.xlu0 %59
    %v61 = vrcp.pop 32.0
    %v62 = vmul.f32 32.0, %v61
    %v63 = vsub.f32 1.0, %v62
    %v64 = vmul.f32 %v61, %v63
    %v65 = vadd.f32 %v61, %v64
    %vm66 = vweird.f32 %v61
    %v67 = vsel %vm66, %v61, %v65
    %v68 = vmul.f32 %v53, %v67
    %v69 = vmul.f32 %v56, %v67
    %v70 = vmul.f32 %v60, %v67
    %v71 = vsub.f32 %v47, %v68
    %v72 = vsub.f32 %v48, %v69
    %v73 = vsub.f32 %v49, %v70
    %v74 = vmul.f32 %v71, %v71
    %v75 = vmul.f32 %v72, %v72
    %v76 = vmul.f32 %v73, %v73
    %v77 = vsel %vm50, %v74, 0.0
    %78 = vadd.xlane.f32.xlu0 %v77
    %v79 = vpop.xlane.xlu0 %78
    %v80 = vsel %vm50, %v75, 0.0
    %81 = vadd.xlane.f32.xlu0 %v80
    %v82 = vpop.xlane.xlu0 %81
    %v83 = vsel %vm57, %v76, 0.0
    %84 = vadd.xlane.f32.xlu0 %v83
    %v85 = vpop.xlane.xlu0 %84
    %v86 = vmul.f32 %v79, %v67
    %v87 = vmul.f32 %v82, %v67
    %v88 = vmul.f32 %v85, %v67
    %v89 = vadd.f32 %v86, 1e-12
    %v90 = vadd.f32 %v87, 1e-12
    %v91 = vadd.f32 %v88, 1e-12
    %v92 = vrsqrt.pop %v89
    %v93 = vmul.f32 %v92, %v89
    %v94 = vmul.f32 %v93, %v92
    %v95 = vmul.f32 0.5, %v94
    %v96 = vsub.f32 1.5, %v95
    %v97 = vmul.f32 %v92, %v96
    %vm98 = vweird.f32 %v89
    %vm99 = vweird.f32 %v92
    %vm100 = vmor %vm98, %vm99
    %v101 = vsel %vm100, %v92, %v97
    %v102 = vrsqrt.pop %v90
    %v103 = vmul.f32 %v102, %v90
    %v104 = vmul.f32 %v103, %v102
    %v105 = vmul.f32 0.5, %v104
    %v106 = vsub.f32 1.5, %v105
    %v107 = vmul.f32 %v102, %v106
    %vm108 = vweird.f32 %v90
    %vm109 = vweird.f32 %v102
    %vm110 = vmor %vm108, %vm109
    %v111 = vsel %vm110, %v102, %v107
    %v112 = vrsqrt.pop %v91
    %v113 = vmul.f32 %v112, %v91
    %v114 = vmul.f32 %v113, %v112
    %v115 = vmul.f32 0.5, %v114
    %v116 = vsub.f32 1.5, %v115
    %v117 = vmul.f32 %v112, %v116
    %vm118 = vweird.f32 %v91
    %vm119 = vweird.f32 %v112
    %vm120 = vmor %vm118, %vm119
    %v121 = vsel %vm120, %v112, %v117
    %v122 = vmul.f32 %v71, %v101
    %v123 = vmul.f32 %v72, %v111
    %v124 = vmul.f32 %v73, %v121
    %v125 = vperm.slane %v45, 0
    %v126 = vmul.f32 %v122, %v125
    %v127 = vmul.f32 %v123, %v125
    %v128 = vmul.f32 %v124, %v125
    %v129 = vperm.slane %v45, 1
    %v130 = vadd.f32 %v126, %v129
    %v131 = vadd.f32 %v127, %v129
    %v132 = vadd.f32 %v128, %v129
    %v133 = vld [vmem:[%s1] sm:$0xff]
    %v134 = vld [vmem:[%s1 + $0x8] sm:$0xff]
    %v135 = vld [vmem:[%s1 + $0x10] sm:$0xf]
    %v136 = vld [vmem:[%s8] sm:$0xff]
    %v137 = vld [vmem:[%s4] sm:$0xff]
    %v138 = vld [vmem:[%s4 + $0x8] sm:$0xff]
    %v139 = vld [vmem:[%s4 + $0x10] sm:$0xff]
    %v140 = vld [vmem:[%s4 + $0x18] sm:$0xff]
    %v141 = vperm.slane %v136, 0
    %v143 = vsel %vm50, %v130, 0
    %v146 = vsel %vm50, %v131, 0
    %v149 = vsel %vm50, %v132, 0
    %151 = vmatpush.msra.mxu0 0.0
    %152 = vmatpush.msra.mxu0 0.0
    %153 = vmatpush.msra.mxu0 0.0
    %154 = vmatpush.msra.mxu0 0.0
    %155 = vmatpush.msra.mxu0 0.0
    %156 = vmatpush.msra.mxu0 0.0
    %157 = vmatpush.msra.mxu0 0.0
    %158 = vmatpush.msra.mxu0 0.0
    %159 = vmatpush.msra.mxu0 0.0
    %160 = vmatpush.msra.mxu0 0.0
    %161 = vmatpush.msra.mxu0 0.0
    %162 = vmatpush.msra.mxu0 0.0
    %163 = vmatpush.msra.mxu0 %v140
    %164 = vmatpush.msra.mxu0 %v139
    %165 = vmatpush.msra.mxu0 %v138
    %166 = vmatpush.msra.mxu0 %v137
    %167 = vmatmul.f32.gmra.mxu0 %v143
    %v168 = vpop.f32.mrf.mxu0
    %v169 = vadd.f32 %v141, %v168
    %170 = vmatmul.f32.gmra.mxu0 %v146
    %v171 = vpop.f32.mrf.mxu0
    %v172 = vadd.f32 %v141, %v171
    %173 = vmatmul.f32.gmra.mxu0 %v149
    %v174 = vpop.f32.mrf.mxu0
    %v175 = vadd.f32 %v141, %v174
    %176 = vdwg.mxu0
    %180 = vrot.lane.b32.xlu0 %v169, 96
    %v181 = vpop.permute.xlu0 %180
    %182 = vrot.lane.b32.xlu0 %v172, 96
    %v183 = vpop.permute.xlu0 %182
    %184 = vrot.lane.b32.xlu0 %v175, 96
    %v185 = vpop.permute.xlu0 %184
    %vm186 = vcmask 64512
    %v187 = vsel %vm186, %v169, 0
    %v189 = vsel %vm186, %v172, 0
    %v191 = vsel %vm186, %v175, 0
    %v193 = vsel %vm186, %v181, 0
    %v195 = vsel %vm186, %v183, 0
    %v197 = vsel %vm186, %v185, 0
    %199 = vmatpush.xpose.msra.mxu0 0.0
    %200 = vmatpush.xpose.msra.mxu0 0.0
    %201 = vmatpush.xpose.msra.mxu0 0.0
    %202 = vmatpush.xpose.msra.mxu0 0.0
    %203 = vmatpush.xpose.msra.mxu0 0.0
    %204 = vmatpush.xpose.msra.mxu0 0.0
    %205 = vmatpush.xpose.msra.mxu0 0.0
    %206 = vmatpush.xpose.msra.mxu0 0.0
    %207 = vmatpush.xpose.msra.mxu0 0.0
    %208 = vmatpush.xpose.msra.mxu0 0.0
    %209 = vmatpush.xpose.msra.mxu0 0.0
    %210 = vmatpush.xpose.msra.mxu0 0.0
    %211 = vmatpush.xpose.msra.mxu0 0.0
    %212 = vmatpush.xpose.msra.mxu0 %v197
    %213 = vmatpush.xpose.msra.mxu0 %v195
    %214 = vmatpush.xpose.msra.mxu0 %v193
    %215 = vmatmul.f32.gmra.mxu0 %v187
    %v216 = vpop.f32.mrf.mxu0
    %v217 = vadd.f32 0.0, %v216
    %218 = vmatmul.f32.gmra.mxu0 %v189
    %v219 = vpop.f32.mrf.mxu0
    %v220 = vadd.f32 0.0, %v219
    %221 = vmatmul.f32.gmra.mxu0 %v191
    %v222 = vpop.f32.mrf.mxu0
    %v223 = vadd.f32 0.0, %v222
    %224 = vdwg.mxu0
    %v225 = vmul.f32 %v217, 0.35355338
    %v226 = vmul.f32 %v220, 0.35355338
    %v227 = vmul.f32 %v223, 0.35355338
    %v228 = vadd.f32 %v225, %v133
    %v229 = vadd.f32 %v226, %v134
    %v230 = vadd.f32 %v227, %v135
    %vm231 = vcmask 162816
    %v232 = vsel %vm231, %v228, -inf
    %233 = vmax.xlane.f32.xlu0 %v232
    %v234 = vpop.xlane.xlu0 %233
    %v235 = vsel %vm231, %v229, -inf
    %236 = vmax.xlane.f32.xlu0 %v235
    %v237 = vpop.xlane.xlu0 %236
    %vm238 = vcmask 158720
    %v239 = vsel %vm238, %v230, -inf
    %240 = vmax.xlane.f32.xlu0 %v239
    %v241 = vpop.xlane.xlu0 %240
    %v242 = vsub.f32 %v228, %v234
    %v243 = vsub.f32 %v229, %v237
    %v244 = vsub.f32 %v230, %v241
    %v245 = vmul.f32 %v242, 1.442695
    %v246 = vpow.pop %v245
    %v247 = vmul.f32 %v243, 1.442695
    %v248 = vpow.pop %v247
    %v249 = vmul.f32 %v244, 1.442695
    %v250 = vpow.pop %v249
    %v251 = vsel %vm231, %v246, 0.0
    %252 = vadd.xlane.f32.xlu0 %v251
    %v253 = vpop.xlane.xlu0 %252
    %v254 = vsel %vm231, %v248, 0.0
    %255 = vadd.xlane.f32.xlu0 %v254
    %v256 = vpop.xlane.xlu0 %255
    %v257 = vsel %vm238, %v250, 0.0
    %258 = vadd.xlane.f32.xlu0 %v257
    %v259 = vpop.xlane.xlu0 %258
    %v260 = vrcp.pop %v253
    %v261 = vmul.f32 %v253, %v260
    %v262 = vsub.f32 1.0, %v261
    %v263 = vmul.f32 %v260, %v262
    %v264 = vadd.f32 %v260, %v263
    %vm265 = vweird.f32 %v253
    %vm266 = vweird.f32 %v260
    %vm267 = vmor %vm265, %vm266
    %v268 = vsel %vm267, %v260, %v264
    %v269 = vand.u32 2147483647, %v253
    %vm270 = vcmp.eq.f32.partialorder %v269, 8.507059e+37
    %v271 = vand.u32 %v253, 2147483648
    %v272 = vor.u32 1.1754944e-38, %v271
    %v273 = vsel %vm270, %v272, %v268
    %v274 = vmul.f32 %v246, %v273
    %v275 = vrcp.pop %v256
    %v276 = vmul.f32 %v256, %v275
    %v277 = vsub.f32 1.0, %v276
    %v278 = vmul.f32 %v275, %v277
    %v279 = vadd.f32 %v275, %v278
    %vm280 = vweird.f32 %v256
    %vm281 = vweird.f32 %v275
    %vm282 = vmor %vm280, %vm281
    %v283 = vsel %vm282, %v275, %v279
    %v284 = vand.u32 2147483647, %v256
    %vm285 = vcmp.eq.f32.partialorder %v284, 8.507059e+37
    %v286 = vand.u32 %v256, 2147483648
    %v287 = vor.u32 1.1754944e-38, %v286
    %v288 = vsel %vm285, %v287, %v283
    %v289 = vmul.f32 %v248, %v288
    %v290 = vrcp.pop %v259
    %v291 = vmul.f32 %v259, %v290
    %v292 = vsub.f32 1.0, %v291
    %v293 = vmul.f32 %v290, %v292
    %v294 = vadd.f32 %v290, %v293
    %vm295 = vweird.f32 %v259
    %vm296 = vweird.f32 %v290
    %vm297 = vmor %vm295, %vm296
    %v298 = vsel %vm297, %v290, %v294
    %v299 = vand.u32 2147483647, %v259
    %vm300 = vcmp.eq.f32.partialorder %v299, 8.507059e+37
    %v301 = vand.u32 %v259, 2147483648
    %v302 = vor.u32 1.1754944e-38, %v301
    %v303 = vsel %vm300, %v302, %v298
    %v304 = vmul.f32 %v250, %v303
    %305 = vrot.lane.b32.xlu0 %v169, 64
    %v306 = vpop.permute.xlu0 %305
    %307 = vrot.lane.b32.xlu0 %v172, 64
    %v308 = vpop.permute.xlu0 %307
    %309 = vrot.lane.b32.xlu0 %v175, 64
    %v310 = vpop.permute.xlu0 %309
    %v314 = vsel %vm231, %v274, 0
    %v317 = vsel %vm231, %v289, 0
    %v320 = vsel %vm231, %v304, 0
    %vm322 = vcmask 1043456
    %v323 = vsel %vm322, %v310, 0
    %325 = vmatpush.msra.mxu0 0.0
    %326 = vmatpush.msra.mxu0 0.0
    %327 = vmatpush.msra.mxu0 0.0
    %328 = vmatpush.msra.mxu0 0.0
    %329 = vmatpush.msra.mxu0 0.0
    %330 = vmatpush.msra.mxu0 0.0
    %331 = vmatpush.msra.mxu0 0.0
    %332 = vmatpush.msra.mxu0 0.0
    %333 = vmatpush.msra.mxu0 0.0
    %334 = vmatpush.msra.mxu0 0.0
    %335 = vmatpush.msra.mxu0 0.0
    %336 = vmatpush.msra.mxu0 0.0
    %337 = vmatpush.msra.mxu0 0.0
    %338 = vmatpush.msra.mxu0 %v323
    %339 = vmatpush.msra.mxu0 %v308
    %340 = vmatpush.msra.mxu0 %v306
    %341 = vmatmul.f32.gmra.mxu0 %v314
    %v342 = vpop.f32.mrf.mxu0
    %v343 = vadd.f32 0.0, %v342
    %344 = vmatmul.f32.gmra.mxu0 %v317
    %v345 = vpop.f32.mrf.mxu0
    %v346 = vadd.f32 0.0, %v345
    %347 = vmatmul.f32.gmra.mxu0 %v320
    %v348 = vpop.f32.mrf.mxu0
    %v349 = vadd.f32 0.0, %v348
    %350 = vdwg.mxu0
    %351 = vrot.lane.b32.xlu0 %v169, 120
    %v352 = vpop.permute.xlu0 %351
    %353 = vrot.lane.b32.xlu0 %v172, 120
    %v354 = vpop.permute.xlu0 %353
    %355 = vrot.lane.b32.xlu0 %v175, 120
    %v356 = vpop.permute.xlu0 %355
    %357 = vrot.lane.b32.xlu0 %v169, 88
    %v358 = vpop.permute.xlu0 %357
    %359 = vrot.lane.b32.xlu0 %v172, 88
    %v360 = vpop.permute.xlu0 %359
    %361 = vrot.lane.b32.xlu0 %v175, 88
    %v362 = vpop.permute.xlu0 %361
    %v363 = vsel %vm186, %v352, 0
    %v365 = vsel %vm186, %v354, 0
    %v367 = vsel %vm186, %v356, 0
    %v369 = vsel %vm186, %v358, 0
    %v371 = vsel %vm186, %v360, 0
    %v373 = vsel %vm186, %v362, 0
    %375 = vmatpush.xpose.msra.mxu0 0.0
    %376 = vmatpush.xpose.msra.mxu0 0.0
    %377 = vmatpush.xpose.msra.mxu0 0.0
    %378 = vmatpush.xpose.msra.mxu0 0.0
    %379 = vmatpush.xpose.msra.mxu0 0.0
    %380 = vmatpush.xpose.msra.mxu0 0.0
    %381 = vmatpush.xpose.msra.mxu0 0.0
    %382 = vmatpush.xpose.msra.mxu0 0.0
    %383 = vmatpush.xpose.msra.mxu0 0.0
    %384 = vmatpush.xpose.msra.mxu0 0.0
    %385 = vmatpush.xpose.msra.mxu0 0.0
    %386 = vmatpush.xpose.msra.mxu0 0.0
    %387 = vmatpush.xpose.msra.mxu0 0.0
    %388 = vmatpush.xpose.msra.mxu0 %v373
    %389 = vmatpush.xpose.msra.mxu0 %v371
    %390 = vmatpush.xpose.msra.mxu0 %v369
    %391 = vmatmul.f32.gmra.mxu0 %v363
    %v392 = vpop.f32.mrf.mxu0
    %v393 = vadd.f32 0.0, %v392
    %394 = vmatmul.f32.gmra.mxu0 %v365
    %v395 = vpop.f32.mrf.mxu0
    %v396 = vadd.f32 0.0, %v395
    %397 = vmatmul.f32.gmra.mxu0 %v367
    %v398 = vpop.f32.mrf.mxu0
    %v399 = vadd.f32 0.0, %v398
    %400 = vdwg.mxu0
    %v401 = vmul.f32 %v393, 0.35355338
    %v402 = vmul.f32 %v396, 0.35355338
    %v403 = vmul.f32 %v399, 0.35355338
    %v404 = vadd.f32 %v401, %v133
    %v405 = vadd.f32 %v402, %v134
    %v406 = vadd.f32 %v403, %v135
    %v407 = vsel %vm231, %v404, -inf
    %408 = vmax.xlane.f32.xlu0 %v407
    %v409 = vpop.xlane.xlu0 %408
    %v410 = vsel %vm231, %v405, -inf
    %411 = vmax.xlane.f32.xlu0 %v410
    %v412 = vpop.xlane.xlu0 %411
    %v413 = vsel %vm238, %v406, -inf
    %414 = vmax.xlane.f32.xlu0 %v413
    %v415 = vpop.xlane.xlu0 %414
    %v416 = vsub.f32 %v404, %v409
    %v417 = vsub.f32 %v405, %v412
    %v418 = vsub.f32 %v406, %v415
    %v419 = vmul.f32 %v416, 1.442695
    %v420 = vpow.pop %v419
    %v421 = vmul.f32 %v417, 1.442695
    %v422 = vpow.pop %v421
    %v423 = vmul.f32 %v418, 1.442695
    %v424 = vpow.pop %v423
    %v425 = vsel %vm231, %v420, 0.0
    %426 = vadd.xlane.f32.xlu0 %v425
    %v427 = vpop.xlane.xlu0 %426
    %v428 = vsel %vm231, %v422, 0.0
    %429 = vadd.xlane.f32.xlu0 %v428
    %v430 = vpop.xlane.xlu0 %429
    %v431 = vsel %vm238, %v424, 0.0
    %432 = vadd.xlane.f32.xlu0 %v431
    %v433 = vpop.xlane.xlu0 %432
    %v434 = vrcp.pop %v427
    %v435 = vmul.f32 %v427, %v434
    %v436 = vsub.f32 1.0, %v435
    %v437 = vmul.f32 %v434, %v436
    %v438 = vadd.f32 %v434, %v437
    %vm439 = vweird.f32 %v427
    %vm440 = vweird.f32 %v434
    %vm441 = vmor %vm439, %vm440
    %v442 = vsel %vm441, %v434, %v438
    %v443 = vand.u32 2147483647, %v427
    %vm444 = vcmp.eq.f32.partialorder %v443, 8.507059e+37
    %v445 = vand.u32 %v427, 2147483648
    %v446 = vor.u32 1.1754944e-38, %v445
    %v447 = vsel %vm444, %v446, %v442
    %v448 = vmul.f32 %v420, %v447
    %v449 = vrcp.pop %v430
    %v450 = vmul.f32 %v430, %v449
    %v451 = vsub.f32 1.0, %v450
    %v452 = vmul.f32 %v449, %v451
    %v453 = vadd.f32 %v449, %v452
    %vm454 = vweird.f32 %v430
    %vm455 = vweird.f32 %v449
    %vm456 = vmor %vm454, %vm455
    %v457 = vsel %vm456, %v449, %v453
    %v458 = vand.u32 2147483647, %v430
    %vm459 = vcmp.eq.f32.partialorder %v458, 8.507059e+37
    %v460 = vand.u32 %v430, 2147483648
    %v461 = vor.u32 1.1754944e-38, %v460
    %v462 = vsel %vm459, %v461, %v457
    %v463 = vmul.f32 %v422, %v462
    %v464 = vrcp.pop %v433
    %v465 = vmul.f32 %v433, %v464
    %v466 = vsub.f32 1.0, %v465
    %v467 = vmul.f32 %v464, %v466
    %v468 = vadd.f32 %v464, %v467
    %vm469 = vweird.f32 %v433
    %vm470 = vweird.f32 %v464
    %vm471 = vmor %vm469, %vm470
    %v472 = vsel %vm471, %v464, %v468
    %v473 = vand.u32 2147483647, %v433
    %vm474 = vcmp.eq.f32.partialorder %v473, 8.507059e+37
    %v475 = vand.u32 %v433, 2147483648
    %v476 = vor.u32 1.1754944e-38, %v475
    %v477 = vsel %vm474, %v476, %v472
    %v478 = vmul.f32 %v424, %v477
    %479 = vrot.lane.b32.xlu0 %v169, 56
    %v480 = vpop.permute.xlu0 %479
    %481 = vrot.lane.b32.xlu0 %v172, 56
    %v482 = vpop.permute.xlu0 %481
    %483 = vrot.lane.b32.xlu0 %v175, 56
    %v484 = vpop.permute.xlu0 %483
    %v488 = vsel %vm231, %v448, 0
    %v491 = vsel %vm231, %v463, 0
    %v494 = vsel %vm231, %v478, 0
    %v496 = vsel %vm322, %v484, 0
    %498 = vmatpush.msra.mxu0 0.0
    %499 = vmatpush.msra.mxu0 0.0
    %500 = vmatpush.msra.mxu0 0.0
    %501 = vmatpush.msra.mxu0 0.0
    %502 = vmatpush.msra.mxu0 0.0
    %503 = vmatpush.msra.mxu0 0.0
    %504 = vmatpush.msra.mxu0 0.0
    %505 = vmatpush.msra.mxu0 0.0
    %506 = vmatpush.msra.mxu0 0.0
    %507 = vmatpush.msra.mxu0 0.0
    %508 = vmatpush.msra.mxu0 0.0
    %509 = vmatpush.msra.mxu0 0.0
    %510 = vmatpush.msra.mxu0 0.0
    %511 = vmatpush.msra.mxu0 %v496
    %512 = vmatpush.msra.mxu0 %v482
    %513 = vmatpush.msra.mxu0 %v480
    %514 = vmatmul.f32.gmra.mxu0 %v488
    %v515 = vpop.f32.mrf.mxu0
    %v516 = vadd.f32 0.0, %v515
    %517 = vmatmul.f32.gmra.mxu0 %v491
    %v518 = vpop.f32.mrf.mxu0
    %v519 = vadd.f32 0.0, %v518
    %520 = vmatmul.f32.gmra.mxu0 %v494
    %v521 = vpop.f32.mrf.mxu0
    %v522 = vadd.f32 0.0, %v521
    %523 = vdwg.mxu0
    %524 = vrot.lane.b32.xlu0 %v169, 112
    %v525 = vpop.permute.xlu0 %524
    %526 = vrot.lane.b32.xlu0 %v172, 112
    %v527 = vpop.permute.xlu0 %526
    %528 = vrot.lane.b32.xlu0 %v175, 112
    %v529 = vpop.permute.xlu0 %528
    %530 = vrot.lane.b32.xlu0 %v169, 80
    %v531 = vpop.permute.xlu0 %530
    %532 = vrot.lane.b32.xlu0 %v172, 80
    %v533 = vpop.permute.xlu0 %532
    %534 = vrot.lane.b32.xlu0 %v175, 80
    %v535 = vpop.permute.xlu0 %534
    %v536 = vsel %vm186, %v525, 0
    %v538 = vsel %vm186, %v527, 0
    %v540 = vsel %vm186, %v529, 0
    %v542 = vsel %vm186, %v531, 0
    %v544 = vsel %vm186, %v533, 0
    %v546 = vsel %vm186, %v535, 0
    %548 = vmatpush.xpose.msra.mxu0 0.0
    %549 = vmatpush.xpose.msra.mxu0 0.0
    %550 = vmatpush.xpose.msra.mxu0 0.0
    %551 = vmatpush.xpose.msra.mxu0 0.0
    %552 = vmatpush.xpose.msra.mxu0 0.0
    %553 = vmatpush.xpose.msra.mxu0 0.0
    %554 = vmatpush.xpose.msra.mxu0 0.0
    %555 = vmatpush.xpose.msra.mxu0 0.0
    %556 = vmatpush.xpose.msra.mxu0 0.0
    %557 = vmatpush.xpose.msra.mxu0 0.0
    %558 = vmatpush.xpose.msra.mxu0 0.0
    %559 = vmatpush.xpose.msra.mxu0 0.0
    %560 = vmatpush.xpose.msra.mxu0 0.0
    %561 = vmatpush.xpose.msra.mxu0 %v546
    %562 = vmatpush.xpose.msra.mxu0 %v544
    %563 = vmatpush.xpose.msra.mxu0 %v542
    %564 = vmatmul.f32.gmra.mxu0 %v536
    %v565 = vpop.f32.mrf.mxu0
    %v566 = vadd.f32 0.0, %v565
    %567 = vmatmul.f32.gmra.mxu0 %v538
    %v568 = vpop.f32.mrf.mxu0
    %v569 = vadd.f32 0.0, %v568
    %570 = vmatmul.f32.gmra.mxu0 %v540
    %v571 = vpop.f32.mrf.mxu0
    %v572 = vadd.f32 0.0, %v571
    %573 = vdwg.mxu0
    %v574 = vmul.f32 %v566, 0.35355338
    %v575 = vmul.f32 %v569, 0.35355338
    %v576 = vmul.f32 %v572, 0.35355338
    %v577 = vadd.f32 %v574, %v133
    %v578 = vadd.f32 %v575, %v134
    %v579 = vadd.f32 %v576, %v135
    %v580 = vsel %vm231, %v577, -inf
    %581 = vmax.xlane.f32.xlu0 %v580
    %v582 = vpop.xlane.xlu0 %581
    %v583 = vsel %vm231, %v578, -inf
    %584 = vmax.xlane.f32.xlu0 %v583
    %v585 = vpop.xlane.xlu0 %584
    %v586 = vsel %vm238, %v579, -inf
    %587 = vmax.xlane.f32.xlu0 %v586
    %v588 = vpop.xlane.xlu0 %587
    %v589 = vsub.f32 %v577, %v582
    %v590 = vsub.f32 %v578, %v585
    %v591 = vsub.f32 %v579, %v588
    %v592 = vmul.f32 %v589, 1.442695
    %v593 = vpow.pop %v592
    %v594 = vmul.f32 %v590, 1.442695
    %v595 = vpow.pop %v594
    %v596 = vmul.f32 %v591, 1.442695
    %v597 = vpow.pop %v596
    %v598 = vsel %vm231, %v593, 0.0
    %599 = vadd.xlane.f32.xlu0 %v598
    %v600 = vpop.xlane.xlu0 %599
    %v601 = vsel %vm231, %v595, 0.0
    %602 = vadd.xlane.f32.xlu0 %v601
    %v603 = vpop.xlane.xlu0 %602
    %v604 = vsel %vm238, %v597, 0.0
    %605 = vadd.xlane.f32.xlu0 %v604
    %v606 = vpop.xlane.xlu0 %605
    %v607 = vrcp.pop %v600
    %v608 = vmul.f32 %v600, %v607
    %v609 = vsub.f32 1.0, %v608
    %v610 = vmul.f32 %v607, %v609
    %v611 = vadd.f32 %v607, %v610
    %vm612 = vweird.f32 %v600
    %vm613 = vweird.f32 %v607
    %vm614 = vmor %vm612, %vm613
    %v615 = vsel %vm614, %v607, %v611
    %v616 = vand.u32 2147483647, %v600
    %vm617 = vcmp.eq.f32.partialorder %v616, 8.507059e+37
    %v618 = vand.u32 %v600, 2147483648
    %v619 = vor.u32 1.1754944e-38, %v618
    %v620 = vsel %vm617, %v619, %v615
    %v621 = vmul.f32 %v593, %v620
    %v622 = vrcp.pop %v603
    %v623 = vmul.f32 %v603, %v622
    %v624 = vsub.f32 1.0, %v623
    %v625 = vmul.f32 %v622, %v624
    %v626 = vadd.f32 %v622, %v625
    %vm627 = vweird.f32 %v603
    %vm628 = vweird.f32 %v622
    %vm629 = vmor %vm627, %vm628
    %v630 = vsel %vm629, %v622, %v626
    %v631 = vand.u32 2147483647, %v603
    %vm632 = vcmp.eq.f32.partialorder %v631, 8.507059e+37
    %v633 = vand.u32 %v603, 2147483648
    %v634 = vor.u32 1.1754944e-38, %v633
    %v635 = vsel %vm632, %v634, %v630
    %v636 = vmul.f32 %v595, %v635
    %v637 = vrcp.pop %v606
    %v638 = vmul.f32 %v606, %v637
    %v639 = vsub.f32 1.0, %v638
    %v640 = vmul.f32 %v637, %v639
    %v641 = vadd.f32 %v637, %v640
    %vm642 = vweird.f32 %v606
    %vm643 = vweird.f32 %v637
    %vm644 = vmor %vm642, %vm643
    %v645 = vsel %vm644, %v637, %v641
    %v646 = vand.u32 2147483647, %v606
    %vm647 = vcmp.eq.f32.partialorder %v646, 8.507059e+37
    %v648 = vand.u32 %v606, 2147483648
    %v649 = vor.u32 1.1754944e-38, %v648
    %v650 = vsel %vm647, %v649, %v645
    %v651 = vmul.f32 %v597, %v650
    %652 = vrot.lane.b32.xlu0 %v169, 48
    %v653 = vpop.permute.xlu0 %652
    %654 = vrot.lane.b32.xlu0 %v172, 48
    %v655 = vpop.permute.xlu0 %654
    %656 = vrot.lane.b32.xlu0 %v175, 48
    %v657 = vpop.permute.xlu0 %656
    %v661 = vsel %vm231, %v621, 0
    %v664 = vsel %vm231, %v636, 0
    %v667 = vsel %vm231, %v651, 0
    %v669 = vsel %vm322, %v657, 0
    %671 = vmatpush.msra.mxu0 0.0
    %672 = vmatpush.msra.mxu0 0.0
    %673 = vmatpush.msra.mxu0 0.0
    %674 = vmatpush.msra.mxu0 0.0
    %675 = vmatpush.msra.mxu0 0.0
    %676 = vmatpush.msra.mxu0 0.0
    %677 = vmatpush.msra.mxu0 0.0
    %678 = vmatpush.msra.mxu0 0.0
    %679 = vmatpush.msra.mxu0 0.0
    %680 = vmatpush.msra.mxu0 0.0
    %681 = vmatpush.msra.mxu0 0.0
    %682 = vmatpush.msra.mxu0 0.0
    %683 = vmatpush.msra.mxu0 0.0
    %684 = vmatpush.msra.mxu0 %v669
    %685 = vmatpush.msra.mxu0 %v655
    %686 = vmatpush.msra.mxu0 %v653
    %687 = vmatmul.f32.gmra.mxu0 %v661
    %v688 = vpop.f32.mrf.mxu0
    %v689 = vadd.f32 0.0, %v688
    %690 = vmatmul.f32.gmra.mxu0 %v664
    %v691 = vpop.f32.mrf.mxu0
    %v692 = vadd.f32 0.0, %v691
    %693 = vmatmul.f32.gmra.mxu0 %v667
    %v694 = vpop.f32.mrf.mxu0
    %v695 = vadd.f32 0.0, %v694
    %696 = vdwg.mxu0
    %697 = vrot.lane.b32.xlu0 %v169, 104
    %v698 = vpop.permute.xlu0 %697
    %699 = vrot.lane.b32.xlu0 %v172, 104
    %v700 = vpop.permute.xlu0 %699
    %701 = vrot.lane.b32.xlu0 %v175, 104
    %v702 = vpop.permute.xlu0 %701
    %703 = vrot.lane.b32.xlu0 %v169, 72
    %v704 = vpop.permute.xlu0 %703
    %705 = vrot.lane.b32.xlu0 %v172, 72
    %v706 = vpop.permute.xlu0 %705
    %707 = vrot.lane.b32.xlu0 %v175, 72
    %v708 = vpop.permute.xlu0 %707
    %v709 = vsel %vm186, %v698, 0
    %v711 = vsel %vm186, %v700, 0
    %v713 = vsel %vm186, %v702, 0
    %v715 = vsel %vm186, %v704, 0
    %v717 = vsel %vm186, %v706, 0
    %v719 = vsel %vm186, %v708, 0
    %721 = vmatpush.xpose.msra.mxu0 0.0
    %722 = vmatpush.xpose.msra.mxu0 0.0
    %723 = vmatpush.xpose.msra.mxu0 0.0
    %724 = vmatpush.xpose.msra.mxu0 0.0
    %725 = vmatpush.xpose.msra.mxu0 0.0
    %726 = vmatpush.xpose.msra.mxu0 0.0
    %727 = vmatpush.xpose.msra.mxu0 0.0
    %728 = vmatpush.xpose.msra.mxu0 0.0
    %729 = vmatpush.xpose.msra.mxu0 0.0
    %730 = vmatpush.xpose.msra.mxu0 0.0
    %731 = vmatpush.xpose.msra.mxu0 0.0
    %732 = vmatpush.xpose.msra.mxu0 0.0
    %733 = vmatpush.xpose.msra.mxu0 0.0
    %734 = vmatpush.xpose.msra.mxu0 %v719
    %735 = vmatpush.xpose.msra.mxu0 %v717
    %736 = vmatpush.xpose.msra.mxu0 %v715
    %737 = vmatmul.f32.gmra.mxu0 %v709
    %v738 = vpop.f32.mrf.mxu0
    %v739 = vadd.f32 0.0, %v738
    %740 = vmatmul.f32.gmra.mxu0 %v711
    %v741 = vpop.f32.mrf.mxu0
    %v742 = vadd.f32 0.0, %v741
    %743 = vmatmul.f32.gmra.mxu0 %v713
    %v744 = vpop.f32.mrf.mxu0
    %v745 = vadd.f32 0.0, %v744
    %746 = vdwg.mxu0
    %v747 = vmul.f32 %v739, 0.35355338
    %v748 = vmul.f32 %v742, 0.35355338
    %v749 = vmul.f32 %v745, 0.35355338
    %v750 = vadd.f32 %v747, %v133
    %v751 = vadd.f32 %v748, %v134
    %v752 = vadd.f32 %v749, %v135
    %v753 = vsel %vm231, %v750, -inf
    %754 = vmax.xlane.f32.xlu0 %v753
    %v755 = vpop.xlane.xlu0 %754
    %v756 = vsel %vm231, %v751, -inf
    %757 = vmax.xlane.f32.xlu0 %v756
    %v758 = vpop.xlane.xlu0 %757
    %v759 = vsel %vm238, %v752, -inf
    %760 = vmax.xlane.f32.xlu0 %v759
    %v761 = vpop.xlane.xlu0 %760
    %v762 = vsub.f32 %v750, %v755
    %v763 = vsub.f32 %v751, %v758
    %v764 = vsub.f32 %v752, %v761
    %v765 = vmul.f32 %v762, 1.442695
    %v766 = vpow.pop %v765
    %v767 = vmul.f32 %v763, 1.442695
    %v768 = vpow.pop %v767
    %v769 = vmul.f32 %v764, 1.442695
    %v770 = vpow.pop %v769
    %v771 = vsel %vm231, %v766, 0.0
    %772 = vadd.xlane.f32.xlu0 %v771
    %v773 = vpop.xlane.xlu0 %772
    %v774 = vsel %vm231, %v768, 0.0
    %775 = vadd.xlane.f32.xlu0 %v774
    %v776 = vpop.xlane.xlu0 %775
    %v777 = vsel %vm238, %v770, 0.0
    %778 = vadd.xlane.f32.xlu0 %v777
    %v779 = vpop.xlane.xlu0 %778
    %v780 = vrcp.pop %v773
    %v781 = vmul.f32 %v773, %v780
    %v782 = vsub.f32 1.0, %v781
    %v783 = vmul.f32 %v780, %v782
    %v784 = vadd.f32 %v780, %v783
    %vm785 = vweird.f32 %v773
    %vm786 = vweird.f32 %v780
    %vm787 = vmor %vm785, %vm786
    %v788 = vsel %vm787, %v780, %v784
    %v789 = vand.u32 2147483647, %v773
    %vm790 = vcmp.eq.f32.partialorder %v789, 8.507059e+37
    %v791 = vand.u32 %v773, 2147483648
    %v792 = vor.u32 1.1754944e-38, %v791
    %v793 = vsel %vm790, %v792, %v788
    %v794 = vmul.f32 %v766, %v793
    %v795 = vrcp.pop %v776
    %v796 = vmul.f32 %v776, %v795
    %v797 = vsub.f32 1.0, %v796
    %v798 = vmul.f32 %v795, %v797
    %v799 = vadd.f32 %v795, %v798
    %vm800 = vweird.f32 %v776
    %vm801 = vweird.f32 %v795
    %vm802 = vmor %vm800, %vm801
    %v803 = vsel %vm802, %v795, %v799
    %v804 = vand.u32 2147483647, %v776
    %vm805 = vcmp.eq.f32.partialorder %v804, 8.507059e+37
    %v806 = vand.u32 %v776, 2147483648
    %v807 = vor.u32 1.1754944e-38, %v806
    %v808 = vsel %vm805, %v807, %v803
    %v809 = vmul.f32 %v768, %v808
    %v810 = vrcp.pop %v779
    %v811 = vmul.f32 %v779, %v810
    %v812 = vsub.f32 1.0, %v811
    %v813 = vmul.f32 %v810, %v812
    %v814 = vadd.f32 %v810, %v813
    %vm815 = vweird.f32 %v779
    %vm816 = vweird.f32 %v810
    %vm817 = vmor %vm815, %vm816
    %v818 = vsel %vm817, %v810, %v814
    %v819 = vand.u32 2147483647, %v779
    %vm820 = vcmp.eq.f32.partialorder %v819, 8.507059e+37
    %v821 = vand.u32 %v779, 2147483648
    %v822 = vor.u32 1.1754944e-38, %v821
    %v823 = vsel %vm820, %v822, %v818
    %v824 = vmul.f32 %v770, %v823
    %825 = vrot.lane.b32.xlu0 %v169, 40
    %v826 = vpop.permute.xlu0 %825
    %827 = vrot.lane.b32.xlu0 %v172, 40
    %v828 = vpop.permute.xlu0 %827
    %829 = vrot.lane.b32.xlu0 %v175, 40
    %v830 = vpop.permute.xlu0 %829
    %v834 = vsel %vm231, %v794, 0
    %v837 = vsel %vm231, %v809, 0
    %v840 = vsel %vm231, %v824, 0
    %v842 = vsel %vm322, %v830, 0
    %844 = vmatpush.msra.mxu0 0.0
    %845 = vmatpush.msra.mxu0 0.0
    %846 = vmatpush.msra.mxu0 0.0
    %847 = vmatpush.msra.mxu0 0.0
    %848 = vmatpush.msra.mxu0 0.0
    %849 = vmatpush.msra.mxu0 0.0
    %850 = vmatpush.msra.mxu0 0.0
    %851 = vmatpush.msra.mxu0 0.0
    %852 = vmatpush.msra.mxu0 0.0
    %853 = vmatpush.msra.mxu0 0.0
    %854 = vmatpush.msra.mxu0 0.0
    %855 = vmatpush.msra.mxu0 0.0
    %856 = vmatpush.msra.mxu0 0.0
    %857 = vmatpush.msra.mxu0 %v842
    %858 = vmatpush.msra.mxu0 %v828
    %859 = vmatpush.msra.mxu0 %v826
    %860 = vmatmul.f32.gmra.mxu0 %v834
    %v861 = vpop.f32.mrf.mxu0
    %v862 = vadd.f32 0.0, %v861
    %863 = vmatmul.f32.gmra.mxu0 %v837
    %v864 = vpop.f32.mrf.mxu0
    %v865 = vadd.f32 0.0, %v864
    %866 = vmatmul.f32.gmra.mxu0 %v840
    %v867 = vpop.f32.mrf.mxu0
    %v868 = vadd.f32 0.0, %v867
    %869 = vdwg.mxu0
    %873 = vrot.lane.b32.xlu0 %v516, 8
    %v874 = vpop.permute.xlu0 %873
    %875 = vrot.lane.b32.xlu0 %v519, 8
    %v876 = vpop.permute.xlu0 %875
    %877 = vrot.lane.b32.xlu0 %v522, 8
    %v878 = vpop.permute.xlu0 %877
    %885 = vrot.lane.b32.xlu0 %v689, 16
    %v886 = vpop.permute.xlu0 %885
    %887 = vrot.lane.b32.xlu0 %v692, 16
    %v888 = vpop.permute.xlu0 %887
    %889 = vrot.lane.b32.xlu0 %v695, 16
    %v890 = vpop.permute.xlu0 %889
    %897 = vrot.lane.b32.xlu0 %v862, 24
    %v898 = vpop.permute.xlu0 %897
    %899 = vrot.lane.b32.xlu0 %v865, 24
    %v900 = vpop.permute.xlu0 %899
    %901 = vrot.lane.b32.xlu0 %v868, 24
    %v902 = vpop.permute.xlu0 %901
    %v906 = vsel %vm186, %v343, %v874
    %v907 = vsel %vm186, %v346, %v876
    %v908 = vsel %vm186, %v349, %v878
    %vm909 = vcmask 130048
    %v910 = vsel %vm909, %v906, %v886
    %v911 = vsel %vm909, %v907, %v888
    %v912 = vsel %vm909, %v908, %v890
    %vm913 = vcmask 195584
    %v914 = vsel %vm913, %v910, %v898
    %v915 = vsel %vm913, %v911, %v900
    %v916 = vsel %vm913, %v912, %v902
    %v917 = vld [vmem:[%s5] sm:$0xff]
    %v918 = vld [vmem:[%s5 + $0x8] sm:$0xff]
    %v919 = vld [vmem:[%s5 + $0x10] sm:$0xff]
    %v920 = vld [vmem:[%s5 + $0x18] sm:$0xff]
    %v921 = vperm.slane %v136, 1
    %v923 = vsel %vm50, %v914, 0
    %v926 = vsel %vm50, %v915, 0
    %v929 = vsel %vm50, %v916, 0
    %931 = vmatpush.msra.mxu0 0.0
    %932 = vmatpush.msra.mxu0 0.0
    %933 = vmatpush.msra.mxu0 0.0
    %934 = vmatpush.msra.mxu0 0.0
    %935 = vmatpush.msra.mxu0 0.0
    %936 = vmatpush.msra.mxu0 0.0
    %937 = vmatpush.msra.mxu0 0.0
    %938 = vmatpush.msra.mxu0 0.0
    %939 = vmatpush.msra.mxu0 0.0
    %940 = vmatpush.msra.mxu0 0.0
    %941 = vmatpush.msra.mxu0 0.0
    %942 = vmatpush.msra.mxu0 0.0
    %943 = vmatpush.msra.mxu0 %v920
    %944 = vmatpush.msra.mxu0 %v919
    %945 = vmatpush.msra.mxu0 %v918
    %946 = vmatpush.msra.mxu0 %v917
    %947 = vmatmul.f32.gmra.mxu0 %v923
    %v948 = vpop.f32.mrf.mxu0
    %v949 = vadd.f32 %v921, %v948
    %950 = vmatmul.f32.gmra.mxu0 %v926
    %v951 = vpop.f32.mrf.mxu0
    %v952 = vadd.f32 %v921, %v951
    %953 = vmatmul.f32.gmra.mxu0 %v929
    %v954 = vpop.f32.mrf.mxu0
    %v955 = vadd.f32 %v921, %v954
    %956 = vdwg.mxu0
    %v957 = vadd.f32 %v949, %v130
    %v958 = vadd.f32 %v952, %v131
    %v959 = vadd.f32 %v955, %v132
    %v960 = vsel %vm50, %v957, 0.0
    %961 = vadd.xlane.f32.xlu0 %v960
    %v962 = vpop.xlane.xlu0 %961
    %v963 = vsel %vm50, %v958, 0.0
    %964 = vadd.xlane.f32.xlu0 %v963
    %v965 = vpop.xlane.xlu0 %964
    %v966 = vsel %vm57, %v959, 0.0
    %967 = vadd.xlane.f32.xlu0 %v966
    %v968 = vpop.xlane.xlu0 %967
    %v969 = vmul.f32 %v962, %v67
    %v970 = vmul.f32 %v965, %v67
    %v971 = vmul.f32 %v968, %v67
    %v972 = vsub.f32 %v957, %v969
    %v973 = vsub.f32 %v958, %v970
    %v974 = vsub.f32 %v959, %v971
    %v975 = vmul.f32 %v972, %v972
    %v976 = vmul.f32 %v973, %v973
    %v977 = vmul.f32 %v974, %v974
    %v978 = vsel %vm50, %v975, 0.0
    %979 = vadd.xlane.f32.xlu0 %v978
    %v980 = vpop.xlane.xlu0 %979
    %v981 = vsel %vm50, %v976, 0.0
    %982 = vadd.xlane.f32.xlu0 %v981
    %v983 = vpop.xlane.xlu0 %982
    %v984 = vsel %vm57, %v977, 0.0
    %985 = vadd.xlane.f32.xlu0 %v984
    %v986 = vpop.xlane.xlu0 %985
    %v987 = vmul.f32 %v980, %v67
    %v988 = vmul.f32 %v983, %v67
    %v989 = vmul.f32 %v986, %v67
    %v990 = vadd.f32 %v987, 1e-12
    %v991 = vadd.f32 %v988, 1e-12
    %v992 = vadd.f32 %v989, 1e-12
    %v993 = vrsqrt.pop %v990
    %v994 = vmul.f32 %v993, %v990
    %v995 = vmul.f32 %v994, %v993
    %v996 = vmul.f32 0.5, %v995
    %v997 = vsub.f32 1.5, %v996
    %v998 = vmul.f32 %v993, %v997
    %vm999 = vweird.f32 %v990
    %vm1000 = vweird.f32 %v993
    %vm1001 = vmor %vm999, %vm1000
    %v1002 = vsel %vm1001, %v993, %v998
    %v1003 = vrsqrt.pop %v991
    %v1004 = vmul.f32 %v1003, %v991
    %v1005 = vmul.f32 %v1004, %v1003
    %v1006 = vmul.f32 0.5, %v1005
    %v1007 = vsub.f32 1.5, %v1006
    %v1008 = vmul.f32 %v1003, %v1007
    %vm1009 = vweird.f32 %v991
    %vm1010 = vweird.f32 %v1003
    %vm1011 = vmor %vm1009, %vm1010
    %v1012 = vsel %vm1011, %v1003, %v1008
    %v1013 = vrsqrt.pop %v992
    %v1014 = vmul.f32 %v1013, %v992
    %v1015 = vmul.f32 %v1014, %v1013
    %v1016 = vmul.f32 0.5, %v1015
    %v1017 = vsub.f32 1.5, %v1016
    %v1018 = vmul.f32 %v1013, %v1017
    %vm1019 = vweird.f32 %v992
    %vm1020 = vweird.f32 %v1013
    %vm1021 = vmor %vm1019, %vm1020
    %v1022 = vsel %vm1021, %v1013, %v1018
    %v1023 = vmul.f32 %v972, %v1002
    %v1024 = vmul.f32 %v973, %v1012
    %v1025 = vmul.f32 %v974, %v1022
    %v1026 = vperm.slane %v136, 2
    %v1027 = vmul.f32 %v1023, %v1026
    %v1028 = vmul.f32 %v1024, %v1026
    %v1029 = vmul.f32 %v1025, %v1026
    %v1030 = vperm.slane %v136, 3
    %v1031 = vadd.f32 %v1027, %v1030
    %v1032 = vadd.f32 %v1028, %v1030
    %v1033 = vadd.f32 %v1029, %v1030
    %v1034 = vld [vmem:[%s6] sm:$0xff]
    %v1035 = vld [vmem:[%s6 + $0x8] sm:$0xff]
    %v1036 = vld [vmem:[%s6 + $0x10] sm:$0xff]
    %v1037 = vld [vmem:[%s6 + $0x18] sm:$0xff]
    %v1038 = vperm.slane %v136, 4
    %v1040 = vsel %vm50, %v1031, 0
    %v1043 = vsel %vm50, %v1032, 0
    %v1046 = vsel %vm50, %v1033, 0
    %1048 = vmatpush.msra.mxu0 0.0
    %1049 = vmatpush.msra.mxu0 0.0
    %1050 = vmatpush.msra.mxu0 0.0
    %1051 = vmatpush.msra.mxu0 0.0
    %1052 = vmatpush.msra.mxu0 0.0
    %1053 = vmatpush.msra.mxu0 0.0
    %1054 = vmatpush.msra.mxu0 0.0
    %1055 = vmatpush.msra.mxu0 0.0
    %1056 = vmatpush.msra.mxu0 0.0
    %1057 = vmatpush.msra.mxu0 0.0
    %1058 = vmatpush.msra.mxu0 0.0
    %1059 = vmatpush.msra.mxu0 0.0
    %1060 = vmatpush.msra.mxu0 %v1037
    %1061 = vmatpush.msra.mxu0 %v1036
    %1062 = vmatpush.msra.mxu0 %v1035
    %1063 = vmatpush.msra.mxu0 %v1034
    %1064 = vmatmul.f32.gmra.mxu0 %v1040
    %v1065 = vpop.f32.mrf.mxu0
    %v1066 = vadd.f32 %v1038, %v1065
    %1067 = vmatmul.f32.gmra.mxu0 %v1043
    %v1068 = vpop.f32.mrf.mxu0
    %v1069 = vadd.f32 %v1038, %v1068
    %1070 = vmatmul.f32.gmra.mxu0 %v1046
    %v1071 = vpop.f32.mrf.mxu0
    %v1072 = vadd.f32 %v1038, %v1071
    %1073 = vdwg.mxu0
    %v1074 = vmul.f32 %v1066, 0.5
    %v1075 = vmul.f32 %v1069, 0.5
    %v1076 = vmul.f32 %v1072, 0.5
    %v1077 = vmul.f32 %v1066, 0.044715
    %v1078 = vmul.f32 %v1069, 0.044715
    %v1079 = vmul.f32 %v1072, 0.044715
    %v1080 = vmul.f32 %v1077, %v1066
    %v1081 = vmul.f32 %v1078, %v1069
    %v1082 = vmul.f32 %v1079, %v1072
    %v1083 = vmul.f32 %v1080, %v1066
    %v1084 = vmul.f32 %v1081, %v1069
    %v1085 = vmul.f32 %v1082, %v1072
    %v1086 = vadd.f32 %v1066, %v1083
    %v1087 = vadd.f32 %v1069, %v1084
    %v1088 = vadd.f32 %v1072, %v1085
    %v1089 = vmul.f32 %v1086, 0.7978846
    %v1090 = vmul.f32 %v1087, 0.7978846
    %v1091 = vmul.f32 %v1088, 0.7978846
    %v1092 = vtanh.pop %v1089
    %v1093 = vtanh.pop %v1090
    %v1094 = vtanh.pop %v1091
    %v1095 = vadd.f32 %v1092, 1.0
    %v1096 = vadd.f32 %v1093, 1.0
    %v1097 = vadd.f32 %v1094, 1.0
    %v1098 = vmul.f32 %v1074, %v1095
    %v1099 = vmul.f32 %v1075, %v1096
    %v1100 = vmul.f32 %v1076, %v1097
    %v1101 = vld [vmem:[%s7] sm:$0xff]
    %v1102 = vld [vmem:[%s7 + $0x8] sm:$0xff]
    %v1103 = vld [vmem:[%s7 + $0x10] sm:$0xff]
    %v1104 = vld [vmem:[%s7 + $0x18] sm:$0xff]
    %v1105 = vld [vmem:[%s7 + $0x20] sm:$0xff]
    %v1106 = vld [vmem:[%s7 + $0x28] sm:$0xff]
    %v1107 = vld [vmem:[%s7 + $0x30] sm:$0xff]
    %v1108 = vld [vmem:[%s7 + $0x38] sm:$0xff]
    %v1109 = vperm.slane %v136, 5
    %vm1110 = vcmask 523264
    %v1112 = vsel %vm1110, %v1098, 0
    %v1115 = vsel %vm1110, %v1099, 0
    %v1118 = vsel %vm1110, %v1100, 0
    %1120 = vmatpush.msra.mxu0 0.0
    %1121 = vmatpush.msra.mxu0 0.0
    %1122 = vmatpush.msra.mxu0 0.0
    %1123 = vmatpush.msra.mxu0 0.0
    %1124 = vmatpush.msra.mxu0 0.0
    %1125 = vmatpush.msra.mxu0 0.0
    %1126 = vmatpush.msra.mxu0 0.0
    %1127 = vmatpush.msra.mxu0 0.0
    %1128 = vmatpush.msra.mxu0 %v1108
    %1129 = vmatpush.msra.mxu0 %v1107
    %1130 = vmatpush.msra.mxu0 %v1106
    %1131 = vmatpush.msra.mxu0 %v1105
    %1132 = vmatpush.msra.mxu0 %v1104
    %1133 = vmatpush.msra.mxu0 %v1103
    %1134 = vmatpush.msra.mxu0 %v1102
    %1135 = vmatpush.msra.mxu0 %v1101
    %1136 = vmatmul.f32.gmra.mxu0 %v1112
    %v1137 = vpop.f32.mrf.mxu0
    %v1138 = vadd.f32 %v1109, %v1137
    %1139 = vmatmul.f32.gmra.mxu0 %v1115
    %v1140 = vpop.f32.mrf.mxu0
    %v1141 = vadd.f32 %v1109, %v1140
    %1142 = vmatmul.f32.gmra.mxu0 %v1118
    %v1143 = vpop.f32.mrf.mxu0
    %v1144 = vadd.f32 %v1109, %v1143
    %1145 = vdwg.mxu0
    %v1146 = vadd.f32 %v1138, %v1031
    %v1147 = vadd.f32 %v1141, %v1032
    %v1148 = vadd.f32 %v1144, %v1033
    %v1149 = vsel %vm50, %v1146, 0.0
    %1150 = vadd.xlane.f32.xlu0 %v1149
    %v1151 = vpop.xlane.xlu0 %1150
    %v1152 = vsel %vm50, %v1147, 0.0
    %1153 = vadd.xlane.f32.xlu0 %v1152
    %v1154 = vpop.xlane.xlu0 %1153
    %v1155 = vsel %vm57, %v1148, 0.0
    %1156 = vadd.xlane.f32.xlu0 %v1155
    %v1157 = vpop.xlane.xlu0 %1156
    %v1158 = vmul.f32 %v1151, %v67
    %v1159 = vmul.f32 %v1154, %v67
    %v1160 = vmul.f32 %v1157, %v67
    %v1161 = vsub.f32 %v1146, %v1158
    %v1162 = vsub.f32 %v1147, %v1159
    %v1163 = vsub.f32 %v1148, %v1160
    %v1164 = vmul.f32 %v1161, %v1161
    %v1165 = vmul.f32 %v1162, %v1162
    %v1166 = vmul.f32 %v1163, %v1163
    %v1167 = vsel %vm50, %v1164, 0.0
    %1168 = vadd.xlane.f32.xlu0 %v1167
    %v1169 = vpop.xlane.xlu0 %1168
    %v1170 = vsel %vm50, %v1165, 0.0
    %1171 = vadd.xlane.f32.xlu0 %v1170
    %v1172 = vpop.xlane.xlu0 %1171
    %v1173 = vsel %vm57, %v1166, 0.0
    %1174 = vadd.xlane.f32.xlu0 %v1173
    %v1175 = vpop.xlane.xlu0 %1174
    %v1176 = vmul.f32 %v1169, %v67
    %v1177 = vmul.f32 %v1172, %v67
    %v1178 = vmul.f32 %v1175, %v67
    %v1179 = vadd.f32 %v1176, 1e-12
    %v1180 = vadd.f32 %v1177, 1e-12
    %v1181 = vadd.f32 %v1178, 1e-12
    %v1182 = vrsqrt.pop %v1179
    %v1183 = vmul.f32 %v1182, %v1179
    %v1184 = vmul.f32 %v1183, %v1182
    %v1185 = vmul.f32 0.5, %v1184
    %v1186 = vsub.f32 1.5, %v1185
    %v1187 = vmul.f32 %v1182, %v1186
    %vm1188 = vweird.f32 %v1179
    %vm1189 = vweird.f32 %v1182
    %vm1190 = vmor %vm1188, %vm1189
    %v1191 = vsel %vm1190, %v1182, %v1187
    %v1192 = vrsqrt.pop %v1180
    %v1193 = vmul.f32 %v1192, %v1180
    %v1194 = vmul.f32 %v1193, %v1192
    %v1195 = vmul.f32 0.5, %v1194
    %v1196 = vsub.f32 1.5, %v1195
    %v1197 = vmul.f32 %v1192, %v1196
    %vm1198 = vweird.f32 %v1180
    %vm1199 = vweird.f32 %v1192
    %vm1200 = vmor %vm1198, %vm1199
    %v1201 = vsel %vm1200, %v1192, %v1197
    %v1202 = vrsqrt.pop %v1181
    %v1203 = vmul.f32 %v1202, %v1181
    %v1204 = vmul.f32 %v1203, %v1202
    %v1205 = vmul.f32 0.5, %v1204
    %v1206 = vsub.f32 1.5, %v1205
    %v1207 = vmul.f32 %v1202, %v1206
    %vm1208 = vweird.f32 %v1181
    %vm1209 = vweird.f32 %v1202
    %vm1210 = vmor %vm1208, %vm1209
    %v1211 = vsel %vm1210, %v1202, %v1207
    %v1212 = vmul.f32 %v1161, %v1191
    %v1213 = vmul.f32 %v1162, %v1201
    %v1214 = vmul.f32 %v1163, %v1211
    %v1215 = vperm.slane %v136, 6
    %v1216 = vmul.f32 %v1212, %v1215
    %v1217 = vmul.f32 %v1213, %v1215
    %v1218 = vmul.f32 %v1214, %v1215
    %v1219 = vperm.slane %v136, 7
    %v1220 = vadd.f32 %v1216, %v1219
    %v1221 = vadd.f32 %v1217, %v1219
    %v1222 = vadd.f32 %v1218, %v1219
    %s1223 = scalar_lea.vmem %s8, 8
    %v1224 = vld [vmem:[%s1223] sm:$0xff]
    %s1225 = scalar_lea.vmem %s4, 32
    %v1226 = vld [vmem:[%s1225] sm:$0xff]
    %v1227 = vld [vmem:[%s1225 + $0x8] sm:$0xff]
    %v1228 = vld [vmem:[%s1225 + $0x10] sm:$0xff]
    %v1229 = vld [vmem:[%s1225 + $0x18] sm:$0xff]
    %v1230 = vperm.slane %v1224, 0
    %v1232 = vsel %vm50, %v1220, 0
    %v1235 = vsel %vm50, %v1221, 0
    %v1238 = vsel %vm50, %v1222, 0
    %1240 = vmatpush.msra.mxu0 0.0
    %1241 = vmatpush.msra.mxu0 0.0
    %1242 = vmatpush.msra.mxu0 0.0
    %1243 = vmatpush.msra.mxu0 0.0
    %1244 = vmatpush.msra.mxu0 0.0
    %1245 = vmatpush.msra.mxu0 0.0
    %1246 = vmatpush.msra.mxu0 0.0
    %1247 = vmatpush.msra.mxu0 0.0
    %1248 = vmatpush.msra.mxu0 0.0
    %1249 = vmatpush.msra.mxu0 0.0
    %1250 = vmatpush.msra.mxu0 0.0
    %1251 = vmatpush.msra.mxu0 0.0
    %1252 = vmatpush.msra.mxu0 %v1229
    %1253 = vmatpush.msra.mxu0 %v1228
    %1254 = vmatpush.msra.mxu0 %v1227
    %1255 = vmatpush.msra.mxu0 %v1226
    %1256 = vmatmul.f32.gmra.mxu0 %v1232
    %v1257 = vpop.f32.mrf.mxu0
    %v1258 = vadd.f32 %v1230, %v1257
    %1259 = vmatmul.f32.gmra.mxu0 %v1235
    %v1260 = vpop.f32.mrf.mxu0
    %v1261 = vadd.f32 %v1230, %v1260
    %1262 = vmatmul.f32.gmra.mxu0 %v1238
    %v1263 = vpop.f32.mrf.mxu0
    %v1264 = vadd.f32 %v1230, %v1263
    %1265 = vdwg.mxu0
    %1269 = vrot.lane.b32.xlu0 %v1258, 96
    %v1270 = vpop.permute.xlu0 %1269
    %1271 = vrot.lane.b32.xlu0 %v1261, 96
    %v1272 = vpop.permute.xlu0 %1271
    %1273 = vrot.lane.b32.xlu0 %v1264, 96
    %v1274 = vpop.permute.xlu0 %1273
    %v1275 = vsel %vm186, %v1258, 0
    %v1277 = vsel %vm186, %v1261, 0
    %v1279 = vsel %vm186, %v1264, 0
    %v1281 = vsel %vm186, %v1270, 0
    %v1283 = vsel %vm186, %v1272, 0
    %v1285 = vsel %vm186, %v1274, 0
    %1287 = vmatpush.xpose.msra.mxu0 0.0
    %1288 = vmatpush.xpose.msra.mxu0 0.0
    %1289 = vmatpush.xpose.msra.mxu0 0.0
    %1290 = vmatpush.xpose.msra.mxu0 0.0
    %1291 = vmatpush.xpose.msra.mxu0 0.0
    %1292 = vmatpush.xpose.msra.mxu0 0.0
    %1293 = vmatpush.xpose.msra.mxu0 0.0
    %1294 = vmatpush.xpose.msra.mxu0 0.0
    %1295 = vmatpush.xpose.msra.mxu0 0.0
    %1296 = vmatpush.xpose.msra.mxu0 0.0
    %1297 = vmatpush.xpose.msra.mxu0 0.0
    %1298 = vmatpush.xpose.msra.mxu0 0.0
    %1299 = vmatpush.xpose.msra.mxu0 0.0
    %1300 = vmatpush.xpose.msra.mxu0 %v1285
    %1301 = vmatpush.xpose.msra.mxu0 %v1283
    %1302 = vmatpush.xpose.msra.mxu0 %v1281
    %1303 = vmatmul.f32.gmra.mxu0 %v1275
    %v1304 = vpop.f32.mrf.mxu0
    %v1305 = vadd.f32 0.0, %v1304
    %1306 = vmatmul.f32.gmra.mxu0 %v1277
    %v1307 = vpop.f32.mrf.mxu0
    %v1308 = vadd.f32 0.0, %v1307
    %1309 = vmatmul.f32.gmra.mxu0 %v1279
    %v1310 = vpop.f32.mrf.mxu0
    %v1311 = vadd.f32 0.0, %v1310
    %1312 = vdwg.mxu0
    %v1313 = vmul.f32 %v1305, 0.35355338
    %v1314 = vmul.f32 %v1308, 0.35355338
    %v1315 = vmul.f32 %v1311, 0.35355338
    %v1316 = vadd.f32 %v1313, %v133
    %v1317 = vadd.f32 %v1314, %v134
    %v1318 = vadd.f32 %v1315, %v135
    %v1319 = vsel %vm231, %v1316, -inf
    %1320 = vmax.xlane.f32.xlu0 %v1319
    %v1321 = vpop.xlane.xlu0 %1320
    %v1322 = vsel %vm231, %v1317, -inf
    %1323 = vmax.xlane.f32.xlu0 %v1322
    %v1324 = vpop.xlane.xlu0 %1323
    %v1325 = vsel %vm238, %v1318, -inf
    %1326 = vmax.xlane.f32.xlu0 %v1325
    %v1327 = vpop.xlane.xlu0 %1326
    %v1328 = vsub.f32 %v1316, %v1321
    %v1329 = vsub.f32 %v1317, %v1324
    %v1330 = vsub.f32 %v1318, %v1327
    %v1331 = vmul.f32 %v1328, 1.442695
    %v1332 = vpow.pop %v1331
    %v1333 = vmul.f32 %v1329, 1.442695
    %v1334 = vpow.pop %v1333
    %v1335 = vmul.f32 %v1330, 1.442695
    %v1336 = vpow.pop %v1335
    %v1337 = vsel %vm231, %v1332, 0.0
    %1338 = vadd.xlane.f32.xlu0 %v1337
    %v1339 = vpop.xlane.xlu0 %1338
    %v1340 = vsel %vm231, %v1334, 0.0
    %1341 = vadd.xlane.f32.xlu0 %v1340
    %v1342 = vpop.xlane.xlu0 %1341
    %v1343 = vsel %vm238, %v1336, 0.0
    %1344 = vadd.xlane.f32.xlu0 %v1343
    %v1345 = vpop.xlane.xlu0 %1344
    %v1346 = vrcp.pop %v1339
    %v1347 = vmul.f32 %v1339, %v1346
    %v1348 = vsub.f32 1.0, %v1347
    %v1349 = vmul.f32 %v1346, %v1348
    %v1350 = vadd.f32 %v1346, %v1349
    %vm1351 = vweird.f32 %v1339
    %vm1352 = vweird.f32 %v1346
    %vm1353 = vmor %vm1351, %vm1352
    %v1354 = vsel %vm1353, %v1346, %v1350
    %v1355 = vand.u32 2147483647, %v1339
    %vm1356 = vcmp.eq.f32.partialorder %v1355, 8.507059e+37
    %v1357 = vand.u32 %v1339, 2147483648
    %v1358 = vor.u32 1.1754944e-38, %v1357
    %v1359 = vsel %vm1356, %v1358, %v1354
    %v1360 = vmul.f32 %v1332, %v1359
    %v1361 = vrcp.pop %v1342
    %v1362 = vmul.f32 %v1342, %v1361
    %v1363 = vsub.f32 1.0, %v1362
    %v1364 = vmul.f32 %v1361, %v1363
    %v1365 = vadd.f32 %v1361, %v1364
    %vm1366 = vweird.f32 %v1342
    %vm1367 = vweird.f32 %v1361
    %vm1368 = vmor %vm1366, %vm1367
    %v1369 = vsel %vm1368, %v1361, %v1365
    %v1370 = vand.u32 2147483647, %v1342
    %vm1371 = vcmp.eq.f32.partialorder %v1370, 8.507059e+37
    %v1372 = vand.u32 %v1342, 2147483648
    %v1373 = vor.u32 1.1754944e-38, %v1372
    %v1374 = vsel %vm1371, %v1373, %v1369
    %v1375 = vmul.f32 %v1334, %v1374
    %v1376 = vrcp.pop %v1345
    %v1377 = vmul.f32 %v1345, %v1376
    %v1378 = vsub.f32 1.0, %v1377
    %v1379 = vmul.f32 %v1376, %v1378
    %v1380 = vadd.f32 %v1376, %v1379
    %vm1381 = vweird.f32 %v1345
    %vm1382 = vweird.f32 %v1376
    %vm1383 = vmor %vm1381, %vm1382
    %v1384 = vsel %vm1383, %v1376, %v1380
    %v1385 = vand.u32 2147483647, %v1345
    %vm1386 = vcmp.eq.f32.partialorder %v1385, 8.507059e+37
    %v1387 = vand.u32 %v1345, 2147483648
    %v1388 = vor.u32 1.1754944e-38, %v1387
    %v1389 = vsel %vm1386, %v1388, %v1384
    %v1390 = vmul.f32 %v1336, %v1389
    %1391 = vrot.lane.b32.xlu0 %v1258, 64
    %v1392 = vpop.permute.xlu0 %1391
    %1393 = vrot.lane.b32.xlu0 %v1261, 64
    %v1394 = vpop.permute.xlu0 %1393
    %1395 = vrot.lane.b32.xlu0 %v1264, 64
    %v1396 = vpop.permute.xlu0 %1395
    %v1400 = vsel %vm231, %v1360, 0
    %v1403 = vsel %vm231, %v1375, 0
    %v1406 = vsel %vm231, %v1390, 0
    %v1408 = vsel %vm322, %v1396, 0
    %1410 = vmatpush.msra.mxu0 0.0
    %1411 = vmatpush.msra.mxu0 0.0
    %1412 = vmatpush.msra.mxu0 0.0
    %1413 = vmatpush.msra.mxu0 0.0
    %1414 = vmatpush.msra.mxu0 0.0
    %1415 = vmatpush.msra.mxu0 0.0
    %1416 = vmatpush.msra.mxu0 0.0
    %1417 = vmatpush.msra.mxu0 0.0
    %1418 = vmatpush.msra.mxu0 0.0
    %1419 = vmatpush.msra.mxu0 0.0
    %1420 = vmatpush.msra.mxu0 0.0
    %1421 = vmatpush.msra.mxu0 0.0
    %1422 = vmatpush.msra.mxu0 0.0
    %1423 = vmatpush.msra.mxu0 %v1408
    %1424 = vmatpush.msra.mxu0 %v1394
    %1425 = vmatpush.msra.mxu0 %v1392
    %1426 = vmatmul.f32.gmra.mxu0 %v1400
    %v1427 = vpop.f32.mrf.mxu0
    %v1428 = vadd.f32 0.0, %v1427
    %1429 = vmatmul.f32.gmra.mxu0 %v1403
    %v1430 = vpop.f32.mrf.mxu0
    %v1431 = vadd.f32 0.0, %v1430
    %1432 = vmatmul.f32.gmra.mxu0 %v1406
    %v1433 = vpop.f32.mrf.mxu0
    %v1434 = vadd.f32 0.0, %v1433
    %1435 = vdwg.mxu0
    %1436 = vrot.lane.b32.xlu0 %v1258, 120
    %v1437 = vpop.permute.xlu0 %1436
    %1438 = vrot.lane.b32.xlu0 %v1261, 120
    %v1439 = vpop.permute.xlu0 %1438
    %1440 = vrot.lane.b32.xlu0 %v1264, 120
    %v1441 = vpop.permute.xlu0 %1440
    %1442 = vrot.lane.b32.xlu0 %v1258, 88
    %v1443 = vpop.permute.xlu0 %1442
    %1444 = vrot.lane.b32.xlu0 %v1261, 88
    %v1445 = vpop.permute.xlu0 %1444
    %1446 = vrot.lane.b32.xlu0 %v1264, 88
    %v1447 = vpop.permute.xlu0 %1446
    %v1448 = vsel %vm186, %v1437, 0
    %v1450 = vsel %vm186, %v1439, 0
    %v1452 = vsel %vm186, %v1441, 0
    %v1454 = vsel %vm186, %v1443, 0
    %v1456 = vsel %vm186, %v1445, 0
    %v1458 = vsel %vm186, %v1447, 0
    %1460 = vmatpush.xpose.msra.mxu0 0.0
    %1461 = vmatpush.xpose.msra.mxu0 0.0
    %1462 = vmatpush.xpose.msra.mxu0 0.0
    %1463 = vmatpush.xpose.msra.mxu0 0.0
    %1464 = vmatpush.xpose.msra.mxu0 0.0
    %1465 = vmatpush.xpose.msra.mxu0 0.0
    %1466 = vmatpush.xpose.msra.mxu0 0.0
    %1467 = vmatpush.xpose.msra.mxu0 0.0
    %1468 = vmatpush.xpose.msra.mxu0 0.0
    %1469 = vmatpush.xpose.msra.mxu0 0.0
    %1470 = vmatpush.xpose.msra.mxu0 0.0
    %1471 = vmatpush.xpose.msra.mxu0 0.0
    %1472 = vmatpush.xpose.msra.mxu0 0.0
    %1473 = vmatpush.xpose.msra.mxu0 %v1458
    %1474 = vmatpush.xpose.msra.mxu0 %v1456
    %1475 = vmatpush.xpose.msra.mxu0 %v1454
    %1476 = vmatmul.f32.gmra.mxu0 %v1448
    %v1477 = vpop.f32.mrf.mxu0
    %v1478 = vadd.f32 0.0, %v1477
    %1479 = vmatmul.f32.gmra.mxu0 %v1450
    %v1480 = vpop.f32.mrf.mxu0
    %v1481 = vadd.f32 0.0, %v1480
    %1482 = vmatmul.f32.gmra.mxu0 %v1452
    %v1483 = vpop.f32.mrf.mxu0
    %v1484 = vadd.f32 0.0, %v1483
    %1485 = vdwg.mxu0
    %v1486 = vmul.f32 %v1478, 0.35355338
    %v1487 = vmul.f32 %v1481, 0.35355338
    %v1488 = vmul.f32 %v1484, 0.35355338
    %v1489 = vadd.f32 %v1486, %v133
    %v1490 = vadd.f32 %v1487, %v134
    %v1491 = vadd.f32 %v1488, %v135
    %v1492 = vsel %vm231, %v1489, -inf
    %1493 = vmax.xlane.f32.xlu0 %v1492
    %v1494 = vpop.xlane.xlu0 %1493
    %v1495 = vsel %vm231, %v1490, -inf
    %1496 = vmax.xlane.f32.xlu0 %v1495
    %v1497 = vpop.xlane.xlu0 %1496
    %v1498 = vsel %vm238, %v1491, -inf
    %1499 = vmax.xlane.f32.xlu0 %v1498
    %v1500 = vpop.xlane.xlu0 %1499
    %v1501 = vsub.f32 %v1489, %v1494
    %v1502 = vsub.f32 %v1490, %v1497
    %v1503 = vsub.f32 %v1491, %v1500
    %v1504 = vmul.f32 %v1501, 1.442695
    %v1505 = vpow.pop %v1504
    %v1506 = vmul.f32 %v1502, 1.442695
    %v1507 = vpow.pop %v1506
    %v1508 = vmul.f32 %v1503, 1.442695
    %v1509 = vpow.pop %v1508
    %v1510 = vsel %vm231, %v1505, 0.0
    %1511 = vadd.xlane.f32.xlu0 %v1510
    %v1512 = vpop.xlane.xlu0 %1511
    %v1513 = vsel %vm231, %v1507, 0.0
    %1514 = vadd.xlane.f32.xlu0 %v1513
    %v1515 = vpop.xlane.xlu0 %1514
    %v1516 = vsel %vm238, %v1509, 0.0
    %1517 = vadd.xlane.f32.xlu0 %v1516
    %v1518 = vpop.xlane.xlu0 %1517
    %v1519 = vrcp.pop %v1512
    %v1520 = vmul.f32 %v1512, %v1519
    %v1521 = vsub.f32 1.0, %v1520
    %v1522 = vmul.f32 %v1519, %v1521
    %v1523 = vadd.f32 %v1519, %v1522
    %vm1524 = vweird.f32 %v1512
    %vm1525 = vweird.f32 %v1519
    %vm1526 = vmor %vm1524, %vm1525
    %v1527 = vsel %vm1526, %v1519, %v1523
    %v1528 = vand.u32 2147483647, %v1512
    %vm1529 = vcmp.eq.f32.partialorder %v1528, 8.507059e+37
    %v1530 = vand.u32 %v1512, 2147483648
    %v1531 = vor.u32 1.1754944e-38, %v1530
    %v1532 = vsel %vm1529, %v1531, %v1527
    %v1533 = vmul.f32 %v1505, %v1532
    %v1534 = vrcp.pop %v1515
    %v1535 = vmul.f32 %v1515, %v1534
    %v1536 = vsub.f32 1.0, %v1535
    %v1537 = vmul.f32 %v1534, %v1536
    %v1538 = vadd.f32 %v1534, %v1537
    %vm1539 = vweird.f32 %v1515
    %vm1540 = vweird.f32 %v1534
    %vm1541 = vmor %vm1539, %vm1540
    %v1542 = vsel %vm1541, %v1534, %v1538
    %v1543 = vand.u32 2147483647, %v1515
    %vm1544 = vcmp.eq.f32.partialorder %v1543, 8.507059e+37
    %v1545 = vand.u32 %v1515, 2147483648
    %v1546 = vor.u32 1.1754944e-38, %v1545
    %v1547 = vsel %vm1544, %v1546, %v1542
    %v1548 = vmul.f32 %v1507, %v1547
    %v1549 = vrcp.pop %v1518
    %v1550 = vmul.f32 %v1518, %v1549
    %v1551 = vsub.f32 1.0, %v1550
    %v1552 = vmul.f32 %v1549, %v1551
    %v1553 = vadd.f32 %v1549, %v1552
    %vm1554 = vweird.f32 %v1518
    %vm1555 = vweird.f32 %v1549
    %vm1556 = vmor %vm1554, %vm1555
    %v1557 = vsel %vm1556, %v1549, %v1553
    %v1558 = vand.u32 2147483647, %v1518
    %vm1559 = vcmp.eq.f32.partialorder %v1558, 8.507059e+37
    %v1560 = vand.u32 %v1518, 2147483648
    %v1561 = vor.u32 1.1754944e-38, %v1560
    %v1562 = vsel %vm1559, %v1561, %v1557
    %v1563 = vmul.f32 %v1509, %v1562
    %1564 = vrot.lane.b32.xlu0 %v1258, 56
    %v1565 = vpop.permute.xlu0 %1564
    %1566 = vrot.lane.b32.xlu0 %v1261, 56
    %v1567 = vpop.permute.xlu0 %1566
    %1568 = vrot.lane.b32.xlu0 %v1264, 56
    %v1569 = vpop.permute.xlu0 %1568
    %v1573 = vsel %vm231, %v1533, 0
    %v1576 = vsel %vm231, %v1548, 0
    %v1579 = vsel %vm231, %v1563, 0
    %v1581 = vsel %vm322, %v1569, 0
    %1583 = vmatpush.msra.mxu0 0.0
    %1584 = vmatpush.msra.mxu0 0.0
    %1585 = vmatpush.msra.mxu0 0.0
    %1586 = vmatpush.msra.mxu0 0.0
    %1587 = vmatpush.msra.mxu0 0.0
    %1588 = vmatpush.msra.mxu0 0.0
    %1589 = vmatpush.msra.mxu0 0.0
    %1590 = vmatpush.msra.mxu0 0.0
    %1591 = vmatpush.msra.mxu0 0.0
    %1592 = vmatpush.msra.mxu0 0.0
    %1593 = vmatpush.msra.mxu0 0.0
    %1594 = vmatpush.msra.mxu0 0.0
    %1595 = vmatpush.msra.mxu0 0.0
    %1596 = vmatpush.msra.mxu0 %v1581
    %1597 = vmatpush.msra.mxu0 %v1567
    %1598 = vmatpush.msra.mxu0 %v1565
    %1599 = vmatmul.f32.gmra.mxu0 %v1573
    %v1600 = vpop.f32.mrf.mxu0
    %v1601 = vadd.f32 0.0, %v1600
    %1602 = vmatmul.f32.gmra.mxu0 %v1576
    %v1603 = vpop.f32.mrf.mxu0
    %v1604 = vadd.f32 0.0, %v1603
    %1605 = vmatmul.f32.gmra.mxu0 %v1579
    %v1606 = vpop.f32.mrf.mxu0
    %v1607 = vadd.f32 0.0, %v1606
    %1608 = vdwg.mxu0
    %1609 = vrot.lane.b32.xlu0 %v1258, 112
    %v1610 = vpop.permute.xlu0 %1609
    %1611 = vrot.lane.b32.xlu0 %v1261, 112
    %v1612 = vpop.permute.xlu0 %1611
    %1613 = vrot.lane.b32.xlu0 %v1264, 112
    %v1614 = vpop.permute.xlu0 %1613
    %1615 = vrot.lane.b32.xlu0 %v1258, 80
    %v1616 = vpop.permute.xlu0 %1615
    %1617 = vrot.lane.b32.xlu0 %v1261, 80
    %v1618 = vpop.permute.xlu0 %1617
    %1619 = vrot.lane.b32.xlu0 %v1264, 80
    %v1620 = vpop.permute.xlu0 %1619
    %v1621 = vsel %vm186, %v1610, 0
    %v1623 = vsel %vm186, %v1612, 0
    %v1625 = vsel %vm186, %v1614, 0
    %v1627 = vsel %vm186, %v1616, 0
    %v1629 = vsel %vm186, %v1618, 0
    %v1631 = vsel %vm186, %v1620, 0
    %1633 = vmatpush.xpose.msra.mxu0 0.0
    %1634 = vmatpush.xpose.msra.mxu0 0.0
    %1635 = vmatpush.xpose.msra.mxu0 0.0
    %1636 = vmatpush.xpose.msra.mxu0 0.0
    %1637 = vmatpush.xpose.msra.mxu0 0.0
    %1638 = vmatpush.xpose.msra.mxu0 0.0
    %1639 = vmatpush.xpose.msra.mxu0 0.0
    %1640 = vmatpush.xpose.msra.mxu0 0.0
    %1641 = vmatpush.xpose.msra.mxu0 0.0
    %1642 = vmatpush.xpose.msra.mxu0 0.0
    %1643 = vmatpush.xpose.msra.mxu0 0.0
    %1644 = vmatpush.xpose.msra.mxu0 0.0
    %1645 = vmatpush.xpose.msra.mxu0 0.0
    %1646 = vmatpush.xpose.msra.mxu0 %v1631
    %1647 = vmatpush.xpose.msra.mxu0 %v1629
    %1648 = vmatpush.xpose.msra.mxu0 %v1627
    %1649 = vmatmul.f32.gmra.mxu0 %v1621
    %v1650 = vpop.f32.mrf.mxu0
    %v1651 = vadd.f32 0.0, %v1650
    %1652 = vmatmul.f32.gmra.mxu0 %v1623
    %v1653 = vpop.f32.mrf.mxu0
    %v1654 = vadd.f32 0.0, %v1653
    %1655 = vmatmul.f32.gmra.mxu0 %v1625
    %v1656 = vpop.f32.mrf.mxu0
    %v1657 = vadd.f32 0.0, %v1656
    %1658 = vdwg.mxu0
    %v1659 = vmul.f32 %v1651, 0.35355338
    %v1660 = vmul.f32 %v1654, 0.35355338
    %v1661 = vmul.f32 %v1657, 0.35355338
    %v1662 = vadd.f32 %v1659, %v133
    %v1663 = vadd.f32 %v1660, %v134
    %v1664 = vadd.f32 %v1661, %v135
    %v1665 = vsel %vm231, %v1662, -inf
    %1666 = vmax.xlane.f32.xlu0 %v1665
    %v1667 = vpop.xlane.xlu0 %1666
    %v1668 = vsel %vm231, %v1663, -inf
    %1669 = vmax.xlane.f32.xlu0 %v1668
    %v1670 = vpop.xlane.xlu0 %1669
    %v1671 = vsel %vm238, %v1664, -inf
    %1672 = vmax.xlane.f32.xlu0 %v1671
    %v1673 = vpop.xlane.xlu0 %1672
    %v1674 = vsub.f32 %v1662, %v1667
    %v1675 = vsub.f32 %v1663, %v1670
    %v1676 = vsub.f32 %v1664, %v1673
    %v1677 = vmul.f32 %v1674, 1.442695
    %v1678 = vpow.pop %v1677
    %v1679 = vmul.f32 %v1675, 1.442695
    %v1680 = vpow.pop %v1679
    %v1681 = vmul.f32 %v1676, 1.442695
    %v1682 = vpow.pop %v1681
    %v1683 = vsel %vm231, %v1678, 0.0
    %1684 = vadd.xlane.f32.xlu0 %v1683
    %v1685 = vpop.xlane.xlu0 %1684
    %v1686 = vsel %vm231, %v1680, 0.0
    %1687 = vadd.xlane.f32.xlu0 %v1686
    %v1688 = vpop.xlane.xlu0 %1687
    %v1689 = vsel %vm238, %v1682, 0.0
    %1690 = vadd.xlane.f32.xlu0 %v1689
    %v1691 = vpop.xlane.xlu0 %1690
    %v1692 = vrcp.pop %v1685
    %v1693 = vmul.f32 %v1685, %v1692
    %v1694 = vsub.f32 1.0, %v1693
    %v1695 = vmul.f32 %v1692, %v1694
    %v1696 = vadd.f32 %v1692, %v1695
    %vm1697 = vweird.f32 %v1685
    %vm1698 = vweird.f32 %v1692
    %vm1699 = vmor %vm1697, %vm1698
    %v1700 = vsel %vm1699, %v1692, %v1696
    %v1701 = vand.u32 2147483647, %v1685
    %vm1702 = vcmp.eq.f32.partialorder %v1701, 8.507059e+37
    %v1703 = vand.u32 %v1685, 2147483648
    %v1704 = vor.u32 1.1754944e-38, %v1703
    %v1705 = vsel %vm1702, %v1704, %v1700
    %v1706 = vmul.f32 %v1678, %v1705
    %v1707 = vrcp.pop %v1688
    %v1708 = vmul.f32 %v1688, %v1707
    %v1709 = vsub.f32 1.0, %v1708
    %v1710 = vmul.f32 %v1707, %v1709
    %v1711 = vadd.f32 %v1707, %v1710
    %vm1712 = vweird.f32 %v1688
    %vm1713 = vweird.f32 %v1707
    %vm1714 = vmor %vm1712, %vm1713
    %v1715 = vsel %vm1714, %v1707, %v1711
    %v1716 = vand.u32 2147483647, %v1688
    %vm1717 = vcmp.eq.f32.partialorder %v1716, 8.507059e+37
    %v1718 = vand.u32 %v1688, 2147483648
    %v1719 = vor.u32 1.1754944e-38, %v1718
    %v1720 = vsel %vm1717, %v1719, %v1715
    %v1721 = vmul.f32 %v1680, %v1720
    %v1722 = vrcp.pop %v1691
    %v1723 = vmul.f32 %v1691, %v1722
    %v1724 = vsub.f32 1.0, %v1723
    %v1725 = vmul.f32 %v1722, %v1724
    %v1726 = vadd.f32 %v1722, %v1725
    %vm1727 = vweird.f32 %v1691
    %vm1728 = vweird.f32 %v1722
    %vm1729 = vmor %vm1727, %vm1728
    %v1730 = vsel %vm1729, %v1722, %v1726
    %v1731 = vand.u32 2147483647, %v1691
    %vm1732 = vcmp.eq.f32.partialorder %v1731, 8.507059e+37
    %v1733 = vand.u32 %v1691, 2147483648
    %v1734 = vor.u32 1.1754944e-38, %v1733
    %v1735 = vsel %vm1732, %v1734, %v1730
    %v1736 = vmul.f32 %v1682, %v1735
    %1737 = vrot.lane.b32.xlu0 %v1258, 48
    %v1738 = vpop.permute.xlu0 %1737
    %1739 = vrot.lane.b32.xlu0 %v1261, 48
    %v1740 = vpop.permute.xlu0 %1739
    %1741 = vrot.lane.b32.xlu0 %v1264, 48
    %v1742 = vpop.permute.xlu0 %1741
    %v1746 = vsel %vm231, %v1706, 0
    %v1749 = vsel %vm231, %v1721, 0
    %v1752 = vsel %vm231, %v1736, 0
    %v1754 = vsel %vm322, %v1742, 0
    %1756 = vmatpush.msra.mxu0 0.0
    %1757 = vmatpush.msra.mxu0 0.0
    %1758 = vmatpush.msra.mxu0 0.0
    %1759 = vmatpush.msra.mxu0 0.0
    %1760 = vmatpush.msra.mxu0 0.0
    %1761 = vmatpush.msra.mxu0 0.0
    %1762 = vmatpush.msra.mxu0 0.0
    %1763 = vmatpush.msra.mxu0 0.0
    %1764 = vmatpush.msra.mxu0 0.0
    %1765 = vmatpush.msra.mxu0 0.0
    %1766 = vmatpush.msra.mxu0 0.0
    %1767 = vmatpush.msra.mxu0 0.0
    %1768 = vmatpush.msra.mxu0 0.0
    %1769 = vmatpush.msra.mxu0 %v1754
    %1770 = vmatpush.msra.mxu0 %v1740
    %1771 = vmatpush.msra.mxu0 %v1738
    %1772 = vmatmul.f32.gmra.mxu0 %v1746
    %v1773 = vpop.f32.mrf.mxu0
    %v1774 = vadd.f32 0.0, %v1773
    %1775 = vmatmul.f32.gmra.mxu0 %v1749
    %v1776 = vpop.f32.mrf.mxu0
    %v1777 = vadd.f32 0.0, %v1776
    %1778 = vmatmul.f32.gmra.mxu0 %v1752
    %v1779 = vpop.f32.mrf.mxu0
    %v1780 = vadd.f32 0.0, %v1779
    %1781 = vdwg.mxu0
    %1782 = vrot.lane.b32.xlu0 %v1258, 104
    %v1783 = vpop.permute.xlu0 %1782
    %1784 = vrot.lane.b32.xlu0 %v1261, 104
    %v1785 = vpop.permute.xlu0 %1784
    %1786 = vrot.lane.b32.xlu0 %v1264, 104
    %v1787 = vpop.permute.xlu0 %1786
    %1788 = vrot.lane.b32.xlu0 %v1258, 72
    %v1789 = vpop.permute.xlu0 %1788
    %1790 = vrot.lane.b32.xlu0 %v1261, 72
    %v1791 = vpop.permute.xlu0 %1790
    %1792 = vrot.lane.b32.xlu0 %v1264, 72
    %v1793 = vpop.permute.xlu0 %1792
    %v1794 = vsel %vm186, %v1783, 0
    %v1796 = vsel %vm186, %v1785, 0
    %v1798 = vsel %vm186, %v1787, 0
    %v1800 = vsel %vm186, %v1789, 0
    %v1802 = vsel %vm186, %v1791, 0
    %v1804 = vsel %vm186, %v1793, 0
    %1806 = vmatpush.xpose.msra.mxu0 0.0
    %1807 = vmatpush.xpose.msra.mxu0 0.0
    %1808 = vmatpush.xpose.msra.mxu0 0.0
    %1809 = vmatpush.xpose.msra.mxu0 0.0
    %1810 = vmatpush.xpose.msra.mxu0 0.0
    %1811 = vmatpush.xpose.msra.mxu0 0.0
    %1812 = vmatpush.xpose.msra.mxu0 0.0
    %1813 = vmatpush.xpose.msra.mxu0 0.0
    %1814 = vmatpush.xpose.msra.mxu0 0.0
    %1815 = vmatpush.xpose.msra.mxu0 0.0
    %1816 = vmatpush.xpose.msra.mxu0 0.0
    %1817 = vmatpush.xpose.msra.mxu0 0.0
    %1818 = vmatpush.xpose.msra.mxu0 0.0
    %1819 = vmatpush.xpose.msra.mxu0 %v1804
    %1820 = vmatpush.xpose.msra.mxu0 %v1802
    %1821 = vmatpush.xpose.msra.mxu0 %v1800
    %1822 = vmatmul.f32.gmra.mxu0 %v1794
    %v1823 = vpop.f32.mrf.mxu0
    %v1824 = vadd.f32 0.0, %v1823
    %1825 = vmatmul.f32.gmra.mxu0 %v1796
    %v1826 = vpop.f32.mrf.mxu0
    %v1827 = vadd.f32 0.0, %v1826
    %1828 = vmatmul.f32.gmra.mxu0 %v1798
    %v1829 = vpop.f32.mrf.mxu0
    %v1830 = vadd.f32 0.0, %v1829
    %1831 = vdwg.mxu0
    %v1832 = vmul.f32 %v1824, 0.35355338
    %v1833 = vmul.f32 %v1827, 0.35355338
    %v1834 = vmul.f32 %v1830, 0.35355338
    %v1835 = vadd.f32 %v1832, %v133
    %v1836 = vadd.f32 %v1833, %v134
    %v1837 = vadd.f32 %v1834, %v135
    %v1838 = vsel %vm231, %v1835, -inf
    %1839 = vmax.xlane.f32.xlu0 %v1838
    %v1840 = vpop.xlane.xlu0 %1839
    %v1841 = vsel %vm231, %v1836, -inf
    %1842 = vmax.xlane.f32.xlu0 %v1841
    %v1843 = vpop.xlane.xlu0 %1842
    %v1844 = vsel %vm238, %v1837, -inf
    %1845 = vmax.xlane.f32.xlu0 %v1844
    %v1846 = vpop.xlane.xlu0 %1845
    %v1847 = vsub.f32 %v1835, %v1840
    %v1848 = vsub.f32 %v1836, %v1843
    %v1849 = vsub.f32 %v1837, %v1846
    %v1850 = vmul.f32 %v1847, 1.442695
    %v1851 = vpow.pop %v1850
    %v1852 = vmul.f32 %v1848, 1.442695
    %v1853 = vpow.pop %v1852
    %v1854 = vmul.f32 %v1849, 1.442695
    %v1855 = vpow.pop %v1854
    %v1856 = vsel %vm231, %v1851, 0.0
    %1857 = vadd.xlane.f32.xlu0 %v1856
    %v1858 = vpop.xlane.xlu0 %1857
    %v1859 = vsel %vm231, %v1853, 0.0
    %1860 = vadd.xlane.f32.xlu0 %v1859
    %v1861 = vpop.xlane.xlu0 %1860
    %v1862 = vsel %vm238, %v1855, 0.0
    %1863 = vadd.xlane.f32.xlu0 %v1862
    %v1864 = vpop.xlane.xlu0 %1863
    %v1865 = vrcp.pop %v1858
    %v1866 = vmul.f32 %v1858, %v1865
    %v1867 = vsub.f32 1.0, %v1866
    %v1868 = vmul.f32 %v1865, %v1867
    %v1869 = vadd.f32 %v1865, %v1868
    %vm1870 = vweird.f32 %v1858
    %vm1871 = vweird.f32 %v1865
    %vm1872 = vmor %vm1870, %vm1871
    %v1873 = vsel %vm1872, %v1865, %v1869
    %v1874 = vand.u32 2147483647, %v1858
    %vm1875 = vcmp.eq.f32.partialorder %v1874, 8.507059e+37
    %v1876 = vand.u32 %v1858, 2147483648
    %v1877 = vor.u32 1.1754944e-38, %v1876
    %v1878 = vsel %vm1875, %v1877, %v1873
    %v1879 = vmul.f32 %v1851, %v1878
    %v1880 = vrcp.pop %v1861
    %v1881 = vmul.f32 %v1861, %v1880
    %v1882 = vsub.f32 1.0, %v1881
    %v1883 = vmul.f32 %v1880, %v1882
    %v1884 = vadd.f32 %v1880, %v1883
    %vm1885 = vweird.f32 %v1861
    %vm1886 = vweird.f32 %v1880
    %vm1887 = vmor %vm1885, %vm1886
    %v1888 = vsel %vm1887, %v1880, %v1884
    %v1889 = vand.u32 2147483647, %v1861
    %vm1890 = vcmp.eq.f32.partialorder %v1889, 8.507059e+37
    %v1891 = vand.u32 %v1861, 2147483648
    %v1892 = vor.u32 1.1754944e-38, %v1891
    %v1893 = vsel %vm1890, %v1892, %v1888
    %v1894 = vmul.f32 %v1853, %v1893
    %v1895 = vrcp.pop %v1864
    %v1896 = vmul.f32 %v1864, %v1895
    %v1897 = vsub.f32 1.0, %v1896
    %v1898 = vmul.f32 %v1895, %v1897
    %v1899 = vadd.f32 %v1895, %v1898
    %vm1900 = vweird.f32 %v1864
    %vm1901 = vweird.f32 %v1895
    %vm1902 = vmor %vm1900, %vm1901
    %v1903 = vsel %vm1902, %v1895, %v1899
    %v1904 = vand.u32 2147483647, %v1864
    %vm1905 = vcmp.eq.f32.partialorder %v1904, 8.507059e+37
    %v1906 = vand.u32 %v1864, 2147483648
    %v1907 = vor.u32 1.1754944e-38, %v1906
    %v1908 = vsel %vm1905, %v1907, %v1903
    %v1909 = vmul.f32 %v1855, %v1908
    %1910 = vrot.lane.b32.xlu0 %v1258, 40
    %v1911 = vpop.permute.xlu0 %1910
    %1912 = vrot.lane.b32.xlu0 %v1261, 40
    %v1913 = vpop.permute.xlu0 %1912
    %1914 = vrot.lane.b32.xlu0 %v1264, 40
    %v1915 = vpop.permute.xlu0 %1914
    %v1919 = vsel %vm231, %v1879, 0
    %v1922 = vsel %vm231, %v1894, 0
    %v1925 = vsel %vm231, %v1909, 0
    %v1927 = vsel %vm322, %v1915, 0
    %1929 = vmatpush.msra.mxu0 0.0
    %1930 = vmatpush.msra.mxu0 0.0
    %1931 = vmatpush.msra.mxu0 0.0
    %1932 = vmatpush.msra.mxu0 0.0
    %1933 = vmatpush.msra.mxu0 0.0
    %1934 = vmatpush.msra.mxu0 0.0
    %1935 = vmatpush.msra.mxu0 0.0
    %1936 = vmatpush.msra.mxu0 0.0
    %1937 = vmatpush.msra.mxu0 0.0
    %1938 = vmatpush.msra.mxu0 0.0
    %1939 = vmatpush.msra.mxu0 0.0
    %1940 = vmatpush.msra.mxu0 0.0
    %1941 = vmatpush.msra.mxu0 0.0
    %1942 = vmatpush.msra.mxu0 %v1927
    %1943 = vmatpush.msra.mxu0 %v1913
    %1944 = vmatpush.msra.mxu0 %v1911
    %1945 = vmatmul.f32.gmra.mxu0 %v1919
    %v1946 = vpop.f32.mrf.mxu0
    %v1947 = vadd.f32 0.0, %v1946
    %1948 = vmatmul.f32.gmra.mxu0 %v1922
    %v1949 = vpop.f32.mrf.mxu0
    %v1950 = vadd.f32 0.0, %v1949
    %1951 = vmatmul.f32.gmra.mxu0 %v1925
    %v1952 = vpop.f32.mrf.mxu0
    %v1953 = vadd.f32 0.0, %v1952
    %1954 = vdwg.mxu0
    %1958 = vrot.lane.b32.xlu0 %v1601, 8
    %v1959 = vpop.permute.xlu0 %1958
    %1960 = vrot.lane.b32.xlu0 %v1604, 8
    %v1961 = vpop.permute.xlu0 %1960
    %1962 = vrot.lane.b32.xlu0 %v1607, 8
    %v1963 = vpop.permute.xlu0 %1962
    %1970 = vrot.lane.b32.xlu0 %v1774, 16
    %v1971 = vpop.permute.xlu0 %1970
    %1972 = vrot.lane.b32.xlu0 %v1777, 16
    %v1973 = vpop.permute.xlu0 %1972
    %1974 = vrot.lane.b32.xlu0 %v1780, 16
    %v1975 = vpop.permute.xlu0 %1974
    %1982 = vrot.lane.b32.xlu0 %v1947, 24
    %v1983 = vpop.permute.xlu0 %1982
    %1984 = vrot.lane.b32.xlu0 %v1950, 24
    %v1985 = vpop.permute.xlu0 %1984
    %1986 = vrot.lane.b32.xlu0 %v1953, 24
    %v1987 = vpop.permute.xlu0 %1986
    %v1991 = vsel %vm186, %v1428, %v1959
    %v1992 = vsel %vm186, %v1431, %v1961
    %v1993 = vsel %vm186, %v1434, %v1963
    %v1994 = vsel %vm909, %v1991, %v1971
    %v1995 = vsel %vm909, %v1992, %v1973
    %v1996 = vsel %vm909, %v1993, %v1975
    %v1997 = vsel %vm913, %v1994, %v1983
    %v1998 = vsel %vm913, %v1995, %v1985
    %v1999 = vsel %vm913, %v1996, %v1987
    %s2000 = scalar_lea.vmem %s5, 32
    %v2001 = vld [vmem:[%s2000] sm:$0xff]
    %v2002 = vld [vmem:[%s2000 + $0x8] sm:$0xff]
    %v2003 = vld [vmem:[%s2000 + $0x10] sm:$0xff]
    %v2004 = vld [vmem:[%s2000 + $0x18] sm:$0xff]
    %v2005 = vperm.slane %v1224, 1
    %v2007 = vsel %vm50, %v1997, 0
    %v2010 = vsel %vm50, %v1998, 0
    %v2013 = vsel %vm50, %v1999, 0
    %2015 = vmatpush.msra.mxu0 0.0
    %2016 = vmatpush.msra.mxu0 0.0
    %2017 = vmatpush.msra.mxu0 0.0
    %2018 = vmatpush.msra.mxu0 0.0
    %2019 = vmatpush.msra.mxu0 0.0
    %2020 = vmatpush.msra.mxu0 0.0
    %2021 = vmatpush.msra.mxu0 0.0
    %2022 = vmatpush.msra.mxu0 0.0
    %2023 = vmatpush.msra.mxu0 0.0
    %2024 = vmatpush.msra.mxu0 0.0
    %2025 = vmatpush.msra.mxu0 0.0
    %2026 = vmatpush.msra.mxu0 0.0
    %2027 = vmatpush.msra.mxu0 %v2004
    %2028 = vmatpush.msra.mxu0 %v2003
    %2029 = vmatpush.msra.mxu0 %v2002
    %2030 = vmatpush.msra.mxu0 %v2001
    %2031 = vmatmul.f32.gmra.mxu0 %v2007
    %v2032 = vpop.f32.mrf.mxu0
    %v2033 = vadd.f32 %v2005, %v2032
    %2034 = vmatmul.f32.gmra.mxu0 %v2010
    %v2035 = vpop.f32.mrf.mxu0
    %v2036 = vadd.f32 %v2005, %v2035
    %2037 = vmatmul.f32.gmra.mxu0 %v2013
    %v2038 = vpop.f32.mrf.mxu0
    %v2039 = vadd.f32 %v2005, %v2038
    %2040 = vdwg.mxu0
    %v2041 = vadd.f32 %v2033, %v1220
    %v2042 = vadd.f32 %v2036, %v1221
    %v2043 = vadd.f32 %v2039, %v1222
    %v2044 = vsel %vm50, %v2041, 0.0
    %2045 = vadd.xlane.f32.xlu0 %v2044
    %v2046 = vpop.xlane.xlu0 %2045
    %v2047 = vsel %vm50, %v2042, 0.0
    %2048 = vadd.xlane.f32.xlu0 %v2047
    %v2049 = vpop.xlane.xlu0 %2048
    %v2050 = vsel %vm57, %v2043, 0.0
    %2051 = vadd.xlane.f32.xlu0 %v2050
    %v2052 = vpop.xlane.xlu0 %2051
    %v2053 = vmul.f32 %v2046, %v67
    %v2054 = vmul.f32 %v2049, %v67
    %v2055 = vmul.f32 %v2052, %v67
    %v2056 = vsub.f32 %v2041, %v2053
    %v2057 = vsub.f32 %v2042, %v2054
    %v2058 = vsub.f32 %v2043, %v2055
    %v2059 = vmul.f32 %v2056, %v2056
    %v2060 = vmul.f32 %v2057, %v2057
    %v2061 = vmul.f32 %v2058, %v2058
    %v2062 = vsel %vm50, %v2059, 0.0
    %2063 = vadd.xlane.f32.xlu0 %v2062
    %v2064 = vpop.xlane.xlu0 %2063
    %v2065 = vsel %vm50, %v2060, 0.0
    %2066 = vadd.xlane.f32.xlu0 %v2065
    %v2067 = vpop.xlane.xlu0 %2066
    %v2068 = vsel %vm57, %v2061, 0.0
    %2069 = vadd.xlane.f32.xlu0 %v2068
    %v2070 = vpop.xlane.xlu0 %2069
    %v2071 = vmul.f32 %v2064, %v67
    %v2072 = vmul.f32 %v2067, %v67
    %v2073 = vmul.f32 %v2070, %v67
    %v2074 = vadd.f32 %v2071, 1e-12
    %v2075 = vadd.f32 %v2072, 1e-12
    %v2076 = vadd.f32 %v2073, 1e-12
    %v2077 = vrsqrt.pop %v2074
    %v2078 = vmul.f32 %v2077, %v2074
    %v2079 = vmul.f32 %v2078, %v2077
    %v2080 = vmul.f32 0.5, %v2079
    %v2081 = vsub.f32 1.5, %v2080
    %v2082 = vmul.f32 %v2077, %v2081
    %vm2083 = vweird.f32 %v2074
    %vm2084 = vweird.f32 %v2077
    %vm2085 = vmor %vm2083, %vm2084
    %v2086 = vsel %vm2085, %v2077, %v2082
    %v2087 = vrsqrt.pop %v2075
    %v2088 = vmul.f32 %v2087, %v2075
    %v2089 = vmul.f32 %v2088, %v2087
    %v2090 = vmul.f32 0.5, %v2089
    %v2091 = vsub.f32 1.5, %v2090
    %v2092 = vmul.f32 %v2087, %v2091
    %vm2093 = vweird.f32 %v2075
    %vm2094 = vweird.f32 %v2087
    %vm2095 = vmor %vm2093, %vm2094
    %v2096 = vsel %vm2095, %v2087, %v2092
    %v2097 = vrsqrt.pop %v2076
    %v2098 = vmul.f32 %v2097, %v2076
    %v2099 = vmul.f32 %v2098, %v2097
    %v2100 = vmul.f32 0.5, %v2099
    %v2101 = vsub.f32 1.5, %v2100
    %v2102 = vmul.f32 %v2097, %v2101
    %vm2103 = vweird.f32 %v2076
    %vm2104 = vweird.f32 %v2097
    %vm2105 = vmor %vm2103, %vm2104
    %v2106 = vsel %vm2105, %v2097, %v2102
    %v2107 = vmul.f32 %v2056, %v2086
    %v2108 = vmul.f32 %v2057, %v2096
    %v2109 = vmul.f32 %v2058, %v2106
    %v2110 = vperm.slane %v1224, 2
    %v2111 = vmul.f32 %v2107, %v2110
    %v2112 = vmul.f32 %v2108, %v2110
    %v2113 = vmul.f32 %v2109, %v2110
    %v2114 = vperm.slane %v1224, 3
    %v2115 = vadd.f32 %v2111, %v2114
    %v2116 = vadd.f32 %v2112, %v2114
    %v2117 = vadd.f32 %v2113, %v2114
    %s2118 = scalar_lea.vmem %s6, 32
    %v2119 = vld [vmem:[%s2118] sm:$0xff]
    %v2120 = vld [vmem:[%s2118 + $0x8] sm:$0xff]
    %v2121 = vld [vmem:[%s2118 + $0x10] sm:$0xff]
    %v2122 = vld [vmem:[%s2118 + $0x18] sm:$0xff]
    %v2123 = vperm.slane %v1224, 4
    %v2125 = vsel %vm50, %v2115, 0
    %v2128 = vsel %vm50, %v2116, 0
    %v2131 = vsel %vm50, %v2117, 0
    %2133 = vmatpush.msra.mxu0 0.0
    %2134 = vmatpush.msra.mxu0 0.0
    %2135 = vmatpush.msra.mxu0 0.0
    %2136 = vmatpush.msra.mxu0 0.0
    %2137 = vmatpush.msra.mxu0 0.0
    %2138 = vmatpush.msra.mxu0 0.0
    %2139 = vmatpush.msra.mxu0 0.0
    %2140 = vmatpush.msra.mxu0 0.0
    %2141 = vmatpush.msra.mxu0 0.0
    %2142 = vmatpush.msra.mxu0 0.0
    %2143 = vmatpush.msra.mxu0 0.0
    %2144 = vmatpush.msra.mxu0 0.0
    %2145 = vmatpush.msra.mxu0 %v2122
    %2146 = vmatpush.msra.mxu0 %v2121
    %2147 = vmatpush.msra.mxu0 %v2120
    %2148 = vmatpush.msra.mxu0 %v2119
    %2149 = vmatmul.f32.gmra.mxu0 %v2125
    %v2150 = vpop.f32.mrf.mxu0
    %v2151 = vadd.f32 %v2123, %v2150
    %2152 = vmatmul.f32.gmra.mxu0 %v2128
    %v2153 = vpop.f32.mrf.mxu0
    %v2154 = vadd.f32 %v2123, %v2153
    %2155 = vmatmul.f32.gmra.mxu0 %v2131
    %v2156 = vpop.f32.mrf.mxu0
    %v2157 = vadd.f32 %v2123, %v2156
    %2158 = vdwg.mxu0
    %v2159 = vmul.f32 %v2151, 0.5
    %v2160 = vmul.f32 %v2154, 0.5
    %v2161 = vmul.f32 %v2157, 0.5
    %v2162 = vmul.f32 %v2151, 0.044715
    %v2163 = vmul.f32 %v2154, 0.044715
    %v2164 = vmul.f32 %v2157, 0.044715
    %v2165 = vmul.f32 %v2162, %v2151
    %v2166 = vmul.f32 %v2163, %v2154
    %v2167 = vmul.f32 %v2164, %v2157
    %v2168 = vmul.f32 %v2165, %v2151
    %v2169 = vmul.f32 %v2166, %v2154
    %v2170 = vmul.f32 %v2167, %v2157
    %v2171 = vadd.f32 %v2151, %v2168
    %v2172 = vadd.f32 %v2154, %v2169
    %v2173 = vadd.f32 %v2157, %v2170
    %v2174 = vmul.f32 %v2171, 0.7978846
    %v2175 = vmul.f32 %v2172, 0.7978846
    %v2176 = vmul.f32 %v2173, 0.7978846
    %v2177 = vtanh.pop %v2174
    %v2178 = vtanh.pop %v2175
    %v2179 = vtanh.pop %v2176
    %v2180 = vadd.f32 %v2177, 1.0
    %v2181 = vadd.f32 %v2178, 1.0
    %v2182 = vadd.f32 %v2179, 1.0
    %v2183 = vmul.f32 %v2159, %v2180
    %v2184 = vmul.f32 %v2160, %v2181
    %v2185 = vmul.f32 %v2161, %v2182
    %s2186 = scalar_lea.vmem %s7, 64
    %v2187 = vld [vmem:[%s2186] sm:$0xff]
    %v2188 = vld [vmem:[%s2186 + $0x8] sm:$0xff]
    %v2189 = vld [vmem:[%s2186 + $0x10] sm:$0xff]
    %v2190 = vld [vmem:[%s2186 + $0x18] sm:$0xff]
    %v2191 = vld [vmem:[%s2186 + $0x20] sm:$0xff]
    %v2192 = vld [vmem:[%s2186 + $0x28] sm:$0xff]
    %v2193 = vld [vmem:[%s2186 + $0x30] sm:$0xff]
    %v2194 = vld [vmem:[%s2186 + $0x38] sm:$0xff]
    %v2195 = vperm.slane %v1224, 5
    %v2197 = vsel %vm1110, %v2183, 0
    %v2200 = vsel %vm1110, %v2184, 0
    %v2203 = vsel %vm1110, %v2185, 0
    %2205 = vmatpush.msra.mxu0 0.0
    %2206 = vmatpush.msra.mxu0 0.0
    %2207 = vmatpush.msra.mxu0 0.0
    %2208 = vmatpush.msra.mxu0 0.0
    %2209 = vmatpush.msra.mxu0 0.0
    %2210 = vmatpush.msra.mxu0 0.0
    %2211 = vmatpush.msra.mxu0 0.0
    %2212 = vmatpush.msra.mxu0 0.0
    %2213 = vmatpush.msra.mxu0 %v2194
    %2214 = vmatpush.msra.mxu0 %v2193
    %2215 = vmatpush.msra.mxu0 %v2192
    %2216 = vmatpush.msra.mxu0 %v2191
    %2217 = vmatpush.msra.mxu0 %v2190
    %2218 = vmatpush.msra.mxu0 %v2189
    %2219 = vmatpush.msra.mxu0 %v2188
    %2220 = vmatpush.msra.mxu0 %v2187
    %2221 = vmatmul.f32.gmra.mxu0 %v2197
    %v2222 = vpop.f32.mrf.mxu0
    %v2223 = vadd.f32 %v2195, %v2222
    %2224 = vmatmul.f32.gmra.mxu0 %v2200
    %v2225 = vpop.f32.mrf.mxu0
    %v2226 = vadd.f32 %v2195, %v2225
    %2227 = vmatmul.f32.gmra.mxu0 %v2203
    %v2228 = vpop.f32.mrf.mxu0
    %v2229 = vadd.f32 %v2195, %v2228
    %2230 = vdwg.mxu0
    %v2231 = vadd.f32 %v2223, %v2115
    %v2232 = vadd.f32 %v2226, %v2116
    %v2233 = vadd.f32 %v2229, %v2117
    %v2234 = vsel %vm50, %v2231, 0.0
    %2235 = vadd.xlane.f32.xlu0 %v2234
    %v2236 = vpop.xlane.xlu0 %2235
    %v2237 = vsel %vm50, %v2232, 0.0
    %2238 = vadd.xlane.f32.xlu0 %v2237
    %v2239 = vpop.xlane.xlu0 %2238
    %v2240 = vsel %vm57, %v2233, 0.0
    %2241 = vadd.xlane.f32.xlu0 %v2240
    %v2242 = vpop.xlane.xlu0 %2241
    %v2243 = vmul.f32 %v2236, %v67
    %v2244 = vmul.f32 %v2239, %v67
    %v2245 = vmul.f32 %v2242, %v67
    %v2246 = vsub.f32 %v2231, %v2243
    %v2247 = vsub.f32 %v2232, %v2244
    %v2248 = vsub.f32 %v2233, %v2245
    %v2249 = vmul.f32 %v2246, %v2246
    %v2250 = vmul.f32 %v2247, %v2247
    %v2251 = vmul.f32 %v2248, %v2248
    %v2252 = vsel %vm50, %v2249, 0.0
    %2253 = vadd.xlane.f32.xlu0 %v2252
    %v2254 = vpop.xlane.xlu0 %2253
    %v2255 = vsel %vm50, %v2250, 0.0
    %2256 = vadd.xlane.f32.xlu0 %v2255
    %v2257 = vpop.xlane.xlu0 %2256
    %v2258 = vsel %vm57, %v2251, 0.0
    %2259 = vadd.xlane.f32.xlu0 %v2258
    %v2260 = vpop.xlane.xlu0 %2259
    %v2261 = vmul.f32 %v2254, %v67
    %v2262 = vmul.f32 %v2257, %v67
    %v2263 = vmul.f32 %v2260, %v67
    %v2264 = vadd.f32 %v2261, 1e-12
    %v2265 = vadd.f32 %v2262, 1e-12
    %v2266 = vadd.f32 %v2263, 1e-12
    %v2267 = vrsqrt.pop %v2264
    %v2268 = vmul.f32 %v2267, %v2264
    %v2269 = vmul.f32 %v2268, %v2267
    %v2270 = vmul.f32 0.5, %v2269
    %v2271 = vsub.f32 1.5, %v2270
    %v2272 = vmul.f32 %v2267, %v2271
    %vm2273 = vweird.f32 %v2264
    %vm2274 = vweird.f32 %v2267
    %vm2275 = vmor %vm2273, %vm2274
    %v2276 = vsel %vm2275, %v2267, %v2272
    %v2277 = vrsqrt.pop %v2265
    %v2278 = vmul.f32 %v2277, %v2265
    %v2279 = vmul.f32 %v2278, %v2277
    %v2280 = vmul.f32 0.5, %v2279
    %v2281 = vsub.f32 1.5, %v2280
    %v2282 = vmul.f32 %v2277, %v2281
    %vm2283 = vweird.f32 %v2265
    %vm2284 = vweird.f32 %v2277
    %vm2285 = vmor %vm2283, %vm2284
    %v2286 = vsel %vm2285, %v2277, %v2282
    %v2287 = vrsqrt.pop %v2266
    %v2288 = vmul.f32 %v2287, %v2266
    %v2289 = vmul.f32 %v2288, %v2287
    %v2290 = vmul.f32 0.5, %v2289
    %v2291 = vsub.f32 1.5, %v2290
    %v2292 = vmul.f32 %v2287, %v2291
    %vm2293 = vweird.f32 %v2266
    %vm2294 = vweird.f32 %v2287
    %vm2295 = vmor %vm2293, %vm2294
    %v2296 = vsel %vm2295, %v2287, %v2292
    %v2297 = vmul.f32 %v2246, %v2276
    %v2298 = vmul.f32 %v2247, %v2286
    %v2299 = vmul.f32 %v2248, %v2296
    %v2300 = vperm.slane %v1224, 6
    %v2301 = vmul.f32 %v2297, %v2300
    %v2302 = vmul.f32 %v2298, %v2300
    %v2303 = vmul.f32 %v2299, %v2300
    %v2304 = vperm.slane %v1224, 7
    %v2305 = vadd.f32 %v2301, %v2304
    %v2306 = vadd.f32 %v2302, %v2304
    %v2307 = vadd.f32 %v2303, %v2304
    %v2308 = vld [vmem:[%s2] sm:$0xff]
    %v2309 = vld [vmem:[%s2 + $0x8] sm:$0xff]
    %v2311 = vsel %vm231, %v2308, 0
    %v2314 = vsel %vm231, %v2309, 0
    %v2317 = vsel %vm322, %v2307, 0
    %2319 = vmatpush.msra.mxu0 0.0
    %2320 = vmatpush.msra.mxu0 0.0
    %2321 = vmatpush.msra.mxu0 0.0
    %2322 = vmatpush.msra.mxu0 0.0
    %2323 = vmatpush.msra.mxu0 0.0
    %2324 = vmatpush.msra.mxu0 0.0
    %2325 = vmatpush.msra.mxu0 0.0
    %2326 = vmatpush.msra.mxu0 0.0
    %2327 = vmatpush.msra.mxu0 0.0
    %2328 = vmatpush.msra.mxu0 0.0
    %2329 = vmatpush.msra.mxu0 0.0
    %2330 = vmatpush.msra.mxu0 0.0
    %2331 = vmatpush.msra.mxu0 0.0
    %2332 = vmatpush.msra.mxu0 %v2317
    %2333 = vmatpush.msra.mxu0 %v2306
    %2334 = vmatpush.msra.mxu0 %v2305
    %2335 = vmatmul.f32.gmra.mxu0 %v2311
    %v2336 = vpop.f32.mrf.mxu0
    %v2337 = vadd.f32 0.0, %v2336
    %2338 = vmatmul.f32.gmra.mxu0 %v2314
    %v2339 = vpop.f32.mrf.mxu0
    %v2340 = vadd.f32 0.0, %v2339
    %2341 = vdwg.mxu0
    %v2342 = vld [vmem:[%s11] sm:$0xff]
    %v2343 = vld [vmem:[%s11 + $0x8] sm:$0xff]
    %v2344 = vld [vmem:[%s11 + $0x10] sm:$0xff]
    %v2345 = vld [vmem:[%s11 + $0x18] sm:$0xff]
    %v2346 = vld [vmem:[%s12] sm:$0xff]
    %v2347 = vld [vmem:[%s12 + $0x8] sm:$0xff]
    %v2348 = vld [vmem:[%s12 + $0x10] sm:$0xff]
    %v2349 = vld [vmem:[%s12 + $0x18] sm:$0xff]
    %v2350 = vperm.slane %v46, 5
    %v2352 = vsel %vm50, %v2337, 0
    %v2355 = vsel %vm50, %v2340, 0
    %2357 = vmatpush.msra.mxu0 0.0
    %2358 = vmatpush.msra.mxu0 0.0
    %2359 = vmatpush.msra.mxu0 0.0
    %2360 = vmatpush.msra.mxu0 0.0
    %2361 = vmatpush.msra.mxu0 0.0
    %2362 = vmatpush.msra.mxu0 0.0
    %2363 = vmatpush.msra.mxu0 0.0
    %2364 = vmatpush.msra.mxu0 0.0
    %2365 = vmatpush.msra.mxu0 0.0
    %2366 = vmatpush.msra.mxu0 0.0
    %2367 = vmatpush.msra.mxu0 0.0
    %2368 = vmatpush.msra.mxu0 0.0
    %2369 = vmatpush.msra.mxu0 %v2345
    %2370 = vmatpush.msra.mxu0 %v2344
    %2371 = vmatpush.msra.mxu0 %v2343
    %2372 = vmatpush.msra.mxu0 %v2342
    %2373 = vmatmul.f32.gmra.mxu0 %v2352
    %v2374 = vpop.f32.mrf.mxu0
    %v2375 = vadd.f32 %v2350, %v2374
    %2376 = vmatmul.f32.gmra.mxu0 %v2355
    %v2377 = vpop.f32.mrf.mxu0
    %v2378 = vadd.f32 %v2350, %v2377
    %2379 = vdwg.mxu0
    %v2381 = vrot.slane %v2378, 6
    %v2383 = vsel %vm1110, %v2375, %v2381
    %v2384 = vxor.u32 %v2383, 2147483648
    %v2385 = vmul.f32 %v2384, 1.442695
    %v2386 = vpow.pop %v2385
    %v2387 = vadd.f32 %v2386, 1.0
    %v2388 = vrcp.pop %v2387
    %v2389 = vmul.f32 %v2387, %v2388
    %v2390 = vsub.f32 1.0, %v2389
    %v2391 = vmul.f32 %v2388, %v2390
    %v2392 = vadd.f32 %v2388, %v2391
    %vm2393 = vweird.f32 %v2387
    %vm2394 = vweird.f32 %v2388
    %vm2395 = vmor %vm2393, %vm2394
    %v2396 = vsel %vm2395, %v2388, %v2392
    %v2397 = vand.u32 2147483647, %v2387
    %vm2398 = vcmp.eq.f32.partialorder %v2397, 8.507059e+37
    %v2399 = vand.u32 %v2387, 2147483648
    %v2400 = vor.u32 1.1754944e-38, %v2399
    %v2401 = vsel %vm2398, %v2400, %v2396
    %v2402 = vmul.f32 1.0, %v2401
    %v2403 = vtanh.pop %v2383
    %2405 = vrot.lane.b32.xlu0 %v2403, 96
    %v2406 = vpop.permute.xlu0 %2405
    %v2408 = vmul.f32 %v2402, %v2406
    %2410 = vrot.lane.b32.xlu0 %v2402, 80
    %v2411 = vpop.permute.xlu0 %2410
    %2413 = vrot.lane.b32.xlu0 %v2402, 32
    %v2414 = vpop.permute.xlu0 %2413
    %v2416 = vsel %vm909, %v2411, %v2414
    %2418 = vrot.lane.b32.xlu0 %v2408, 80
    %v2419 = vpop.permute.xlu0 %2418
    %v2421 = vsel %vm909, %v2408, %v2419
    %v2422 = vtanh.pop %v2421
    %v2423 = vmul.f32 %v2416, %v2422
    %v2424 = vrot.slane %v2378, 2
    %v2426 = vsel %vm1110, %v2375, %v2424
    %v2428 = vsel %vm50, %v2423, 0
    %2430 = vmatpush.msra.mxu0 0.0
    %2431 = vmatpush.msra.mxu0 0.0
    %2432 = vmatpush.msra.mxu0 0.0
    %2433 = vmatpush.msra.mxu0 0.0
    %2434 = vmatpush.msra.mxu0 0.0
    %2435 = vmatpush.msra.mxu0 0.0
    %2436 = vmatpush.msra.mxu0 0.0
    %2437 = vmatpush.msra.mxu0 0.0
    %2438 = vmatpush.msra.mxu0 0.0
    %2439 = vmatpush.msra.mxu0 0.0
    %2440 = vmatpush.msra.mxu0 0.0
    %2441 = vmatpush.msra.mxu0 0.0
    %2442 = vmatpush.msra.mxu0 %v2349
    %2443 = vmatpush.msra.mxu0 %v2348
    %2444 = vmatpush.msra.mxu0 %v2347
    %2445 = vmatpush.msra.mxu0 %v2346
    %2446 = vmatmul.f32.gmra.mxu0 %v2428
    %v2447 = vpop.f32.mrf.mxu0
    %v2448 = vadd.f32 0.0, %v2447
    %2449 = vdwg.mxu0
    %v2451 = vrot.slane %v2448, 6
    %v2453 = vadd.f32 %v2426, %v2451
    %v2454 = vxor.u32 %v2453, 2147483648
    %v2455 = vmul.f32 %v2454, 1.442695
    %v2456 = vpow.pop %v2455
    %v2457 = vadd.f32 %v2456, 1.0
    %v2458 = vrcp.pop %v2457
    %v2459 = vmul.f32 %v2457, %v2458
    %v2460 = vsub.f32 1.0, %v2459
    %v2461 = vmul.f32 %v2458, %v2460
    %v2462 = vadd.f32 %v2458, %v2461
    %vm2463 = vweird.f32 %v2457
    %vm2464 = vweird.f32 %v2458
    %vm2465 = vmor %vm2463, %vm2464
    %v2466 = vsel %vm2465, %v2458, %v2462
    %v2467 = vand.u32 2147483647, %v2457
    %vm2468 = vcmp.eq.f32.partialorder %v2467, 8.507059e+37
    %v2469 = vand.u32 %v2457, 2147483648
    %v2470 = vor.u32 1.1754944e-38, %v2469
    %v2471 = vsel %vm2468, %v2470, %v2466
    %v2472 = vmul.f32 1.0, %v2471
    %v2473 = vtanh.pop %v2453
    %v2474 = vrot.slane %v2408, 6
    %2475 = vrot.lane.b32.xlu0 %v2474, 16
    %v2476 = vpop.permute.xlu0 %2475
    %v2478 = vmul.f32 %v2472, %v2476
    %2480 = vrot.lane.b32.xlu0 %v2473, 96
    %v2481 = vpop.permute.xlu0 %2480
    %v2483 = vmul.f32 %v2472, %v2481
    %2485 = vrot.lane.b32.xlu0 %v2483, 16
    %v2486 = vpop.permute.xlu0 %2485
    %v2488 = vadd.f32 %v2478, %v2486
    %2490 = vrot.lane.b32.xlu0 %v2472, 80
    %v2491 = vpop.permute.xlu0 %2490
    %2493 = vrot.lane.b32.xlu0 %v2472, 32
    %v2494 = vpop.permute.xlu0 %2493
    %v2496 = vsel %vm909, %v2491, %v2494
    %2498 = vrot.lane.b32.xlu0 %v2488, 112
    %v2499 = vpop.permute.xlu0 %2498
    %2501 = vrot.lane.b32.xlu0 %v2488, 64
    %v2502 = vpop.permute.xlu0 %2501
    %v2504 = vsel %vm909, %v2499, %v2502
    %v2505 = vtanh.pop %v2504
    %v2506 = vmul.f32 %v2496, %v2505
    %v2508 = vrot.slane %v2506, 2
    %v2509 = vsel %vm50, %v2508, 0
    %2511 = vmatpush.msra.mxu0 0.0
    %2512 = vmatpush.msra.mxu0 0.0
    %2513 = vmatpush.msra.mxu0 0.0
    %2514 = vmatpush.msra.mxu0 0.0
    %2515 = vmatpush.msra.mxu0 0.0
    %2516 = vmatpush.msra.mxu0 0.0
    %2517 = vmatpush.msra.mxu0 0.0
    %2518 = vmatpush.msra.mxu0 0.0
    %2519 = vmatpush.msra.mxu0 0.0
    %2520 = vmatpush.msra.mxu0 0.0
    %2521 = vmatpush.msra.mxu0 0.0
    %2522 = vmatpush.msra.mxu0 0.0
    %2523 = vmatpush.msra.mxu0 %v2349
    %2524 = vmatpush.msra.mxu0 %v2348
    %2525 = vmatpush.msra.mxu0 %v2347
    %2526 = vmatpush.msra.mxu0 %v2346
    %2527 = vmatmul.f32.gmra.mxu0 %v2509
    %v2528 = vpop.f32.mrf.mxu0
    %v2529 = vadd.f32 0.0, %v2528
    %2530 = vdwg.mxu0
    %v2532 = vrot.slane %v2529, 4
    %v2534 = vadd.f32 %v2383, %v2532
    %v2535 = vxor.u32 %v2534, 2147483648
    %v2536 = vmul.f32 %v2535, 1.442695
    %v2537 = vpow.pop %v2536
    %v2538 = vadd.f32 %v2537, 1.0
    %v2539 = vrcp.pop %v2538
    %v2540 = vmul.f32 %v2538, %v2539
    %v2541 = vsub.f32 1.0, %v2540
    %v2542 = vmul.f32 %v2539, %v2541
    %v2543 = vadd.f32 %v2539, %v2542
    %vm2544 = vweird.f32 %v2538
    %vm2545 = vweird.f32 %v2539
    %vm2546 = vmor %vm2544, %vm2545
    %v2547 = vsel %vm2546, %v2539, %v2543
    %v2548 = vand.u32 2147483647, %v2538
    %vm2549 = vcmp.eq.f32.partialorder %v2548, 8.507059e+37
    %v2550 = vand.u32 %v2538, 2147483648
    %v2551 = vor.u32 1.1754944e-38, %v2550
    %v2552 = vsel %vm2549, %v2551, %v2547
    %v2553 = vmul.f32 1.0, %v2552
    %v2554 = vtanh.pop %v2534
    %v2555 = vrot.slane %v2488, 6
    %v2557 = vmul.f32 %v2553, %v2555
    %2559 = vrot.lane.b32.xlu0 %v2554, 96
    %v2560 = vpop.permute.xlu0 %2559
    %v2562 = vmul.f32 %v2553, %v2560
    %2564 = vrot.lane.b32.xlu0 %v2562, 16
    %v2565 = vpop.permute.xlu0 %2564
    %v2567 = vadd.f32 %v2557, %v2565
    %2569 = vrot.lane.b32.xlu0 %v2553, 80
    %v2570 = vpop.permute.xlu0 %2569
    %2572 = vrot.lane.b32.xlu0 %v2553, 32
    %v2573 = vpop.permute.xlu0 %2572
    %v2575 = vsel %vm909, %v2570, %v2573
    %2577 = vrot.lane.b32.xlu0 %v2567, 112
    %v2578 = vpop.permute.xlu0 %2577
    %2580 = vrot.lane.b32.xlu0 %v2567, 64
    %v2581 = vpop.permute.xlu0 %2580
    %v2583 = vsel %vm909, %v2578, %v2581
    %v2584 = vtanh.pop %v2583
    %v2585 = vmul.f32 %v2575, %v2584
    %v2587 = vrot.slane %v2585, 4
    %v2588 = vsel %vm50, %v2587, 0
    %2590 = vmatpush.msra.mxu0 0.0
    %2591 = vmatpush.msra.mxu0 0.0
    %2592 = vmatpush.msra.mxu0 0.0
    %2593 = vmatpush.msra.mxu0 0.0
    %2594 = vmatpush.msra.mxu0 0.0
    %2595 = vmatpush.msra.mxu0 0.0
    %2596 = vmatpush.msra.mxu0 0.0
    %2597 = vmatpush.msra.mxu0 0.0
    %2598 = vmatpush.msra.mxu0 0.0
    %2599 = vmatpush.msra.mxu0 0.0
    %2600 = vmatpush.msra.mxu0 0.0
    %2601 = vmatpush.msra.mxu0 0.0
    %2602 = vmatpush.msra.mxu0 %v2349
    %2603 = vmatpush.msra.mxu0 %v2348
    %2604 = vmatpush.msra.mxu0 %v2347
    %2605 = vmatpush.msra.mxu0 %v2346
    %2606 = vmatmul.f32.gmra.mxu0 %v2588
    %v2607 = vpop.f32.mrf.mxu0
    %v2608 = vadd.f32 0.0, %v2607
    %2609 = vdwg.mxu0
    %v2611 = vrot.slane %v2608, 2
    %v2613 = vadd.f32 %v2426, %v2611
    %v2614 = vxor.u32 %v2613, 2147483648
    %v2615 = vmul.f32 %v2614, 1.442695
    %v2616 = vpow.pop %v2615
    %v2617 = vadd.f32 %v2616, 1.0
    %v2618 = vrcp.pop %v2617
    %v2619 = vmul.f32 %v2617, %v2618
    %v2620 = vsub.f32 1.0, %v2619
    %v2621 = vmul.f32 %v2618, %v2620
    %v2622 = vadd.f32 %v2618, %v2621
    %vm2623 = vweird.f32 %v2617
    %vm2624 = vweird.f32 %v2618
    %vm2625 = vmor %vm2623, %vm2624
    %v2626 = vsel %vm2625, %v2618, %v2622
    %v2627 = vand.u32 2147483647, %v2617
    %vm2628 = vcmp.eq.f32.partialorder %v2627, 8.507059e+37
    %v2629 = vand.u32 %v2617, 2147483648
    %v2630 = vor.u32 1.1754944e-38, %v2629
    %v2631 = vsel %vm2628, %v2630, %v2626
    %v2632 = vmul.f32 1.0, %v2631
    %v2633 = vtanh.pop %v2613
    %v2634 = vrot.slane %v2567, 6
    %v2636 = vmul.f32 %v2632, %v2634
    %2638 = vrot.lane.b32.xlu0 %v2633, 96
    %v2639 = vpop.permute.xlu0 %2638
    %v2641 = vmul.f32 %v2632, %v2639
    %2643 = vrot.lane.b32.xlu0 %v2641, 16
    %v2644 = vpop.permute.xlu0 %2643
    %v2646 = vadd.f32 %v2636, %v2644
    %2648 = vrot.lane.b32.xlu0 %v2632, 80
    %v2649 = vpop.permute.xlu0 %2648
    %2651 = vrot.lane.b32.xlu0 %v2632, 32
    %v2652 = vpop.permute.xlu0 %2651
    %v2654 = vsel %vm909, %v2649, %v2652
    %2656 = vrot.lane.b32.xlu0 %v2646, 112
    %v2657 = vpop.permute.xlu0 %2656
    %2659 = vrot.lane.b32.xlu0 %v2646, 64
    %v2660 = vpop.permute.xlu0 %2659
    %v2662 = vsel %vm909, %v2657, %v2660
    %v2663 = vtanh.pop %v2662
    %v2664 = vmul.f32 %v2654, %v2663
    %v2666 = vrot.slane %v2375, 6
    %v2668 = vsel %vm1110, %v2378, %v2666
    %v2670 = vrot.slane %v2664, 6
    %v2671 = vsel %vm50, %v2670, 0
    %2673 = vmatpush.msra.mxu0 0.0
    %2674 = vmatpush.msra.mxu0 0.0
    %2675 = vmatpush.msra.mxu0 0.0
    %2676 = vmatpush.msra.mxu0 0.0
    %2677 = vmatpush.msra.mxu0 0.0
    %2678 = vmatpush.msra.mxu0 0.0
    %2679 = vmatpush.msra.mxu0 0.0
    %2680 = vmatpush.msra.mxu0 0.0
    %2681 = vmatpush.msra.mxu0 0.0
    %2682 = vmatpush.msra.mxu0 0.0
    %2683 = vmatpush.msra.mxu0 0.0
    %2684 = vmatpush.msra.mxu0 0.0
    %2685 = vmatpush.msra.mxu0 %v2349
    %2686 = vmatpush.msra.mxu0 %v2348
    %2687 = vmatpush.msra.mxu0 %v2347
    %2688 = vmatpush.msra.mxu0 %v2346
    %2689 = vmatmul.f32.gmra.mxu0 %v2671
    %v2690 = vpop.f32.mrf.mxu0
    %v2691 = vadd.f32 0.0, %v2690
    %2692 = vdwg.mxu0
    %v2693 = vadd.f32 %v2668, %v2691
    %v2694 = vxor.u32 %v2693, 2147483648
    %v2695 = vmul.f32 %v2694, 1.442695
    %v2696 = vpow.pop %v2695
    %v2697 = vadd.f32 %v2696, 1.0
    %v2698 = vrcp.pop %v2697
    %v2699 = vmul.f32 %v2697, %v2698
    %v2700 = vsub.f32 1.0, %v2699
    %v2701 = vmul.f32 %v2698, %v2700
    %v2702 = vadd.f32 %v2698, %v2701
    %vm2703 = vweird.f32 %v2697
    %vm2704 = vweird.f32 %v2698
    %vm2705 = vmor %vm2703, %vm2704
    %v2706 = vsel %vm2705, %v2698, %v2702
    %v2707 = vand.u32 2147483647, %v2697
    %vm2708 = vcmp.eq.f32.partialorder %v2707, 8.507059e+37
    %v2709 = vand.u32 %v2697, 2147483648
    %v2710 = vor.u32 1.1754944e-38, %v2709
    %v2711 = vsel %vm2708, %v2710, %v2706
    %v2712 = vmul.f32 1.0, %v2711
    %v2713 = vtanh.pop %v2693
    %v2714 = vrot.slane %v2646, 6
    %v2716 = vmul.f32 %v2712, %v2714
    %2718 = vrot.lane.b32.xlu0 %v2713, 96
    %v2719 = vpop.permute.xlu0 %2718
    %v2721 = vmul.f32 %v2712, %v2719
    %2723 = vrot.lane.b32.xlu0 %v2721, 16
    %v2724 = vpop.permute.xlu0 %2723
    %v2726 = vadd.f32 %v2716, %v2724
    %2728 = vrot.lane.b32.xlu0 %v2712, 80
    %v2729 = vpop.permute.xlu0 %2728
    %2731 = vrot.lane.b32.xlu0 %v2712, 32
    %v2732 = vpop.permute.xlu0 %2731
    %v2734 = vsel %vm909, %v2729, %v2732
    %2736 = vrot.lane.b32.xlu0 %v2726, 112
    %v2737 = vpop.permute.xlu0 %2736
    %2739 = vrot.lane.b32.xlu0 %v2726, 64
    %v2740 = vpop.permute.xlu0 %2739
    %v2742 = vsel %vm909, %v2737, %v2740
    %v2743 = vtanh.pop %v2742
    %v2744 = vmul.f32 %v2734, %v2743
    %v2745 = vrot.slane %v2375, 2
    %v2747 = vsel %vm1110, %v2378, %v2745
    %v2749 = vsel %vm50, %v2744, 0
    %2751 = vmatpush.msra.mxu0 0.0
    %2752 = vmatpush.msra.mxu0 0.0
    %2753 = vmatpush.msra.mxu0 0.0
    %2754 = vmatpush.msra.mxu0 0.0
    %2755 = vmatpush.msra.mxu0 0.0
    %2756 = vmatpush.msra.mxu0 0.0
    %2757 = vmatpush.msra.mxu0 0.0
    %2758 = vmatpush.msra.mxu0 0.0
    %2759 = vmatpush.msra.mxu0 0.0
    %2760 = vmatpush.msra.mxu0 0.0
    %2761 = vmatpush.msra.mxu0 0.0
    %2762 = vmatpush.msra.mxu0 0.0
    %2763 = vmatpush.msra.mxu0 %v2349
    %2764 = vmatpush.msra.mxu0 %v2348
    %2765 = vmatpush.msra.mxu0 %v2347
    %2766 = vmatpush.msra.mxu0 %v2346
    %2767 = vmatmul.f32.gmra.mxu0 %v2749
    %v2768 = vpop.f32.mrf.mxu0
    %v2769 = vadd.f32 0.0, %v2768
    %2770 = vdwg.mxu0
    %v2772 = vrot.slane %v2769, 6
    %v2774 = vadd.f32 %v2747, %v2772
    %v2775 = vxor.u32 %v2774, 2147483648
    %v2776 = vmul.f32 %v2775, 1.442695
    %v2777 = vpow.pop %v2776
    %v2778 = vadd.f32 %v2777, 1.0
    %v2779 = vrcp.pop %v2778
    %v2780 = vmul.f32 %v2778, %v2779
    %v2781 = vsub.f32 1.0, %v2780
    %v2782 = vmul.f32 %v2779, %v2781
    %v2783 = vadd.f32 %v2779, %v2782
    %vm2784 = vweird.f32 %v2778
    %vm2785 = vweird.f32 %v2779
    %vm2786 = vmor %vm2784, %vm2785
    %v2787 = vsel %vm2786, %v2779, %v2783
    %v2788 = vand.u32 2147483647, %v2778
    %vm2789 = vcmp.eq.f32.partialorder %v2788, 8.507059e+37
    %v2790 = vand.u32 %v2778, 2147483648
    %v2791 = vor.u32 1.1754944e-38, %v2790
    %v2792 = vsel %vm2789, %v2791, %v2787
    %v2793 = vmul.f32 1.0, %v2792
    %v2794 = vtanh.pop %v2774
    %v2795 = vrot.slane %v2726, 6
    %v2797 = vmul.f32 %v2793, %v2795
    %2799 = vrot.lane.b32.xlu0 %v2794, 96
    %v2800 = vpop.permute.xlu0 %2799
    %v2802 = vmul.f32 %v2793, %v2800
    %2804 = vrot.lane.b32.xlu0 %v2802, 16
    %v2805 = vpop.permute.xlu0 %2804
    %v2807 = vadd.f32 %v2797, %v2805
    %2809 = vrot.lane.b32.xlu0 %v2793, 80
    %v2810 = vpop.permute.xlu0 %2809
    %2812 = vrot.lane.b32.xlu0 %v2793, 32
    %v2813 = vpop.permute.xlu0 %2812
    %v2815 = vsel %vm909, %v2810, %v2813
    %2817 = vrot.lane.b32.xlu0 %v2807, 112
    %v2818 = vpop.permute.xlu0 %2817
    %2820 = vrot.lane.b32.xlu0 %v2807, 64
    %v2821 = vpop.permute.xlu0 %2820
    %v2823 = vsel %vm909, %v2818, %v2821
    %v2824 = vtanh.pop %v2823
    %v2825 = vmul.f32 %v2815, %v2824
    %v2827 = vrot.slane %v2825, 2
    %v2828 = vsel %vm50, %v2827, 0
    %2830 = vmatpush.msra.mxu0 0.0
    %2831 = vmatpush.msra.mxu0 0.0
    %2832 = vmatpush.msra.mxu0 0.0
    %2833 = vmatpush.msra.mxu0 0.0
    %2834 = vmatpush.msra.mxu0 0.0
    %2835 = vmatpush.msra.mxu0 0.0
    %2836 = vmatpush.msra.mxu0 0.0
    %2837 = vmatpush.msra.mxu0 0.0
    %2838 = vmatpush.msra.mxu0 0.0
    %2839 = vmatpush.msra.mxu0 0.0
    %2840 = vmatpush.msra.mxu0 0.0
    %2841 = vmatpush.msra.mxu0 0.0
    %2842 = vmatpush.msra.mxu0 %v2349
    %2843 = vmatpush.msra.mxu0 %v2348
    %2844 = vmatpush.msra.mxu0 %v2347
    %2845 = vmatpush.msra.mxu0 %v2346
    %2846 = vmatmul.f32.gmra.mxu0 %v2828
    %v2847 = vpop.f32.mrf.mxu0
    %v2848 = vadd.f32 0.0, %v2847
    %2849 = vdwg.mxu0
    %v2851 = vrot.slane %v2848, 4
    %v2853 = vadd.f32 %v2668, %v2851
    %v2854 = vxor.u32 %v2853, 2147483648
    %v2855 = vmul.f32 %v2854, 1.442695
    %v2856 = vpow.pop %v2855
    %v2857 = vadd.f32 %v2856, 1.0
    %v2858 = vrcp.pop %v2857
    %v2859 = vmul.f32 %v2857, %v2858
    %v2860 = vsub.f32 1.0, %v2859
    %v2861 = vmul.f32 %v2858, %v2860
    %v2862 = vadd.f32 %v2858, %v2861
    %vm2863 = vweird.f32 %v2857
    %vm2864 = vweird.f32 %v2858
    %vm2865 = vmor %vm2863, %vm2864
    %v2866 = vsel %vm2865, %v2858, %v2862
    %v2867 = vand.u32 2147483647, %v2857
    %vm2868 = vcmp.eq.f32.partialorder %v2867, 8.507059e+37
    %v2869 = vand.u32 %v2857, 2147483648
    %v2870 = vor.u32 1.1754944e-38, %v2869
    %v2871 = vsel %vm2868, %v2870, %v2866
    %v2872 = vmul.f32 1.0, %v2871
    %v2873 = vtanh.pop %v2853
    %v2874 = vrot.slane %v2807, 6
    %v2876 = vmul.f32 %v2872, %v2874
    %2878 = vrot.lane.b32.xlu0 %v2873, 96
    %v2879 = vpop.permute.xlu0 %2878
    %v2881 = vmul.f32 %v2872, %v2879
    %2883 = vrot.lane.b32.xlu0 %v2881, 16
    %v2884 = vpop.permute.xlu0 %2883
    %v2886 = vadd.f32 %v2876, %v2884
    %2888 = vrot.lane.b32.xlu0 %v2872, 80
    %v2889 = vpop.permute.xlu0 %2888
    %2891 = vrot.lane.b32.xlu0 %v2872, 32
    %v2892 = vpop.permute.xlu0 %2891
    %v2894 = vsel %vm909, %v2889, %v2892
    %2896 = vrot.lane.b32.xlu0 %v2886, 112
    %v2897 = vpop.permute.xlu0 %2896
    %2899 = vrot.lane.b32.xlu0 %v2886, 64
    %v2900 = vpop.permute.xlu0 %2899
    %v2902 = vsel %vm909, %v2897, %v2900
    %v2903 = vtanh.pop %v2902
    %v2904 = vmul.f32 %v2894, %v2903
    %v2906 = vrot.slane %v2904, 4
    %v2907 = vsel %vm50, %v2906, 0
    %2909 = vmatpush.msra.mxu0 0.0
    %2910 = vmatpush.msra.mxu0 0.0
    %2911 = vmatpush.msra.mxu0 0.0
    %2912 = vmatpush.msra.mxu0 0.0
    %2913 = vmatpush.msra.mxu0 0.0
    %2914 = vmatpush.msra.mxu0 0.0
    %2915 = vmatpush.msra.mxu0 0.0
    %2916 = vmatpush.msra.mxu0 0.0
    %2917 = vmatpush.msra.mxu0 0.0
    %2918 = vmatpush.msra.mxu0 0.0
    %2919 = vmatpush.msra.mxu0 0.0
    %2920 = vmatpush.msra.mxu0 0.0
    %2921 = vmatpush.msra.mxu0 %v2349
    %2922 = vmatpush.msra.mxu0 %v2348
    %2923 = vmatpush.msra.mxu0 %v2347
    %2924 = vmatpush.msra.mxu0 %v2346
    %2925 = vmatmul.f32.gmra.mxu0 %v2907
    %v2926 = vpop.f32.mrf.mxu0
    %v2927 = vadd.f32 0.0, %v2926
    %2928 = vdwg.mxu0
    %v2930 = vrot.slane %v2927, 2
    %v2932 = vadd.f32 %v2747, %v2930
    %v2933 = vxor.u32 %v2932, 2147483648
    %v2934 = vmul.f32 %v2933, 1.442695
    %v2935 = vpow.pop %v2934
    %v2936 = vadd.f32 %v2935, 1.0
    %v2937 = vrcp.pop %v2936
    %v2938 = vmul.f32 %v2936, %v2937
    %v2939 = vsub.f32 1.0, %v2938
    %v2940 = vmul.f32 %v2937, %v2939
    %v2941 = vadd.f32 %v2937, %v2940
    %vm2942 = vweird.f32 %v2936
    %vm2943 = vweird.f32 %v2937
    %vm2944 = vmor %vm2942, %vm2943
    %v2945 = vsel %vm2944, %v2937, %v2941
    %v2946 = vand.u32 2147483647, %v2936
    %vm2947 = vcmp.eq.f32.partialorder %v2946, 8.507059e+37
    %v2948 = vand.u32 %v2936, 2147483648
    %v2949 = vor.u32 1.1754944e-38, %v2948
    %v2950 = vsel %vm2947, %v2949, %v2945
    %v2951 = vmul.f32 1.0, %v2950
    %v2952 = vtanh.pop %v2932
    %v2953 = vrot.slane %v2886, 6
    %v2955 = vmul.f32 %v2951, %v2953
    %2957 = vrot.lane.b32.xlu0 %v2952, 96
    %v2958 = vpop.permute.xlu0 %2957
    %v2960 = vmul.f32 %v2951, %v2958
    %2962 = vrot.lane.b32.xlu0 %v2960, 16
    %v2963 = vpop.permute.xlu0 %2962
    %v2965 = vadd.f32 %v2955, %v2963
    %2967 = vrot.lane.b32.xlu0 %v2951, 80
    %v2968 = vpop.permute.xlu0 %2967
    %2970 = vrot.lane.b32.xlu0 %v2951, 32
    %v2971 = vpop.permute.xlu0 %2970
    %v2973 = vsel %vm909, %v2968, %v2971
    %2975 = vrot.lane.b32.xlu0 %v2965, 112
    %v2976 = vpop.permute.xlu0 %2975
    %2978 = vrot.lane.b32.xlu0 %v2965, 64
    %v2979 = vpop.permute.xlu0 %2978
    %v2981 = vsel %vm909, %v2976, %v2979
    %v2982 = vtanh.pop %v2981
    %v2983 = vmul.f32 %v2973, %v2982
    %vm2984 = vcmask 1041408
    %v2985 = vsel %vm2984, %v2423, %v2506
    %v2986 = vsel %vm322, %v2985, %v2585
    %vm2987 = vcmask 1045504
    %v2988 = vsel %vm2987, %v2986, %v2664
    %v2989 = vsel %vm2984, %v2744, %v2825
    %v2990 = vsel %vm322, %v2989, %v2904
    %v2991 = vsel %vm2987, %v2990, %v2983
    %v2993 = vrot.slane %v2983, 6
    %v2995 = vrot.slane %v2904, 2
    %v2997 = vrot.slane %v2825, 6
    %v2999 = vrot.slane %v2744, 2
    %v3002 = vrot.slane %v2585, 2
    %v3004 = vrot.slane %v2506, 6
    %v3006 = vrot.slane %v2423, 2
    %v3008 = vsel %vm2984, %v2993, %v2995
    %v3009 = vsel %vm322, %v3008, %v2997
    %v3010 = vsel %vm2987, %v3009, %v2999
    %v3011 = vsel %vm2984, %v2670, %v3002
    %v3012 = vsel %vm322, %v3011, %v3004
    %v3013 = vsel %vm2987, %v3012, %v3006
    %v3014 = vsel %vm909, %v2988, %v3010
    %v3015 = vsel %vm909, %v2991, %v3013
    %s3016 = scalar_lea.vmem %s11, 32
    %v3017 = vld [vmem:[%s3016] sm:$0xff]
    %v3018 = vld [vmem:[%s3016 + $0x8] sm:$0xff]
    %v3019 = vld [vmem:[%s3016 + $0x10] sm:$0xff]
    %v3020 = vld [vmem:[%s3016 + $0x18] sm:$0xff]
    %s3021 = scalar_lea.vmem %s12, 32
    %v3022 = vld [vmem:[%s3021] sm:$0xff]
    %v3023 = vld [vmem:[%s3021 + $0x8] sm:$0xff]
    %v3024 = vld [vmem:[%s3021 + $0x10] sm:$0xff]
    %v3025 = vld [vmem:[%s3021 + $0x18] sm:$0xff]
    %v3026 = vperm.slane %v46, 6
    %v3028 = vsel %vm50, %v3014, 0
    %v3031 = vsel %vm50, %v3015, 0
    %3033 = vmatpush.msra.mxu0 0.0
    %3034 = vmatpush.msra.mxu0 0.0
    %3035 = vmatpush.msra.mxu0 0.0
    %3036 = vmatpush.msra.mxu0 0.0
    %3037 = vmatpush.msra.mxu0 0.0
    %3038 = vmatpush.msra.mxu0 0.0
    %3039 = vmatpush.msra.mxu0 0.0
    %3040 = vmatpush.msra.mxu0 0.0
    %3041 = vmatpush.msra.mxu0 0.0
    %3042 = vmatpush.msra.mxu0 0.0
    %3043 = vmatpush.msra.mxu0 0.0
    %3044 = vmatpush.msra.mxu0 0.0
    %3045 = vmatpush.msra.mxu0 %v3020
    %3046 = vmatpush.msra.mxu0 %v3019
    %3047 = vmatpush.msra.mxu0 %v3018
    %3048 = vmatpush.msra.mxu0 %v3017
    %3049 = vmatmul.f32.gmra.mxu0 %v3028
    %v3050 = vpop.f32.mrf.mxu0
    %v3051 = vadd.f32 %v3026, %v3050
    %3052 = vmatmul.f32.gmra.mxu0 %v3031
    %v3053 = vpop.f32.mrf.mxu0
    %v3054 = vadd.f32 %v3026, %v3053
    %3055 = vdwg.mxu0
    %v3057 = vrot.slane %v3054, 6
    %v3059 = vsel %vm1110, %v3051, %v3057
    %v3060 = vxor.u32 %v3059, 2147483648
    %v3061 = vmul.f32 %v3060, 1.442695
    %v3062 = vpow.pop %v3061
    %v3063 = vadd.f32 %v3062, 1.0
    %v3064 = vrcp.pop %v3063
    %v3065 = vmul.f32 %v3063, %v3064
    %v3066 = vsub.f32 1.0, %v3065
    %v3067 = vmul.f32 %v3064, %v3066
    %v3068 = vadd.f32 %v3064, %v3067
    %vm3069 = vweird.f32 %v3063
    %vm3070 = vweird.f32 %v3064
    %vm3071 = vmor %vm3069, %vm3070
    %v3072 = vsel %vm3071, %v3064, %v3068
    %v3073 = vand.u32 2147483647, %v3063
    %vm3074 = vcmp.eq.f32.partialorder %v3073, 8.507059e+37
    %v3075 = vand.u32 %v3063, 2147483648
    %v3076 = vor.u32 1.1754944e-38, %v3075
    %v3077 = vsel %vm3074, %v3076, %v3072
    %v3078 = vmul.f32 1.0, %v3077
    %v3079 = vtanh.pop %v3059
    %3081 = vrot.lane.b32.xlu0 %v3079, 96
    %v3082 = vpop.permute.xlu0 %3081
    %v3084 = vmul.f32 %v3078, %v3082
    %3086 = vrot.lane.b32.xlu0 %v3078, 80
    %v3087 = vpop.permute.xlu0 %3086
    %3089 = vrot.lane.b32.xlu0 %v3078, 32
    %v3090 = vpop.permute.xlu0 %3089
    %v3092 = vsel %vm909, %v3087, %v3090
    %3094 = vrot.lane.b32.xlu0 %v3084, 80
    %v3095 = vpop.permute.xlu0 %3094
    %v3097 = vsel %vm909, %v3084, %v3095
    %v3098 = vtanh.pop %v3097
    %v3099 = vmul.f32 %v3092, %v3098
    %v3100 = vrot.slane %v3054, 2
    %v3102 = vsel %vm1110, %v3051, %v3100
    %v3104 = vsel %vm50, %v3099, 0
    %3106 = vmatpush.msra.mxu0 0.0
    %3107 = vmatpush.msra.mxu0 0.0
    %3108 = vmatpush.msra.mxu0 0.0
    %3109 = vmatpush.msra.mxu0 0.0
    %3110 = vmatpush.msra.mxu0 0.0
    %3111 = vmatpush.msra.mxu0 0.0
    %3112 = vmatpush.msra.mxu0 0.0
    %3113 = vmatpush.msra.mxu0 0.0
    %3114 = vmatpush.msra.mxu0 0.0
    %3115 = vmatpush.msra.mxu0 0.0
    %3116 = vmatpush.msra.mxu0 0.0
    %3117 = vmatpush.msra.mxu0 0.0
    %3118 = vmatpush.msra.mxu0 %v3025
    %3119 = vmatpush.msra.mxu0 %v3024
    %3120 = vmatpush.msra.mxu0 %v3023
    %3121 = vmatpush.msra.mxu0 %v3022
    %3122 = vmatmul.f32.gmra.mxu0 %v3104
    %v3123 = vpop.f32.mrf.mxu0
    %v3124 = vadd.f32 0.0, %v3123
    %3125 = vdwg.mxu0
    %v3127 = vrot.slane %v3124, 6
    %v3129 = vadd.f32 %v3102, %v3127
    %v3130 = vxor.u32 %v3129, 2147483648
    %v3131 = vmul.f32 %v3130, 1.442695
    %v3132 = vpow.pop %v3131
    %v3133 = vadd.f32 %v3132, 1.0
    %v3134 = vrcp.pop %v3133
    %v3135 = vmul.f32 %v3133, %v3134
    %v3136 = vsub.f32 1.0, %v3135
    %v3137 = vmul.f32 %v3134, %v3136
    %v3138 = vadd.f32 %v3134, %v3137
    %vm3139 = vweird.f32 %v3133
    %vm3140 = vweird.f32 %v3134
    %vm3141 = vmor %vm3139, %vm3140
    %v3142 = vsel %vm3141, %v3134, %v3138
    %v3143 = vand.u32 2147483647, %v3133
    %vm3144 = vcmp.eq.f32.partialorder %v3143, 8.507059e+37
    %v3145 = vand.u32 %v3133, 2147483648
    %v3146 = vor.u32 1.1754944e-38, %v3145
    %v3147 = vsel %vm3144, %v3146, %v3142
    %v3148 = vmul.f32 1.0, %v3147
    %v3149 = vtanh.pop %v3129
    %v3150 = vrot.slane %v3084, 6
    %3151 = vrot.lane.b32.xlu0 %v3150, 16
    %v3152 = vpop.permute.xlu0 %3151
    %v3154 = vmul.f32 %v3148, %v3152
    %3156 = vrot.lane.b32.xlu0 %v3149, 96
    %v3157 = vpop.permute.xlu0 %3156
    %v3159 = vmul.f32 %v3148, %v3157
    %3161 = vrot.lane.b32.xlu0 %v3159, 16
    %v3162 = vpop.permute.xlu0 %3161
    %v3164 = vadd.f32 %v3154, %v3162
    %3166 = vrot.lane.b32.xlu0 %v3148, 80
    %v3167 = vpop.permute.xlu0 %3166
    %3169 = vrot.lane.b32.xlu0 %v3148, 32
    %v3170 = vpop.permute.xlu0 %3169
    %v3172 = vsel %vm909, %v3167, %v3170
    %3174 = vrot.lane.b32.xlu0 %v3164, 112
    %v3175 = vpop.permute.xlu0 %3174
    %3177 = vrot.lane.b32.xlu0 %v3164, 64
    %v3178 = vpop.permute.xlu0 %3177
    %v3180 = vsel %vm909, %v3175, %v3178
    %v3181 = vtanh.pop %v3180
    %v3182 = vmul.f32 %v3172, %v3181
    %v3184 = vrot.slane %v3182, 2
    %v3185 = vsel %vm50, %v3184, 0
    %3187 = vmatpush.msra.mxu0 0.0
    %3188 = vmatpush.msra.mxu0 0.0
    %3189 = vmatpush.msra.mxu0 0.0
    %3190 = vmatpush.msra.mxu0 0.0
    %3191 = vmatpush.msra.mxu0 0.0
    %3192 = vmatpush.msra.mxu0 0.0
    %3193 = vmatpush.msra.mxu0 0.0
    %3194 = vmatpush.msra.mxu0 0.0
    %3195 = vmatpush.msra.mxu0 0.0
    %3196 = vmatpush.msra.mxu0 0.0
    %3197 = vmatpush.msra.mxu0 0.0
    %3198 = vmatpush.msra.mxu0 0.0
    %3199 = vmatpush.msra.mxu0 %v3025
    %3200 = vmatpush.msra.mxu0 %v3024
    %3201 = vmatpush.msra.mxu0 %v3023
    %3202 = vmatpush.msra.mxu0 %v3022
    %3203 = vmatmul.f32.gmra.mxu0 %v3185
    %v3204 = vpop.f32.mrf.mxu0
    %v3205 = vadd.f32 0.0, %v3204
    %3206 = vdwg.mxu0
    %v3208 = vrot.slane %v3205, 4
    %v3210 = vadd.f32 %v3059, %v3208
    %v3211 = vxor.u32 %v3210, 2147483648
    %v3212 = vmul.f32 %v3211, 1.442695
    %v3213 = vpow.pop %v3212
    %v3214 = vadd.f32 %v3213, 1.0
    %v3215 = vrcp.pop %v3214
    %v3216 = vmul.f32 %v3214, %v3215
    %v3217 = vsub.f32 1.0, %v3216
    %v3218 = vmul.f32 %v3215, %v3217
    %v3219 = vadd.f32 %v3215, %v3218
    %vm3220 = vweird.f32 %v3214
    %vm3221 = vweird.f32 %v3215
    %vm3222 = vmor %vm3220, %vm3221
    %v3223 = vsel %vm3222, %v3215, %v3219
    %v3224 = vand.u32 2147483647, %v3214
    %vm3225 = vcmp.eq.f32.partialorder %v3224, 8.507059e+37
    %v3226 = vand.u32 %v3214, 2147483648
    %v3227 = vor.u32 1.1754944e-38, %v3226
    %v3228 = vsel %vm3225, %v3227, %v3223
    %v3229 = vmul.f32 1.0, %v3228
    %v3230 = vtanh.pop %v3210
    %v3231 = vrot.slane %v3164, 6
    %v3233 = vmul.f32 %v3229, %v3231
    %3235 = vrot.lane.b32.xlu0 %v3230, 96
    %v3236 = vpop.permute.xlu0 %3235
    %v3238 = vmul.f32 %v3229, %v3236
    %3240 = vrot.lane.b32.xlu0 %v3238, 16
    %v3241 = vpop.permute.xlu0 %3240
    %v3243 = vadd.f32 %v3233, %v3241
    %3245 = vrot.lane.b32.xlu0 %v3229, 80
    %v3246 = vpop.permute.xlu0 %3245
    %3248 = vrot.lane.b32.xlu0 %v3229, 32
    %v3249 = vpop.permute.xlu0 %3248
    %v3251 = vsel %vm909, %v3246, %v3249
    %3253 = vrot.lane.b32.xlu0 %v3243, 112
    %v3254 = vpop.permute.xlu0 %3253
    %3256 = vrot.lane.b32.xlu0 %v3243, 64
    %v3257 = vpop.permute.xlu0 %3256
    %v3259 = vsel %vm909, %v3254, %v3257
    %v3260 = vtanh.pop %v3259
    %v3261 = vmul.f32 %v3251, %v3260
    %v3263 = vrot.slane %v3261, 4
    %v3264 = vsel %vm50, %v3263, 0
    %3266 = vmatpush.msra.mxu0 0.0
    %3267 = vmatpush.msra.mxu0 0.0
    %3268 = vmatpush.msra.mxu0 0.0
    %3269 = vmatpush.msra.mxu0 0.0
    %3270 = vmatpush.msra.mxu0 0.0
    %3271 = vmatpush.msra.mxu0 0.0
    %3272 = vmatpush.msra.mxu0 0.0
    %3273 = vmatpush.msra.mxu0 0.0
    %3274 = vmatpush.msra.mxu0 0.0
    %3275 = vmatpush.msra.mxu0 0.0
    %3276 = vmatpush.msra.mxu0 0.0
    %3277 = vmatpush.msra.mxu0 0.0
    %3278 = vmatpush.msra.mxu0 %v3025
    %3279 = vmatpush.msra.mxu0 %v3024
    %3280 = vmatpush.msra.mxu0 %v3023
    %3281 = vmatpush.msra.mxu0 %v3022
    %3282 = vmatmul.f32.gmra.mxu0 %v3264
    %v3283 = vpop.f32.mrf.mxu0
    %v3284 = vadd.f32 0.0, %v3283
    %3285 = vdwg.mxu0
    %v3287 = vrot.slane %v3284, 2
    %v3289 = vadd.f32 %v3102, %v3287
    %v3290 = vxor.u32 %v3289, 2147483648
    %v3291 = vmul.f32 %v3290, 1.442695
    %v3292 = vpow.pop %v3291
    %v3293 = vadd.f32 %v3292, 1.0
    %v3294 = vrcp.pop %v3293
    %v3295 = vmul.f32 %v3293, %v3294
    %v3296 = vsub.f32 1.0, %v3295
    %v3297 = vmul.f32 %v3294, %v3296
    %v3298 = vadd.f32 %v3294, %v3297
    %vm3299 = vweird.f32 %v3293
    %vm3300 = vweird.f32 %v3294
    %vm3301 = vmor %vm3299, %vm3300
    %v3302 = vsel %vm3301, %v3294, %v3298
    %v3303 = vand.u32 2147483647, %v3293
    %vm3304 = vcmp.eq.f32.partialorder %v3303, 8.507059e+37
    %v3305 = vand.u32 %v3293, 2147483648
    %v3306 = vor.u32 1.1754944e-38, %v3305
    %v3307 = vsel %vm3304, %v3306, %v3302
    %v3308 = vmul.f32 1.0, %v3307
    %v3309 = vtanh.pop %v3289
    %v3310 = vrot.slane %v3243, 6
    %v3312 = vmul.f32 %v3308, %v3310
    %3314 = vrot.lane.b32.xlu0 %v3309, 96
    %v3315 = vpop.permute.xlu0 %3314
    %v3317 = vmul.f32 %v3308, %v3315
    %3319 = vrot.lane.b32.xlu0 %v3317, 16
    %v3320 = vpop.permute.xlu0 %3319
    %v3322 = vadd.f32 %v3312, %v3320
    %3324 = vrot.lane.b32.xlu0 %v3308, 80
    %v3325 = vpop.permute.xlu0 %3324
    %3327 = vrot.lane.b32.xlu0 %v3308, 32
    %v3328 = vpop.permute.xlu0 %3327
    %v3330 = vsel %vm909, %v3325, %v3328
    %3332 = vrot.lane.b32.xlu0 %v3322, 112
    %v3333 = vpop.permute.xlu0 %3332
    %3335 = vrot.lane.b32.xlu0 %v3322, 64
    %v3336 = vpop.permute.xlu0 %3335
    %v3338 = vsel %vm909, %v3333, %v3336
    %v3339 = vtanh.pop %v3338
    %v3340 = vmul.f32 %v3330, %v3339
    %v3342 = vrot.slane %v3051, 6
    %v3344 = vsel %vm1110, %v3054, %v3342
    %v3346 = vrot.slane %v3340, 6
    %v3347 = vsel %vm50, %v3346, 0
    %3349 = vmatpush.msra.mxu0 0.0
    %3350 = vmatpush.msra.mxu0 0.0
    %3351 = vmatpush.msra.mxu0 0.0
    %3352 = vmatpush.msra.mxu0 0.0
    %3353 = vmatpush.msra.mxu0 0.0
    %3354 = vmatpush.msra.mxu0 0.0
    %3355 = vmatpush.msra.mxu0 0.0
    %3356 = vmatpush.msra.mxu0 0.0
    %3357 = vmatpush.msra.mxu0 0.0
    %3358 = vmatpush.msra.mxu0 0.0
    %3359 = vmatpush.msra.mxu0 0.0
    %3360 = vmatpush.msra.mxu0 0.0
    %3361 = vmatpush.msra.mxu0 %v3025
    %3362 = vmatpush.msra.mxu0 %v3024
    %3363 = vmatpush.msra.mxu0 %v3023
    %3364 = vmatpush.msra.mxu0 %v3022
    %3365 = vmatmul.f32.gmra.mxu0 %v3347
    %v3366 = vpop.f32.mrf.mxu0
    %v3367 = vadd.f32 0.0, %v3366
    %3368 = vdwg.mxu0
    %v3369 = vadd.f32 %v3344, %v3367
    %v3370 = vxor.u32 %v3369, 2147483648
    %v3371 = vmul.f32 %v3370, 1.442695
    %v3372 = vpow.pop %v3371
    %v3373 = vadd.f32 %v3372, 1.0
    %v3374 = vrcp.pop %v3373
    %v3375 = vmul.f32 %v3373, %v3374
    %v3376 = vsub.f32 1.0, %v3375
    %v3377 = vmul.f32 %v3374, %v3376
    %v3378 = vadd.f32 %v3374, %v3377
    %vm3379 = vweird.f32 %v3373
    %vm3380 = vweird.f32 %v3374
    %vm3381 = vmor %vm3379, %vm3380
    %v3382 = vsel %vm3381, %v3374, %v3378
    %v3383 = vand.u32 2147483647, %v3373
    %vm3384 = vcmp.eq.f32.partialorder %v3383, 8.507059e+37
    %v3385 = vand.u32 %v3373, 2147483648
    %v3386 = vor.u32 1.1754944e-38, %v3385
    %v3387 = vsel %vm3384, %v3386, %v3382
    %v3388 = vmul.f32 1.0, %v3387
    %v3389 = vtanh.pop %v3369
    %v3390 = vrot.slane %v3322, 6
    %v3392 = vmul.f32 %v3388, %v3390
    %3394 = vrot.lane.b32.xlu0 %v3389, 96
    %v3395 = vpop.permute.xlu0 %3394
    %v3397 = vmul.f32 %v3388, %v3395
    %3399 = vrot.lane.b32.xlu0 %v3397, 16
    %v3400 = vpop.permute.xlu0 %3399
    %v3402 = vadd.f32 %v3392, %v3400
    %3404 = vrot.lane.b32.xlu0 %v3388, 80
    %v3405 = vpop.permute.xlu0 %3404
    %3407 = vrot.lane.b32.xlu0 %v3388, 32
    %v3408 = vpop.permute.xlu0 %3407
    %v3410 = vsel %vm909, %v3405, %v3408
    %3412 = vrot.lane.b32.xlu0 %v3402, 112
    %v3413 = vpop.permute.xlu0 %3412
    %3415 = vrot.lane.b32.xlu0 %v3402, 64
    %v3416 = vpop.permute.xlu0 %3415
    %v3418 = vsel %vm909, %v3413, %v3416
    %v3419 = vtanh.pop %v3418
    %v3420 = vmul.f32 %v3410, %v3419
    %v3421 = vrot.slane %v3051, 2
    %v3423 = vsel %vm1110, %v3054, %v3421
    %v3425 = vsel %vm50, %v3420, 0
    %3427 = vmatpush.msra.mxu0 0.0
    %3428 = vmatpush.msra.mxu0 0.0
    %3429 = vmatpush.msra.mxu0 0.0
    %3430 = vmatpush.msra.mxu0 0.0
    %3431 = vmatpush.msra.mxu0 0.0
    %3432 = vmatpush.msra.mxu0 0.0
    %3433 = vmatpush.msra.mxu0 0.0
    %3434 = vmatpush.msra.mxu0 0.0
    %3435 = vmatpush.msra.mxu0 0.0
    %3436 = vmatpush.msra.mxu0 0.0
    %3437 = vmatpush.msra.mxu0 0.0
    %3438 = vmatpush.msra.mxu0 0.0
    %3439 = vmatpush.msra.mxu0 %v3025
    %3440 = vmatpush.msra.mxu0 %v3024
    %3441 = vmatpush.msra.mxu0 %v3023
    %3442 = vmatpush.msra.mxu0 %v3022
    %3443 = vmatmul.f32.gmra.mxu0 %v3425
    %v3444 = vpop.f32.mrf.mxu0
    %v3445 = vadd.f32 0.0, %v3444
    %3446 = vdwg.mxu0
    %v3448 = vrot.slane %v3445, 6
    %v3450 = vadd.f32 %v3423, %v3448
    %v3451 = vxor.u32 %v3450, 2147483648
    %v3452 = vmul.f32 %v3451, 1.442695
    %v3453 = vpow.pop %v3452
    %v3454 = vadd.f32 %v3453, 1.0
    %v3455 = vrcp.pop %v3454
    %v3456 = vmul.f32 %v3454, %v3455
    %v3457 = vsub.f32 1.0, %v3456
    %v3458 = vmul.f32 %v3455, %v3457
    %v3459 = vadd.f32 %v3455, %v3458
    %vm3460 = vweird.f32 %v3454
    %vm3461 = vweird.f32 %v3455
    %vm3462 = vmor %vm3460, %vm3461
    %v3463 = vsel %vm3462, %v3455, %v3459
    %v3464 = vand.u32 2147483647, %v3454
    %vm3465 = vcmp.eq.f32.partialorder %v3464, 8.507059e+37
    %v3466 = vand.u32 %v3454, 2147483648
    %v3467 = vor.u32 1.1754944e-38, %v3466
    %v3468 = vsel %vm3465, %v3467, %v3463
    %v3469 = vmul.f32 1.0, %v3468
    %v3470 = vtanh.pop %v3450
    %v3471 = vrot.slane %v3402, 6
    %v3473 = vmul.f32 %v3469, %v3471
    %3475 = vrot.lane.b32.xlu0 %v3470, 96
    %v3476 = vpop.permute.xlu0 %3475
    %v3478 = vmul.f32 %v3469, %v3476
    %3480 = vrot.lane.b32.xlu0 %v3478, 16
    %v3481 = vpop.permute.xlu0 %3480
    %v3483 = vadd.f32 %v3473, %v3481
    %3485 = vrot.lane.b32.xlu0 %v3469, 80
    %v3486 = vpop.permute.xlu0 %3485
    %3488 = vrot.lane.b32.xlu0 %v3469, 32
    %v3489 = vpop.permute.xlu0 %3488
    %v3491 = vsel %vm909, %v3486, %v3489
    %3493 = vrot.lane.b32.xlu0 %v3483, 112
    %v3494 = vpop.permute.xlu0 %3493
    %3496 = vrot.lane.b32.xlu0 %v3483, 64
    %v3497 = vpop.permute.xlu0 %3496
    %v3499 = vsel %vm909, %v3494, %v3497
    %v3500 = vtanh.pop %v3499
    %v3501 = vmul.f32 %v3491, %v3500
    %v3503 = vrot.slane %v3501, 2
    %v3504 = vsel %vm50, %v3503, 0
    %3506 = vmatpush.msra.mxu0 0.0
    %3507 = vmatpush.msra.mxu0 0.0
    %3508 = vmatpush.msra.mxu0 0.0
    %3509 = vmatpush.msra.mxu0 0.0
    %3510 = vmatpush.msra.mxu0 0.0
    %3511 = vmatpush.msra.mxu0 0.0
    %3512 = vmatpush.msra.mxu0 0.0
    %3513 = vmatpush.msra.mxu0 0.0
    %3514 = vmatpush.msra.mxu0 0.0
    %3515 = vmatpush.msra.mxu0 0.0
    %3516 = vmatpush.msra.mxu0 0.0
    %3517 = vmatpush.msra.mxu0 0.0
    %3518 = vmatpush.msra.mxu0 %v3025
    %3519 = vmatpush.msra.mxu0 %v3024
    %3520 = vmatpush.msra.mxu0 %v3023
    %3521 = vmatpush.msra.mxu0 %v3022
    %3522 = vmatmul.f32.gmra.mxu0 %v3504
    %v3523 = vpop.f32.mrf.mxu0
    %v3524 = vadd.f32 0.0, %v3523
    %3525 = vdwg.mxu0
    %v3527 = vrot.slane %v3524, 4
    %v3529 = vadd.f32 %v3344, %v3527
    %v3530 = vxor.u32 %v3529, 2147483648
    %v3531 = vmul.f32 %v3530, 1.442695
    %v3532 = vpow.pop %v3531
    %v3533 = vadd.f32 %v3532, 1.0
    %v3534 = vrcp.pop %v3533
    %v3535 = vmul.f32 %v3533, %v3534
    %v3536 = vsub.f32 1.0, %v3535
    %v3537 = vmul.f32 %v3534, %v3536
    %v3538 = vadd.f32 %v3534, %v3537
    %vm3539 = vweird.f32 %v3533
    %vm3540 = vweird.f32 %v3534
    %vm3541 = vmor %vm3539, %vm3540
    %v3542 = vsel %vm3541, %v3534, %v3538
    %v3543 = vand.u32 2147483647, %v3533
    %vm3544 = vcmp.eq.f32.partialorder %v3543, 8.507059e+37
    %v3545 = vand.u32 %v3533, 2147483648
    %v3546 = vor.u32 1.1754944e-38, %v3545
    %v3547 = vsel %vm3544, %v3546, %v3542
    %v3548 = vmul.f32 1.0, %v3547
    %v3549 = vtanh.pop %v3529
    %v3550 = vrot.slane %v3483, 6
    %v3552 = vmul.f32 %v3548, %v3550
    %3554 = vrot.lane.b32.xlu0 %v3549, 96
    %v3555 = vpop.permute.xlu0 %3554
    %v3557 = vmul.f32 %v3548, %v3555
    %3559 = vrot.lane.b32.xlu0 %v3557, 16
    %v3560 = vpop.permute.xlu0 %3559
    %v3562 = vadd.f32 %v3552, %v3560
    %3564 = vrot.lane.b32.xlu0 %v3548, 80
    %v3565 = vpop.permute.xlu0 %3564
    %3567 = vrot.lane.b32.xlu0 %v3548, 32
    %v3568 = vpop.permute.xlu0 %3567
    %v3570 = vsel %vm909, %v3565, %v3568
    %3572 = vrot.lane.b32.xlu0 %v3562, 112
    %v3573 = vpop.permute.xlu0 %3572
    %3575 = vrot.lane.b32.xlu0 %v3562, 64
    %v3576 = vpop.permute.xlu0 %3575
    %v3578 = vsel %vm909, %v3573, %v3576
    %v3579 = vtanh.pop %v3578
    %v3580 = vmul.f32 %v3570, %v3579
    %v3582 = vrot.slane %v3580, 4
    %v3583 = vsel %vm50, %v3582, 0
    %3585 = vmatpush.msra.mxu0 0.0
    %3586 = vmatpush.msra.mxu0 0.0
    %3587 = vmatpush.msra.mxu0 0.0
    %3588 = vmatpush.msra.mxu0 0.0
    %3589 = vmatpush.msra.mxu0 0.0
    %3590 = vmatpush.msra.mxu0 0.0
    %3591 = vmatpush.msra.mxu0 0.0
    %3592 = vmatpush.msra.mxu0 0.0
    %3593 = vmatpush.msra.mxu0 0.0
    %3594 = vmatpush.msra.mxu0 0.0
    %3595 = vmatpush.msra.mxu0 0.0
    %3596 = vmatpush.msra.mxu0 0.0
    %3597 = vmatpush.msra.mxu0 %v3025
    %3598 = vmatpush.msra.mxu0 %v3024
    %3599 = vmatpush.msra.mxu0 %v3023
    %3600 = vmatpush.msra.mxu0 %v3022
    %3601 = vmatmul.f32.gmra.mxu0 %v3583
    %v3602 = vpop.f32.mrf.mxu0
    %v3603 = vadd.f32 0.0, %v3602
    %3604 = vdwg.mxu0
    %v3606 = vrot.slane %v3603, 2
    %v3608 = vadd.f32 %v3423, %v3606
    %v3609 = vxor.u32 %v3608, 2147483648
    %v3610 = vmul.f32 %v3609, 1.442695
    %v3611 = vpow.pop %v3610
    %v3612 = vadd.f32 %v3611, 1.0
    %v3613 = vrcp.pop %v3612
    %v3614 = vmul.f32 %v3612, %v3613
    %v3615 = vsub.f32 1.0, %v3614
    %v3616 = vmul.f32 %v3613, %v3615
    %v3617 = vadd.f32 %v3613, %v3616
    %vm3618 = vweird.f32 %v3612
    %vm3619 = vweird.f32 %v3613
    %vm3620 = vmor %vm3618, %vm3619
    %v3621 = vsel %vm3620, %v3613, %v3617
    %v3622 = vand.u32 2147483647, %v3612
    %vm3623 = vcmp.eq.f32.partialorder %v3622, 8.507059e+37
    %v3624 = vand.u32 %v3612, 2147483648
    %v3625 = vor.u32 1.1754944e-38, %v3624
    %v3626 = vsel %vm3623, %v3625, %v3621
    %v3627 = vmul.f32 1.0, %v3626
    %v3628 = vtanh.pop %v3608
    %v3629 = vrot.slane %v3562, 6
    %v3631 = vmul.f32 %v3627, %v3629
    %3633 = vrot.lane.b32.xlu0 %v3628, 96
    %v3634 = vpop.permute.xlu0 %3633
    %v3636 = vmul.f32 %v3627, %v3634
    %3638 = vrot.lane.b32.xlu0 %v3636, 16
    %v3639 = vpop.permute.xlu0 %3638
    %v3641 = vadd.f32 %v3631, %v3639
    %3643 = vrot.lane.b32.xlu0 %v3627, 80
    %v3644 = vpop.permute.xlu0 %3643
    %3646 = vrot.lane.b32.xlu0 %v3627, 32
    %v3647 = vpop.permute.xlu0 %3646
    %v3649 = vsel %vm909, %v3644, %v3647
    %3651 = vrot.lane.b32.xlu0 %v3641, 112
    %v3652 = vpop.permute.xlu0 %3651
    %3654 = vrot.lane.b32.xlu0 %v3641, 64
    %v3655 = vpop.permute.xlu0 %3654
    %v3657 = vsel %vm909, %v3652, %v3655
    %v3658 = vtanh.pop %v3657
    %v3659 = vmul.f32 %v3649, %v3658
    %v3660 = vsel %vm2984, %v3099, %v3182
    %v3661 = vsel %vm322, %v3660, %v3261
    %v3662 = vsel %vm2987, %v3661, %v3340
    %v3663 = vsel %vm2984, %v3420, %v3501
    %v3664 = vsel %vm322, %v3663, %v3580
    %v3665 = vsel %vm2987, %v3664, %v3659
    %v3667 = vrot.slane %v3659, 6
    %v3669 = vrot.slane %v3580, 2
    %v3671 = vrot.slane %v3501, 6
    %v3673 = vrot.slane %v3420, 2
    %v3676 = vrot.slane %v3261, 2
    %v3678 = vrot.slane %v3182, 6
    %v3680 = vrot.slane %v3099, 2
    %v3682 = vsel %vm2984, %v3667, %v3669
    %v3683 = vsel %vm322, %v3682, %v3671
    %v3684 = vsel %vm2987, %v3683, %v3673
    %v3685 = vsel %vm2984, %v3346, %v3676
    %v3686 = vsel %vm322, %v3685, %v3678
    %v3687 = vsel %vm2987, %v3686, %v3680
    %v3688 = vsel %vm909, %v3662, %v3684
    %v3689 = vsel %vm909, %v3665, %v3687
    %v3690 = vld [vmem:[%s10] sm:$0xff]
    %v3691 = vld [vmem:[%s10 + $0x8] sm:$0xff]
    %v3692 = vld [vmem:[%s10 + $0x10] sm:$0xff]
    %v3693 = vld [vmem:[%s10 + $0x18] sm:$0xff]
    %v3694 = vperm.slane %v45, 2
    %v3696 = vsel %vm50, %v3688, 0
    %v3699 = vsel %vm50, %v3689, 0
    %3701 = vmatpush.msra.mxu0 0.0
    %3702 = vmatpush.msra.mxu0 0.0
    %3703 = vmatpush.msra.mxu0 0.0
    %3704 = vmatpush.msra.mxu0 0.0
    %3705 = vmatpush.msra.mxu0 0.0
    %3706 = vmatpush.msra.mxu0 0.0
    %3707 = vmatpush.msra.mxu0 0.0
    %3708 = vmatpush.msra.mxu0 0.0
    %3709 = vmatpush.msra.mxu0 0.0
    %3710 = vmatpush.msra.mxu0 0.0
    %3711 = vmatpush.msra.mxu0 0.0
    %3712 = vmatpush.msra.mxu0 0.0
    %3713 = vmatpush.msra.mxu0 %v3693
    %3714 = vmatpush.msra.mxu0 %v3692
    %3715 = vmatpush.msra.mxu0 %v3691
    %3716 = vmatpush.msra.mxu0 %v3690
    %3717 = vmatmul.f32.gmra.mxu0 %v3696
    %v3718 = vpop.f32.mrf.mxu0
    %v3719 = vadd.f32 %v3694, %v3718
    %3720 = vmatmul.f32.gmra.mxu0 %v3699
    %v3721 = vpop.f32.mrf.mxu0
    %v3722 = vadd.f32 %v3694, %v3721
    %3723 = vdwg.mxu0
    %vm3724 = vcmask 39936
    %v3725 = vsel %vm3724, %v3719, -inf
    %3726 = vmax.xlane.f32.xlu0 %v3725
    %v3727 = vpop.xlane.xlu0 %3726
    %v3728 = vsel %vm3724, %v3722, -inf
    %3729 = vmax.xlane.f32.xlu0 %v3728
    %v3730 = vpop.xlane.xlu0 %3729
    %v3731 = vsub.f32 %v3719, %v3727
    %v3732 = vsub.f32 %v3722, %v3730
    %v3733 = vmul.f32 %v3731, 1.442695
    %v3734 = vpow.pop %v3733
    %v3735 = vmul.f32 %v3732, 1.442695
    %v3736 = vpow.pop %v3735
    %v3737 = vsel %vm3724, %v3734, 0.0
    %3738 = vadd.xlane.f32.xlu0 %v3737
    %v3739 = vpop.xlane.xlu0 %3738
    %v3740 = vsel %vm3724, %v3736, 0.0
    %3741 = vadd.xlane.f32.xlu0 %v3740
    %v3742 = vpop.xlane.xlu0 %3741
    %v3743 = vlog2.pop %v3739
    %v3744 = vmul.f32 %v3743, 0.6931472
    %v3745 = vlog2.pop %v3742
    %v3746 = vmul.f32 %v3745, 0.6931472
    %v3747 = vsub.f32 %v3731, %v3744
    %v3748 = vsub.f32 %v3732, %v3746
    %v3749 = vld [vmem:[%s3] sm:$0x3]
    %v3750 = vlaneseq
    %v3751 = vand.u32 %v3750, 127
    %v3752 = vperm.slane %v45, 3
    %v3753 = vadd.f32 %v3747, %v3752
    %v3755 = vrot.slane %v3753, 1
    %v3756 = vperm.slane %v3753, 0
    %v3757 = vperm.slane %v3755, 0
    %v3760 = vadd.f32 %v3756, %v46
    %v3761 = vadd.f32 %v3757, %v46
    %vm3762 = vcmask 36864
    %v3763 = vsel %vm3762, %v3760, -inf
    %3764 = vmax.xlane.f32.xlu0 %v3763
    %v3765 = vpop.xlane.xlu0 %3764
    %v3766 = vsel %vm3762, %v3761, -inf
    %3767 = vmax.xlane.f32.xlu0 %v3766
    %v3768 = vpop.xlane.xlu0 %3767
    %vm3769 = vcmp.ge.f32.partialorder %v3760, %v3765
    %vm3770 = vcmp.ge.f32.partialorder %v3761, %v3768
    %v3771 = vsel %vm3769, %v3751, 5
    %v3772 = vsel %vm3770, %v3751, 5
    %v3773 = vsel %vm3762, %v3771, 2147483647
    %v3774 = vand.u32 %v3773, 65535
    %v3775 = vshra.s32 %v3773, 16
    %v3776 = vcvt.s32.f32 %v3774
    %v3777 = vcvt.s32.f32 %v3775
    %3778 = vmin.xlane.f32.xlu0 %v3777
    %v3779 = vpop.xlane.xlu0 %3778
    %vm3780 = vcmp.eq.f32.partialorder %v3777, %v3779
    %v3781 = vsel %vm3780, %v3776, inf
    %3782 = vmin.xlane.f32.xlu0 %v3781
    %v3783 = vpop.xlane.xlu0 %3782
    %v3784 = vcvt.f32.s32 %v3783
    %v3785 = vcvt.f32.s32 %v3779
    %v3786 = vshll.u32 %v3785, 16
    %v3787 = vadd.s32 %v3786, %v3784
    %v3788 = vsel %vm3762, %v3772, 2147483647
    %v3789 = vand.u32 %v3788, 65535
    %v3790 = vshra.s32 %v3788, 16
    %v3791 = vcvt.s32.f32 %v3789
    %v3792 = vcvt.s32.f32 %v3790
    %3793 = vmin.xlane.f32.xlu0 %v3792
    %v3794 = vpop.xlane.xlu0 %3793
    %vm3795 = vcmp.eq.f32.partialorder %v3792, %v3794
    %v3796 = vsel %vm3795, %v3791, inf
    %3797 = vmin.xlane.f32.xlu0 %v3796
    %v3798 = vpop.xlane.xlu0 %3797
    %v3799 = vcvt.f32.s32 %v3798
    %v3800 = vcvt.f32.s32 %v3794
    %v3801 = vshll.u32 %v3800, 16
    %v3802 = vadd.s32 %v3801, %v3799
    %vm3803 = vcmp.gt.f32.partialorder %v3749, 0.5
    %v3804 = vsel %vm3803, 1, 0
    %3805 = vset.pattern.permute.xlu0 1
    %3806 = vperm.xlu0 %3805, %v3804
    %v3807 = vpop.permute.xlu0 %3806
    %vm3808 = vcmp.eq.s32.totalorder %v3807, 1
    %v3809 = vperm.slane %v3787, %v3751
    %v3810 = vperm.slane %v3802, %v3751
    %vm3811 = vcmask 1041409
    %v3812 = vsel %vm3811, %v3810, %v3809
    %v3813 = vsel %vm3808, %v3812, %v3751
    %v3815 = vperm.slane %v3747, 2
    %v3816 = vlaneseq
    %v3817 = vshrl.u32 %v3816, 7
    %3819 = vset.pattern.permute.xlu0 %v3817
    %3820 = vperm.xlu0 %3819, %v3815
    %v3821 = vpop.permute.xlu0 %3820
    %v3822 = vperm.slane %v3747, 3
    %v3823 = vlaneseq
    %v3824 = vshrl.u32 %v3823, 7
    %3826 = vset.pattern.permute.xlu0 %v3824
    %3827 = vperm.xlu0 %3826, %v3822
    %v3828 = vpop.permute.xlu0 %3827
    %v3831 = vadd.f32 %v3765, %v3821
    %v3832 = vadd.f32 %v3768, %v3828
    %3835 = vset.pattern.permute.xlu0 0
    %3836 = vperm.xlu0 %3835, %v3831
    %v3837 = vpop.permute.xlu0 %3836
    %3838 = vset.pattern.permute.xlu0 0
    %3839 = vperm.xlu0 %3838, %v3832
    %v3840 = vpop.permute.xlu0 %3839
    %v3841 = vperm.slane %v3837, %v3751
    %v3842 = vperm.slane %v3840, %v3751
    %v3843 = vsel %vm3811, %v3842, %v3841
    %v3845 = vsel %vm3808, %v3843, %v3753
    %v3847 = vrot.slane %v3845, 1
    %v3848 = vperm.slane %v3845, 0
    %v3849 = vperm.slane %v3847, 0
    %v3852 = vadd.f32 %v3848, %v46
    %v3853 = vadd.f32 %v3849, %v46
    %v3854 = vsel %vm3762, %v3852, -inf
    %3855 = vmax.xlane.f32.xlu0 %v3854
    %v3856 = vpop.xlane.xlu0 %3855
    %v3857 = vsel %vm3762, %v3853, -inf
    %3858 = vmax.xlane.f32.xlu0 %v3857
    %v3859 = vpop.xlane.xlu0 %3858
    %vm3860 = vcmp.ge.f32.partialorder %v3852, %v3856
    %vm3861 = vcmp.ge.f32.partialorder %v3853, %v3859
    %v3862 = vsel %vm3860, %v3751, 5
    %v3863 = vsel %vm3861, %v3751, 5
    %v3864 = vsel %vm3762, %v3862, 2147483647
    %v3865 = vand.u32 %v3864, 65535
    %v3866 = vshra.s32 %v3864, 16
    %v3867 = vcvt.s32.f32 %v3865
    %v3868 = vcvt.s32.f32 %v3866
    %3869 = vmin.xlane.f32.xlu0 %v3868
    %v3870 = vpop.xlane.xlu0 %3869
    %vm3871 = vcmp.eq.f32.partialorder %v3868, %v3870
    %v3872 = vsel %vm3871, %v3867, inf
    %3873 = vmin.xlane.f32.xlu0 %v3872
    %v3874 = vpop.xlane.xlu0 %3873
    %v3875 = vcvt.f32.s32 %v3874
    %v3876 = vcvt.f32.s32 %v3870
    %v3877 = vshll.u32 %v3876, 16
    %v3878 = vadd.s32 %v3877, %v3875
    %v3879 = vsel %vm3762, %v3863, 2147483647
    %v3880 = vand.u32 %v3879, 65535
    %v3881 = vshra.s32 %v3879, 16
    %v3882 = vcvt.s32.f32 %v3880
    %v3883 = vcvt.s32.f32 %v3881
    %3884 = vmin.xlane.f32.xlu0 %v3883
    %v3885 = vpop.xlane.xlu0 %3884
    %vm3886 = vcmp.eq.f32.partialorder %v3883, %v3885
    %v3887 = vsel %vm3886, %v3882, inf
    %3888 = vmin.xlane.f32.xlu0 %v3887
    %v3889 = vpop.xlane.xlu0 %3888
    %v3890 = vcvt.f32.s32 %v3889
    %v3891 = vcvt.f32.s32 %v3885
    %v3892 = vshll.u32 %v3891, 16
    %v3893 = vadd.s32 %v3892, %v3890
    %3894 = vset.pattern.permute.xlu0 2
    %3895 = vperm.xlu0 %3894, %v3804
    %v3896 = vpop.permute.xlu0 %3895
    %vm3897 = vcmp.eq.s32.totalorder %v3896, 1
    %v3898 = vperm.slane %v3878, %v3751
    %v3899 = vperm.slane %v3893, %v3751
    %v3900 = vsel %vm3811, %v3899, %v3898
    %v3901 = vsel %vm3897, %v3900, %v3751
    %v3902 = vperm.slane %v3747, 4
    %v3903 = vlaneseq
    %v3904 = vshrl.u32 %v3903, 7
    %3906 = vset.pattern.permute.xlu0 %v3904
    %3907 = vperm.xlu0 %3906, %v3902
    %v3908 = vpop.permute.xlu0 %3907
    %v3909 = vperm.slane %v3747, 5
    %v3910 = vlaneseq
    %v3911 = vshrl.u32 %v3910, 7
    %3913 = vset.pattern.permute.xlu0 %v3911
    %3914 = vperm.xlu0 %3913, %v3909
    %v3915 = vpop.permute.xlu0 %3914
    %v3918 = vadd.f32 %v3856, %v3908
    %v3919 = vadd.f32 %v3859, %v3915
    %3922 = vset.pattern.permute.xlu0 0
    %3923 = vperm.xlu0 %3922, %v3918
    %v3924 = vpop.permute.xlu0 %3923
    %3925 = vset.pattern.permute.xlu0 0
    %3926 = vperm.xlu0 %3925, %v3919
    %v3927 = vpop.permute.xlu0 %3926
    %v3928 = vperm.slane %v3924, %v3751
    %v3929 = vperm.slane %v3927, %v3751
    %v3930 = vsel %vm3811, %v3929, %v3928
    %v3932 = vsel %vm3897, %v3930, %v3845
    %v3934 = vrot.slane %v3932, 1
    %v3935 = vperm.slane %v3932, 0
    %v3936 = vperm.slane %v3934, 0
    %v3939 = vadd.f32 %v3935, %v46
    %v3940 = vadd.f32 %v3936, %v46
    %v3941 = vsel %vm3762, %v3939, -inf
    %3942 = vmax.xlane.f32.xlu0 %v3941
    %v3943 = vpop.xlane.xlu0 %3942
    %v3944 = vsel %vm3762, %v3940, -inf
    %3945 = vmax.xlane.f32.xlu0 %v3944
    %v3946 = vpop.xlane.xlu0 %3945
    %vm3947 = vcmp.ge.f32.partialorder %v3939, %v3943
    %vm3948 = vcmp.ge.f32.partialorder %v3940, %v3946
    %v3949 = vsel %vm3947, %v3751, 5
    %v3950 = vsel %vm3948, %v3751, 5
    %v3951 = vsel %vm3762, %v3949, 2147483647
    %v3952 = vand.u32 %v3951, 65535
    %v3953 = vshra.s32 %v3951, 16
    %v3954 = vcvt.s32.f32 %v3952
    %v3955 = vcvt.s32.f32 %v3953
    %3956 = vmin.xlane.f32.xlu0 %v3955
    %v3957 = vpop.xlane.xlu0 %3956
    %vm3958 = vcmp.eq.f32.partialorder %v3955, %v3957
    %v3959 = vsel %vm3958, %v3954, inf
    %3960 = vmin.xlane.f32.xlu0 %v3959
    %v3961 = vpop.xlane.xlu0 %3960
    %v3962 = vcvt.f32.s32 %v3961
    %v3963 = vcvt.f32.s32 %v3957
    %v3964 = vshll.u32 %v3963, 16
    %v3965 = vadd.s32 %v3964, %v3962
    %v3966 = vsel %vm3762, %v3950, 2147483647
    %v3967 = vand.u32 %v3966, 65535
    %v3968 = vshra.s32 %v3966, 16
    %v3969 = vcvt.s32.f32 %v3967
    %v3970 = vcvt.s32.f32 %v3968
    %3971 = vmin.xlane.f32.xlu0 %v3970
    %v3972 = vpop.xlane.xlu0 %3971
    %vm3973 = vcmp.eq.f32.partialorder %v3970, %v3972
    %v3974 = vsel %vm3973, %v3969, inf
    %3975 = vmin.xlane.f32.xlu0 %v3974
    %v3976 = vpop.xlane.xlu0 %3975
    %v3977 = vcvt.f32.s32 %v3976
    %v3978 = vcvt.f32.s32 %v3972
    %v3979 = vshll.u32 %v3978, 16
    %v3980 = vadd.s32 %v3979, %v3977
    %3981 = vset.pattern.permute.xlu0 3
    %3982 = vperm.xlu0 %3981, %v3804
    %v3983 = vpop.permute.xlu0 %3982
    %vm3984 = vcmp.eq.s32.totalorder %v3983, 1
    %v3985 = vperm.slane %v3965, %v3751
    %v3986 = vperm.slane %v3980, %v3751
    %v3987 = vsel %vm3811, %v3986, %v3985
    %v3988 = vsel %vm3984, %v3987, %v3751
    %v3989 = vperm.slane %v3747, 6
    %v3990 = vlaneseq
    %v3991 = vshrl.u32 %v3990, 7
    %3993 = vset.pattern.permute.xlu0 %v3991
    %3994 = vperm.xlu0 %3993, %v3989
    %v3995 = vpop.permute.xlu0 %3994
    %v3996 = vperm.slane %v3747, 7
    %v3997 = vlaneseq
    %v3998 = vshrl.u32 %v3997, 7
    %4000 = vset.pattern.permute.xlu0 %v3998
    %4001 = vperm.xlu0 %4000, %v3996
    %v4002 = vpop.permute.xlu0 %4001
    %v4005 = vadd.f32 %v3943, %v3995
    %v4006 = vadd.f32 %v3946, %v4002
    %4009 = vset.pattern.permute.xlu0 0
    %4010 = vperm.xlu0 %4009, %v4005
    %v4011 = vpop.permute.xlu0 %4010
    %4012 = vset.pattern.permute.xlu0 0
    %4013 = vperm.xlu0 %4012, %v4006
    %v4014 = vpop.permute.xlu0 %4013
    %v4015 = vperm.slane %v4011, %v3751
    %v4016 = vperm.slane %v4014, %v3751
    %v4017 = vsel %vm3811, %v4016, %v4015
    %v4019 = vsel %vm3984, %v4017, %v3932
    %v4021 = vrot.slane %v4019, 1
    %v4022 = vperm.slane %v4019, 0
    %v4023 = vperm.slane %v4021, 0
    %v4026 = vadd.f32 %v4022, %v46
    %v4027 = vadd.f32 %v4023, %v46
    %v4028 = vsel %vm3762, %v4026, -inf
    %4029 = vmax.xlane.f32.xlu0 %v4028
    %v4030 = vpop.xlane.xlu0 %4029
    %v4031 = vsel %vm3762, %v4027, -inf
    %4032 = vmax.xlane.f32.xlu0 %v4031
    %v4033 = vpop.xlane.xlu0 %4032
    %vm4034 = vcmp.ge.f32.partialorder %v4026, %v4030
    %vm4035 = vcmp.ge.f32.partialorder %v4027, %v4033
    %v4036 = vsel %vm4034, %v3751, 5
    %v4037 = vsel %vm4035, %v3751, 5
    %v4038 = vsel %vm3762, %v4036, 2147483647
    %v4039 = vand.u32 %v4038, 65535
    %v4040 = vshra.s32 %v4038, 16
    %v4041 = vcvt.s32.f32 %v4039
    %v4042 = vcvt.s32.f32 %v4040
    %4043 = vmin.xlane.f32.xlu0 %v4042
    %v4044 = vpop.xlane.xlu0 %4043
    %vm4045 = vcmp.eq.f32.partialorder %v4042, %v4044
    %v4046 = vsel %vm4045, %v4041, inf
    %4047 = vmin.xlane.f32.xlu0 %v4046
    %v4048 = vpop.xlane.xlu0 %4047
    %v4049 = vcvt.f32.s32 %v4048
    %v4050 = vcvt.f32.s32 %v4044
    %v4051 = vshll.u32 %v4050, 16
    %v4052 = vadd.s32 %v4051, %v4049
    %v4053 = vsel %vm3762, %v4037, 2147483647
    %v4054 = vand.u32 %v4053, 65535
    %v4055 = vshra.s32 %v4053, 16
    %v4056 = vcvt.s32.f32 %v4054
    %v4057 = vcvt.s32.f32 %v4055
    %4058 = vmin.xlane.f32.xlu0 %v4057
    %v4059 = vpop.xlane.xlu0 %4058
    %vm4060 = vcmp.eq.f32.partialorder %v4057, %v4059
    %v4061 = vsel %vm4060, %v4056, inf
    %4062 = vmin.xlane.f32.xlu0 %v4061
    %v4063 = vpop.xlane.xlu0 %4062
    %v4064 = vcvt.f32.s32 %v4063
    %v4065 = vcvt.f32.s32 %v4059
    %v4066 = vshll.u32 %v4065, 16
    %v4067 = vadd.s32 %v4066, %v4064
    %4068 = vset.pattern.permute.xlu0 4
    %4069 = vperm.xlu0 %4068, %v3804
    %v4070 = vpop.permute.xlu0 %4069
    %vm4071 = vcmp.eq.s32.totalorder %v4070, 1
    %v4072 = vperm.slane %v4052, %v3751
    %v4073 = vperm.slane %v4067, %v3751
    %v4074 = vsel %vm3811, %v4073, %v4072
    %v4075 = vsel %vm4071, %v4074, %v3751
    %v4077 = vperm.slane %v3748, 0
    %v4078 = vlaneseq
    %v4079 = vshrl.u32 %v4078, 7
    %4081 = vset.pattern.permute.xlu0 %v4079
    %4082 = vperm.xlu0 %4081, %v4077
    %v4083 = vpop.permute.xlu0 %4082
    %v4084 = vperm.slane %v3748, 1
    %v4085 = vlaneseq
    %v4086 = vshrl.u32 %v4085, 7
    %4088 = vset.pattern.permute.xlu0 %v4086
    %4089 = vperm.xlu0 %4088, %v4084
    %v4090 = vpop.permute.xlu0 %4089
    %v4093 = vadd.f32 %v4030, %v4083
    %v4094 = vadd.f32 %v4033, %v4090
    %4097 = vset.pattern.permute.xlu0 0
    %4098 = vperm.xlu0 %4097, %v4093
    %v4099 = vpop.permute.xlu0 %4098
    %4100 = vset.pattern.permute.xlu0 0
    %4101 = vperm.xlu0 %4100, %v4094
    %v4102 = vpop.permute.xlu0 %4101
    %v4103 = vperm.slane %v4099, %v3751
    %v4104 = vperm.slane %v4102, %v3751
    %v4105 = vsel %vm3811, %v4104, %v4103
    %v4107 = vsel %vm4071, %v4105, %v4019
    %v4109 = vrot.slane %v4107, 1
    %v4110 = vperm.slane %v4107, 0
    %v4111 = vperm.slane %v4109, 0
    %v4114 = vadd.f32 %v4110, %v46
    %v4115 = vadd.f32 %v4111, %v46
    %v4116 = vsel %vm3762, %v4114, -inf
    %4117 = vmax.xlane.f32.xlu0 %v4116
    %v4118 = vpop.xlane.xlu0 %4117
    %v4119 = vsel %vm3762, %v4115, -inf
    %4120 = vmax.xlane.f32.xlu0 %v4119
    %v4121 = vpop.xlane.xlu0 %4120
    %vm4122 = vcmp.ge.f32.partialorder %v4114, %v4118
    %vm4123 = vcmp.ge.f32.partialorder %v4115, %v4121
    %v4124 = vsel %vm4122, %v3751, 5
    %v4125 = vsel %vm4123, %v3751, 5
    %v4126 = vsel %vm3762, %v4124, 2147483647
    %v4127 = vand.u32 %v4126, 65535
    %v4128 = vshra.s32 %v4126, 16
    %v4129 = vcvt.s32.f32 %v4127
    %v4130 = vcvt.s32.f32 %v4128
    %4131 = vmin.xlane.f32.xlu0 %v4130
    %v4132 = vpop.xlane.xlu0 %4131
    %vm4133 = vcmp.eq.f32.partialorder %v4130, %v4132
    %v4134 = vsel %vm4133, %v4129, inf
    %4135 = vmin.xlane.f32.xlu0 %v4134
    %v4136 = vpop.xlane.xlu0 %4135
    %v4137 = vcvt.f32.s32 %v4136
    %v4138 = vcvt.f32.s32 %v4132
    %v4139 = vshll.u32 %v4138, 16
    %v4140 = vadd.s32 %v4139, %v4137
    %v4141 = vsel %vm3762, %v4125, 2147483647
    %v4142 = vand.u32 %v4141, 65535
    %v4143 = vshra.s32 %v4141, 16
    %v4144 = vcvt.s32.f32 %v4142
    %v4145 = vcvt.s32.f32 %v4143
    %4146 = vmin.xlane.f32.xlu0 %v4145
    %v4147 = vpop.xlane.xlu0 %4146
    %vm4148 = vcmp.eq.f32.partialorder %v4145, %v4147
    %v4149 = vsel %vm4148, %v4144, inf
    %4150 = vmin.xlane.f32.xlu0 %v4149
    %v4151 = vpop.xlane.xlu0 %4150
    %v4152 = vcvt.f32.s32 %v4151
    %v4153 = vcvt.f32.s32 %v4147
    %v4154 = vshll.u32 %v4153, 16
    %v4155 = vadd.s32 %v4154, %v4152
    %4156 = vset.pattern.permute.xlu0 5
    %4157 = vperm.xlu0 %4156, %v3804
    %v4158 = vpop.permute.xlu0 %4157
    %vm4159 = vcmp.eq.s32.totalorder %v4158, 1
    %v4160 = vperm.slane %v4140, %v3751
    %v4161 = vperm.slane %v4155, %v3751
    %v4162 = vsel %vm3811, %v4161, %v4160
    %v4163 = vsel %vm4159, %v4162, %v3751
    %v4164 = vperm.slane %v3748, 2
    %v4165 = vlaneseq
    %v4166 = vshrl.u32 %v4165, 7
    %4168 = vset.pattern.permute.xlu0 %v4166
    %4169 = vperm.xlu0 %4168, %v4164
    %v4170 = vpop.permute.xlu0 %4169
    %v4171 = vperm.slane %v3748, 3
    %v4172 = vlaneseq
    %v4173 = vshrl.u32 %v4172, 7
    %4175 = vset.pattern.permute.xlu0 %v4173
    %4176 = vperm.xlu0 %4175, %v4171
    %v4177 = vpop.permute.xlu0 %4176
    %v4180 = vadd.f32 %v4118, %v4170
    %v4181 = vadd.f32 %v4121, %v4177
    %4184 = vset.pattern.permute.xlu0 0
    %4185 = vperm.xlu0 %4184, %v4180
    %v4186 = vpop.permute.xlu0 %4185
    %4187 = vset.pattern.permute.xlu0 0
    %4188 = vperm.xlu0 %4187, %v4181
    %v4189 = vpop.permute.xlu0 %4188
    %v4190 = vperm.slane %v4186, %v3751
    %v4191 = vperm.slane %v4189, %v3751
    %v4192 = vsel %vm3811, %v4191, %v4190
    %v4194 = vsel %vm4159, %v4192, %v4107
    %v4196 = vrot.slane %v4194, 1
    %v4197 = vperm.slane %v4194, 0
    %v4198 = vperm.slane %v4196, 0
    %v4201 = vadd.f32 %v4197, %v46
    %v4202 = vadd.f32 %v4198, %v46
    %v4203 = vsel %vm3762, %v4201, -inf
    %4204 = vmax.xlane.f32.xlu0 %v4203
    %v4205 = vpop.xlane.xlu0 %4204
    %v4206 = vsel %vm3762, %v4202, -inf
    %4207 = vmax.xlane.f32.xlu0 %v4206
    %v4208 = vpop.xlane.xlu0 %4207
    %vm4209 = vcmp.ge.f32.partialorder %v4201, %v4205
    %vm4210 = vcmp.ge.f32.partialorder %v4202, %v4208
    %v4211 = vsel %vm4209, %v3751, 5
    %v4212 = vsel %vm4210, %v3751, 5
    %v4213 = vsel %vm3762, %v4211, 2147483647
    %v4214 = vand.u32 %v4213, 65535
    %v4215 = vshra.s32 %v4213, 16
    %v4216 = vcvt.s32.f32 %v4214
    %v4217 = vcvt.s32.f32 %v4215
    %4218 = vmin.xlane.f32.xlu0 %v4217
    %v4219 = vpop.xlane.xlu0 %4218
    %vm4220 = vcmp.eq.f32.partialorder %v4217, %v4219
    %v4221 = vsel %vm4220, %v4216, inf
    %4222 = vmin.xlane.f32.xlu0 %v4221
    %v4223 = vpop.xlane.xlu0 %4222
    %v4224 = vcvt.f32.s32 %v4223
    %v4225 = vcvt.f32.s32 %v4219
    %v4226 = vshll.u32 %v4225, 16
    %v4227 = vadd.s32 %v4226, %v4224
    %v4228 = vsel %vm3762, %v4212, 2147483647
    %v4229 = vand.u32 %v4228, 65535
    %v4230 = vshra.s32 %v4228, 16
    %v4231 = vcvt.s32.f32 %v4229
    %v4232 = vcvt.s32.f32 %v4230
    %4233 = vmin.xlane.f32.xlu0 %v4232
    %v4234 = vpop.xlane.xlu0 %4233
    %vm4235 = vcmp.eq.f32.partialorder %v4232, %v4234
    %v4236 = vsel %vm4235, %v4231, inf
    %4237 = vmin.xlane.f32.xlu0 %v4236
    %v4238 = vpop.xlane.xlu0 %4237
    %v4239 = vcvt.f32.s32 %v4238
    %v4240 = vcvt.f32.s32 %v4234
    %v4241 = vshll.u32 %v4240, 16
    %v4242 = vadd.s32 %v4241, %v4239
    %4243 = vset.pattern.permute.xlu0 6
    %4244 = vperm.xlu0 %4243, %v3804
    %v4245 = vpop.permute.xlu0 %4244
    %vm4246 = vcmp.eq.s32.totalorder %v4245, 1
    %v4247 = vperm.slane %v4227, %v3751
    %v4248 = vperm.slane %v4242, %v3751
    %v4249 = vsel %vm3811, %v4248, %v4247
    %v4250 = vsel %vm4246, %v4249, %v3751
    %v4251 = vperm.slane %v3748, 4
    %v4252 = vlaneseq
    %v4253 = vshrl.u32 %v4252, 7
    %4255 = vset.pattern.permute.xlu0 %v4253
    %4256 = vperm.xlu0 %4255, %v4251
    %v4257 = vpop.permute.xlu0 %4256
    %v4258 = vperm.slane %v3748, 5
    %v4259 = vlaneseq
    %v4260 = vshrl.u32 %v4259, 7
    %4262 = vset.pattern.permute.xlu0 %v4260
    %4263 = vperm.xlu0 %4262, %v4258
    %v4264 = vpop.permute.xlu0 %4263
    %v4267 = vadd.f32 %v4205, %v4257
    %v4268 = vadd.f32 %v4208, %v4264
    %4271 = vset.pattern.permute.xlu0 0
    %4272 = vperm.xlu0 %4271, %v4267
    %v4273 = vpop.permute.xlu0 %4272
    %4274 = vset.pattern.permute.xlu0 0
    %4275 = vperm.xlu0 %4274, %v4268
    %v4276 = vpop.permute.xlu0 %4275
    %v4277 = vperm.slane %v4273, %v3751
    %v4278 = vperm.slane %v4276, %v3751
    %v4279 = vsel %vm3811, %v4278, %v4277
    %v4281 = vsel %vm4246, %v4279, %v4194
    %v4283 = vrot.slane %v4281, 1
    %v4284 = vperm.slane %v4281, 0
    %v4285 = vperm.slane %v4283, 0
    %v4288 = vadd.f32 %v4284, %v46
    %v4289 = vadd.f32 %v4285, %v46
    %v4290 = vsel %vm3762, %v4288, -inf
    %4291 = vmax.xlane.f32.xlu0 %v4290
    %v4292 = vpop.xlane.xlu0 %4291
    %v4293 = vsel %vm3762, %v4289, -inf
    %4294 = vmax.xlane.f32.xlu0 %v4293
    %v4295 = vpop.xlane.xlu0 %4294
    %vm4296 = vcmp.ge.f32.partialorder %v4288, %v4292
    %vm4297 = vcmp.ge.f32.partialorder %v4289, %v4295
    %v4298 = vsel %vm4296, %v3751, 5
    %v4299 = vsel %vm4297, %v3751, 5
    %v4300 = vsel %vm3762, %v4298, 2147483647
    %v4301 = vand.u32 %v4300, 65535
    %v4302 = vshra.s32 %v4300, 16
    %v4303 = vcvt.s32.f32 %v4301
    %v4304 = vcvt.s32.f32 %v4302
    %4305 = vmin.xlane.f32.xlu0 %v4304
    %v4306 = vpop.xlane.xlu0 %4305
    %vm4307 = vcmp.eq.f32.partialorder %v4304, %v4306
    %v4308 = vsel %vm4307, %v4303, inf
    %4309 = vmin.xlane.f32.xlu0 %v4308
    %v4310 = vpop.xlane.xlu0 %4309
    %v4311 = vcvt.f32.s32 %v4310
    %v4312 = vcvt.f32.s32 %v4306
    %v4313 = vshll.u32 %v4312, 16
    %v4314 = vadd.s32 %v4313, %v4311
    %v4315 = vsel %vm3762, %v4299, 2147483647
    %v4316 = vand.u32 %v4315, 65535
    %v4317 = vshra.s32 %v4315, 16
    %v4318 = vcvt.s32.f32 %v4316
    %v4319 = vcvt.s32.f32 %v4317
    %4320 = vmin.xlane.f32.xlu0 %v4319
    %v4321 = vpop.xlane.xlu0 %4320
    %vm4322 = vcmp.eq.f32.partialorder %v4319, %v4321
    %v4323 = vsel %vm4322, %v4318, inf
    %4324 = vmin.xlane.f32.xlu0 %v4323
    %v4325 = vpop.xlane.xlu0 %4324
    %v4326 = vcvt.f32.s32 %v4325
    %v4327 = vcvt.f32.s32 %v4321
    %v4328 = vshll.u32 %v4327, 16
    %v4329 = vadd.s32 %v4328, %v4326
    %4330 = vset.pattern.permute.xlu0 7
    %4331 = vperm.xlu0 %4330, %v3804
    %v4332 = vpop.permute.xlu0 %4331
    %vm4333 = vcmp.eq.s32.totalorder %v4332, 1
    %v4334 = vperm.slane %v4314, %v3751
    %v4335 = vperm.slane %v4329, %v3751
    %v4336 = vsel %vm3811, %v4335, %v4334
    %v4337 = vsel %vm4333, %v4336, %v3751
    %v4338 = vperm.slane %v3748, 6
    %v4339 = vlaneseq
    %v4340 = vshrl.u32 %v4339, 7
    %4342 = vset.pattern.permute.xlu0 %v4340
    %4343 = vperm.xlu0 %4342, %v4338
    %v4344 = vpop.permute.xlu0 %4343
    %v4345 = vperm.slane %v3748, 7
    %v4346 = vlaneseq
    %v4347 = vshrl.u32 %v4346, 7
    %4349 = vset.pattern.permute.xlu0 %v4347
    %4350 = vperm.xlu0 %4349, %v4345
    %v4351 = vpop.permute.xlu0 %4350
    %v4354 = vadd.f32 %v4292, %v4344
    %v4355 = vadd.f32 %v4295, %v4351
    %4358 = vset.pattern.permute.xlu0 0
    %4359 = vperm.xlu0 %4358, %v4354
    %v4360 = vpop.permute.xlu0 %4359
    %4361 = vset.pattern.permute.xlu0 0
    %4362 = vperm.xlu0 %4361, %v4355
    %v4363 = vpop.permute.xlu0 %4362
    %v4364 = vperm.slane %v4360, %v3751
    %v4365 = vperm.slane %v4363, %v3751
    %v4366 = vsel %vm3811, %v4365, %v4364
    %v4368 = vsel %vm4333, %v4366, %v4281
    %v4369 = vperm.slane %v45, 4
    %v4370 = vadd.f32 %v4368, %v4369
    %vm4371 = vcmask 33792
    %v4372 = vsel %vm4371, %v4370, -inf
    %4373 = vmax.xlane.f32.xlu0 %v4372
    %v4374 = vpop.xlane.xlu0 %4373
    %vm4375 = vcmp.ge.f32.partialorder %v4370, %v4374
    %v4376 = vsel %vm4375, %v3751, 5
    %v4377 = vsel %vm4371, %v4376, 2147483647
    %v4378 = vand.u32 %v4377, 65535
    %v4379 = vshra.s32 %v4377, 16
    %v4380 = vcvt.s32.f32 %v4378
    %v4381 = vcvt.s32.f32 %v4379
    %4382 = vmin.xlane.f32.xlu0 %v4381
    %v4383 = vpop.xlane.xlu0 %4382
    %vm4384 = vcmp.eq.f32.partialorder %v4381, %v4383
    %v4385 = vsel %vm4384, %v4380, inf
    %4386 = vmin.xlane.f32.xlu0 %v4385
    %v4387 = vpop.xlane.xlu0 %4386
    %v4388 = vcvt.f32.s32 %v4387
    %v4389 = vcvt.f32.s32 %v4383
    %v4390 = vshll.u32 %v4389, 16
    %v4391 = vadd.s32 %v4390, %v4388
    %vm4392 = vcmp.eq.s32.totalorder %v3751, %v4391
    %v4393 = vsel %vm4392, %v4337, 0
    %v4394 = vsel %vm4371, %v4393, 0
    %v4395 = vand.u32 %v4394, 65535
    %v4396 = vshrl.u32 %v4394, 16
    %v4397 = vcvt.s32.f32 %v4395
    %v4398 = vcvt.s32.f32 %v4396
    %4399 = vadd.xlane.f32.xlu0 %v4397
    %v4400 = vpop.xlane.xlu0 %4399
    %4401 = vadd.xlane.f32.xlu0 %v4398
    %v4402 = vpop.xlane.xlu0 %4401
    %v4403 = vcvt.f32.s32 %v4400
    %v4404 = vcvt.f32.s32 %v4402
    %v4405 = vshll.u32 %v4404, 16
    %v4406 = vadd.s32 %v4405, %v4403
    %vm4407 = vcmp.eq.s32.totalorder %v3751, %v4406
    %v4408 = vsel %vm4407, %v4250, 0
    %v4409 = vsel %vm4371, %v4408, 0
    %v4410 = vand.u32 %v4409, 65535
    %v4411 = vshrl.u32 %v4409, 16
    %v4412 = vcvt.s32.f32 %v4410
    %v4413 = vcvt.s32.f32 %v4411
    %4414 = vadd.xlane.f32.xlu0 %v4412
    %v4415 = vpop.xlane.xlu0 %4414
    %4416 = vadd.xlane.f32.xlu0 %v4413
    %v4417 = vpop.xlane.xlu0 %4416
    %v4418 = vcvt.f32.s32 %v4415
    %v4419 = vcvt.f32.s32 %v4417
    %v4420 = vshll.u32 %v4419, 16
    %v4421 = vadd.s32 %v4420, %v4418
    %vm4422 = vcmp.eq.s32.totalorder %v3751, %v4421
    %v4423 = vsel %vm4422, %v4163, 0
    %v4424 = vsel %vm4371, %v4423, 0
    %v4425 = vand.u32 %v4424, 65535
    %v4426 = vshrl.u32 %v4424, 16
    %v4427 = vcvt.s32.f32 %v4425
    %v4428 = vcvt.s32.f32 %v4426
    %4429 = vadd.xlane.f32.xlu0 %v4427
    %v4430 = vpop.xlane.xlu0 %4429
    %4431 = vadd.xlane.f32.xlu0 %v4428
    %v4432 = vpop.xlane.xlu0 %4431
    %v4433 = vcvt.f32.s32 %v4430
    %v4434 = vcvt.f32.s32 %v4432
    %v4435 = vshll.u32 %v4434, 16
    %v4436 = vadd.s32 %v4435, %v4433
    %vm4437 = vcmp.eq.s32.totalorder %v3751, %v4436
    %v4438 = vsel %vm4437, %v4075, 0
    %v4439 = vsel %vm4371, %v4438, 0
    %v4440 = vand.u32 %v4439, 65535
    %v4441 = vshrl.u32 %v4439, 16
    %v4442 = vcvt.s32.f32 %v4440
    %v4443 = vcvt.s32.f32 %v4441
    %4444 = vadd.xlane.f32.xlu0 %v4442
    %v4445 = vpop.xlane.xlu0 %4444
    %4446 = vadd.xlane.f32.xlu0 %v4443
    %v4447 = vpop.xlane.xlu0 %4446
    %v4448 = vcvt.f32.s32 %v4445
    %v4449 = vcvt.f32.s32 %v4447
    %v4450 = vshll.u32 %v4449, 16
    %v4451 = vadd.s32 %v4450, %v4448
    %vm4452 = vcmp.eq.s32.totalorder %v3751, %v4451
    %v4453 = vsel %vm4452, %v3988, 0
    %v4454 = vsel %vm4371, %v4453, 0
    %v4455 = vand.u32 %v4454, 65535
    %v4456 = vshrl.u32 %v4454, 16
    %v4457 = vcvt.s32.f32 %v4455
    %v4458 = vcvt.s32.f32 %v4456
    %4459 = vadd.xlane.f32.xlu0 %v4457
    %v4460 = vpop.xlane.xlu0 %4459
    %4461 = vadd.xlane.f32.xlu0 %v4458
    %v4462 = vpop.xlane.xlu0 %4461
    %v4463 = vcvt.f32.s32 %v4460
    %v4464 = vcvt.f32.s32 %v4462
    %v4465 = vshll.u32 %v4464, 16
    %v4466 = vadd.s32 %v4465, %v4463
    %vm4467 = vcmp.eq.s32.totalorder %v3751, %v4466
    %v4468 = vsel %vm4467, %v3901, 0
    %v4469 = vsel %vm4371, %v4468, 0
    %v4470 = vand.u32 %v4469, 65535
    %v4471 = vshrl.u32 %v4469, 16
    %v4472 = vcvt.s32.f32 %v4470
    %v4473 = vcvt.s32.f32 %v4471
    %4474 = vadd.xlane.f32.xlu0 %v4472
    %v4475 = vpop.xlane.xlu0 %4474
    %4476 = vadd.xlane.f32.xlu0 %v4473
    %v4477 = vpop.xlane.xlu0 %4476
    %v4478 = vcvt.f32.s32 %v4475
    %v4479 = vcvt.f32.s32 %v4477
    %v4480 = vshll.u32 %v4479, 16
    %v4481 = vadd.s32 %v4480, %v4478
    %vm4482 = vcmp.eq.s32.totalorder %v3751, %v4481
    %v4483 = vsel %vm4482, %v3813, 0
    %v4484 = vsel %vm4371, %v4483, 0
    %v4485 = vand.u32 %v4484, 65535
    %v4486 = vshrl.u32 %v4484, 16
    %v4487 = vcvt.s32.f32 %v4485
    %v4488 = vcvt.s32.f32 %v4486
    %4489 = vadd.xlane.f32.xlu0 %v4487
    %v4490 = vpop.xlane.xlu0 %4489
    %4491 = vadd.xlane.f32.xlu0 %v4488
    %v4492 = vpop.xlane.xlu0 %4491
    %v4493 = vcvt.f32.s32 %v4490
    %v4494 = vcvt.f32.s32 %v4492
    %v4495 = vshll.u32 %v4494, 16
    %v4496 = vadd.s32 %v4495, %v4493
    %vm4497 = vcmask 7168
    %v4498 = vsel %vm4497, %v4496, %v4481
    %vm4499 = vcmask 15360
    %v4500 = vsel %vm4499, %v4498, %v4466
    %vm4501 = vcmask 23552
    %v4502 = vsel %vm4501, %v4500, %v4451
    %vm4503 = vcmask 31744
    %v4504 = vsel %vm4503, %v4502, %v4436
    %v4505 = vsel %vm3724, %v4504, %v4421
    %vm4506 = vcmask 48128
    %v4507 = vsel %vm4506, %v4505, %v4406
    %vm4508 = vcmask 56320
    %v4509 = vsel %vm4508, %v4507, %v4391
    %v4510 = vsel %vm3803, %v4509, 0
    %vm4511 = vcmask 58368
    %4512 = vst.msk [vmem:[#allocation2] sm:$0x3] %vm4511, %v4510
    // Predicated region
    $region54: #{forward.1} parent=1 // pred_check
      _
    $region55: #{forward.1} parent=1 // pred_check_branch
      %4514 = sbr.rel (0) target = $region57
    $region56: #{forward.1} parent=1 // pred_region
      %4516 = vsyncadd [#allocation3], 0
      %s4518 = sshll.u32 [#allocation2], 4
      %s4519 = int_to_ptr.vmem [resolvable:$true] %s4518
      %s4520 = sshll.u32 %s13, 4
      %s4521 = int_to_ptr.hbm [resolvable:$true] %s4520
      %4523 = dma.vmem_to_hbm [thread:$0]  %s4519, 32, %s4521, [#allocation3]
    $region57: #{forward.1} parent=1 // pred_fallthru
      _
    // Predicated region
    $region58: #{forward.1} parent=1 // pred_check
      _
    $region59: #{forward.1} parent=1 // pred_check_branch
      %4525 = sbr.rel (0) target = $region61
    $region60: #{forward.1} parent=1 // pred_region
      %4527 = dma.done [#allocation3], 32
    $region61: #{forward.1} parent=1 // pred_fallthru
      _
    %4528 = vsyncpa [#allocation3], 1

</llo_original>
